<compile_context>
chip_gen: v7x
topology: tpu7x:2x2x1
jax: 0.10.0
libtpu: 0.0.40
codegen_flags: <defaults>
</compile_context>

<pallas_src>
import jax
import jax.numpy as jnp
from jax import lax
from jax.experimental import pallas as pl
from jax.experimental.pallas import tpu as pltpu

LANES = 128


def _round_up(n, m=LANES):
    return ((n + m - 1) // m) * m


def double_conv_kernel(x_ref, w1_ref, b1_ref, w2_ref, b2_ref, o_ref, mid_ref):
    # x_ref  : (1, H+2, W+2, Cin_p)   bf16, spatially padded, lane-dense channels
    # w1_ref : (3, 3*Cin_p,  Cmid_p)  bf16, BN scale folded in, rows ordered (dx, ci)
    # w2_ref : (3, 3*Cmid_p, Cout_p)  bf16
    # b*_ref : (1, C_p) f32 folded BN bias (conv bias + BN shift)
    # o_ref  : (1, H, W, Cout_p) f32
    # mid_ref: (H+2, W+2, Cmid_p) bf16 VMEM scratch (padded intermediate)
    H, W = o_ref.shape[1], o_ref.shape[2]
    Cmid_p = mid_ref.shape[-1]
    Cout_p = o_ref.shape[-1]

    def conv3x3(xpad, w_ref):
        # xpad: (H+2, W+2, C).  One lane-aligned concat over the 3 dx shifts,
        # then 3 accumulating MXU dots (one per dy) with K = 3*C.
        cols = jnp.concatenate(
            [xpad[:, dx:dx + W, :] for dx in range(3)], axis=-1)    # (H+2, W, 3C)
        acc = None
        for dy in range(3):
            lhs = cols[dy:dy + H].reshape(H * W, -1)                # (H*W, 3C)
            part = jnp.dot(lhs, w_ref[dy],
                           preferred_element_type=jnp.float32)      # (H*W, Co)
            acc = part if acc is None else acc + part
        return acc

    # ---- conv1 (BN scale folded into weights) + bias + ReLU (f32 epilogue) --
    acc1 = conv3x3(x_ref[0], w1_ref)
    y1 = jnp.maximum(acc1 + b1_ref[0], 0.0)

    # ---- stage intermediate: zero only the 1-pixel halo ring, then store the
    # interior with a single store (no full-buffer zero fill per grid step).
    zrow = jnp.zeros((1, W + 2, Cmid_p), mid_ref.dtype)
    zcol = jnp.zeros((H + 2, 1, Cmid_p), mid_ref.dtype)
    mid_ref[0:1, :, :] = zrow
    mid_ref[H + 1:H + 2, :, :] = zrow
    mid_ref[:, 0:1, :] = zcol
    mid_ref[:, W + 1:W + 2, :] = zcol
    mid_ref[1:H + 1, 1:W + 1, :] = (
        y1.reshape(H, W, Cmid_p).astype(mid_ref.dtype))

    # ---- conv2 + bias + ReLU ------------------------------------------------
    acc2 = conv3x3(mid_ref[...], w2_ref)
    y2 = jnp.maximum(acc2 + b2_ref[0], 0.0)
    o_ref[0] = y2.reshape(H, W, Cout_p).astype(o_ref.dtype)


def double_conv(x_nchw, w1, b1, bn1, w2, b2, bn2, eps=1e-5):
    """x_nchw: (N, Cin, H, W); w*: (3,3,Ci,Co) HWIO; bn* = (gamma, beta, mean, var)."""
    N, Cin, H, W = x_nchw.shape
    Cmid, Cout = w1.shape[3], w2.shape[3]
    Cin_p, Cmid_p, Cout_p = _round_up(Cin), _round_up(Cmid), _round_up(Cout)

    # NHWC, spatial pad (padding=1) + channel pad to 128 lanes, bf16 for the
    # MXU.  (NCHW<->NHWC transposes exist only because the module's external
    # interface is PyTorch-NCHW.)
    x = jnp.transpose(x_nchw, (0, 2, 3, 1)).astype(jnp.bfloat16)
    xp = jnp.pad(x, ((0, 0), (1, 1), (1, 1), (0, Cin_p - Cin)))

    def fold(w, conv_bias, gamma, beta, mean, var, ci_p, co_p):
        # eval-mode BN folded into a per-output-channel scale (multiplied into
        # the conv weights, in f32, before the bf16 cast) and a bias (applied
        # in the kernel epilogue).
        ci, co = w.shape[2], w.shape[3]
        scale = gamma / jnp.sqrt(var + eps)                        # (co,)
        bias = (conv_bias - mean) * scale + beta                   # (co,)
        wp = jnp.pad(w, ((0, 0), (0, 0), (0, ci_p - ci), (0, co_p - co)))
        sp = jnp.pad(scale, (0, co_p - co))
        wp = wp * sp                                               # fold scale
        # (3,3,ci_p,co_p) -> (3, 3*ci_p, co_p): per-dy weight slabs whose rows
        # are ordered (dx, ci), matching the kernel's dx-concat order.
        w3d = wp.reshape(3, 3 * ci_p, co_p).astype(jnp.bfloat16)
        b2d = jnp.pad(bias, (0, co_p - co)).reshape(1, co_p).astype(jnp.float32)
        return w3d, b2d

    w1_3d, fb1 = fold(w1, b1, *bn1, Cin_p, Cmid_p)
    w2_3d, fb2 = fold(w2, b2, *bn2, Cmid_p, Cout_p)

    out_nhwc = pl.pallas_call(
        double_conv_kernel,
        out_shape=jax.ShapeDtypeStruct((N, H, W, Cout_p), jnp.float32),
        grid_spec=pltpu.PrefetchScalarGridSpec(
            num_scalar_prefetch=0,
            grid=(N,),
            in_specs=[
                pl.BlockSpec((1, H + 2, W + 2, Cin_p), lambda n: (n, 0, 0, 0)),
                pl.BlockSpec((3, 3 * Cin_p, Cmid_p), lambda n: (0, 0, 0)),
                pl.BlockSpec((1, Cmid_p), lambda n: (0, 0)),
                pl.BlockSpec((3, 3 * Cmid_p, Cout_p), lambda n: (0, 0, 0)),
                pl.BlockSpec((1, Cout_p), lambda n: (0, 0)),
            ],
            out_specs=pl.BlockSpec((1, H, W, Cout_p), lambda n: (n, 0, 0, 0)),
            scratch_shapes=[pltpu.VMEM((H + 2, W + 2, Cmid_p), jnp.bfloat16)],
        ),
        compiler_params=pltpu.CompilerParams(
            dimension_semantics=("parallel",),
            vmem_limit_bytes=32 * 1024 * 1024),
    )(xp, w1_3d, fb1, w2_3d, fb2)

    out = out_nhwc[..., :Cout]                 # drop lane padding
    return jnp.transpose(out, (0, 3, 1, 2))    # back to NCHW


def ref_double_conv(x_nchw, w1, b1, bn1, w2, b2, bn2, eps=1e-5):
    """Pure-JAX f32 reference (NCHW, matches PyTorch eval-mode semantics)."""
    def conv(x, w_hwio, b):
        w_oihw = jnp.transpose(w_hwio, (3, 2, 0, 1))
        y = lax.conv_general_dilated(
            x, w_oihw, window_strides=(1, 1), padding=((1, 1), (1, 1)),
            dimension_numbers=('NCHW', 'OIHW', 'NCHW'))
        return y + b[None, :, None, None]

    def bn_relu(y, gamma, beta, mean, var):
        yn = (y - mean[None, :, None, None]) * lax.rsqrt(
            var[None, :, None, None] + eps)
        return jnp.maximum(
            yn * gamma[None, :, None, None] + beta[None, :, None, None], 0.0)

    y = bn_relu(conv(x_nchw, w1, b1), *bn1)
    y = bn_relu(conv(y, w2, b2), *bn2)
    return y


if __name__ == "__main__":
    N, Cin, Cmid, Cout, H, W = 2, 4, 8, 8, 16, 16
    key = jax.random.PRNGKey(0)
    ks = jax.random.split(key, 12)

    x = jax.random.normal(ks[0], (N, Cin, H, W), jnp.float32)

    # deterministic synthetic parameters (shapes from DoubleConv.__init__)
    w1 = 0.2 * jax.random.normal(ks[1], (3, 3, Cin, Cmid), jnp.float32)
    b1 = 0.1 * jax.random.normal(ks[2], (Cmid,), jnp.float32)
    w2 = 0.2 * jax.random.normal(ks[3], (3, 3, Cmid, Cout), jnp.float32)
    b2 = 0.1 * jax.random.normal(ks[4], (Cout,), jnp.float32)

    bn1 = (1.0 + 0.1 * jax.random.normal(ks[5], (Cmid,), jnp.float32),     # gamma
           0.1 * jax.random.normal(ks[6], (Cmid,), jnp.float32),           # beta
           0.1 * jax.random.normal(ks[7], (Cmid,), jnp.float32),           # mean
           0.5 + jnp.abs(jax.random.normal(ks[8], (Cmid,), jnp.float32)))  # var
    bn2 = (1.0 + 0.1 * jax.random.normal(ks[9], (Cout,), jnp.float32),
           0.1 * jax.random.normal(ks[10], (Cout,), jnp.float32),
           0.1 * jax.random.normal(ks[11], (Cout,), jnp.float32),
           0.5 + jnp.abs(jax.random.normal(ks[0], (Cout,), jnp.float32)))

    out = jax.block_until_ready(double_conv(x, w1, b1, bn1, w2, b2, bn2))
    ref = jax.block_until_ready(ref_double_conv(x, w1, b1, bn1, w2, b2, bn2))

    assert out.shape == (N, Cout, H, W)
    # bf16 MXU inputs (vs the pure-f32 reference) -> use a normalized error
    # check instead of a tight element-wise atol.
    max_err = float(jnp.max(jnp.abs(out - ref)))
    denom = float(jnp.max(jnp.abs(ref))) + 1e-6
    assert max_err / denom < 5e-2, (max_err, denom)

    print("KERNEL_OK")
</pallas_src>

<mosaic_0001>
module attributes {stable_mosaic.version = 11 : i64} {
  func.func @double_conv_kernel(%arg0: i32, %arg1: memref<1x18x18x128xbf16, #tpu.memory_space<vmem>>, %arg2: memref<3x384x128xbf16, #tpu.memory_space<vmem>>, %arg3: memref<1x128xf32, #tpu.memory_space<vmem>>, %arg4: memref<3x384x128xbf16, #tpu.memory_space<vmem>>, %arg5: memref<1x128xf32, #tpu.memory_space<vmem>>, %arg6: memref<1x16x16x128xf32, #tpu.memory_space<vmem>>, %arg7: memref<18x18x128xbf16, #tpu.memory_space<vmem>>) attributes {dimension_semantics = [#tpu.dimension_semantics<parallel>], iteration_bounds = array<i64: 2>, scalar_prefetch = 0 : i64, scratch_operands = 1 : i64, tpu.core_type = #tpu.core_type<tc>, window_params = [{transform_indices = @transform_0, window_bounds = array<i64: 1, 18, 18, 128>}, {pipeline_mode = #tpu.pipeline_mode<synchronous>, transform_indices = @transform_1, window_bounds = array<i64: 3, 384, 128>}, {pipeline_mode = #tpu.pipeline_mode<synchronous>, transform_indices = @transform_2, window_bounds = array<i64: 1, 128>}, {pipeline_mode = #tpu.pipeline_mode<synchronous>, transform_indices = @transform_3, window_bounds = array<i64: 3, 384, 128>}, {pipeline_mode = #tpu.pipeline_mode<synchronous>, transform_indices = @transform_4, window_bounds = array<i64: 1, 128>}, {transform_indices = @transform_5, window_bounds = array<i64: 1, 16, 16, 128>}]} {
    %c0 = arith.constant 0 : index
    %c0_0 = arith.constant 0 : index
    %c0_1 = arith.constant 0 : index
    %c0_2 = arith.constant 0 : index
    %0 = vector.load %arg1[%c0, %c0_0, %c0_1, %c0_2] : memref<1x18x18x128xbf16, #tpu.memory_space<vmem>>, vector<1x18x18x128xbf16>
    %1 = vector.shape_cast %0 : vector<1x18x18x128xbf16> to vector<18x18x128xbf16>
    %2 = vector.extract_strided_slice %1 {offsets = [0, 0, 0], sizes = [18, 16, 128], strides = [1, 1, 1]} : vector<18x18x128xbf16> to vector<18x16x128xbf16>
    %3 = vector.extract_strided_slice %1 {offsets = [0, 1, 0], sizes = [18, 16, 128], strides = [1, 1, 1]} : vector<18x18x128xbf16> to vector<18x16x128xbf16>
    %4 = vector.extract_strided_slice %1 {offsets = [0, 2, 0], sizes = [18, 16, 128], strides = [1, 1, 1]} : vector<18x18x128xbf16> to vector<18x16x128xbf16>
    %5 = tpu.concatenate %2, %3, %4 in 2 : vector<18x16x128xbf16>, vector<18x16x128xbf16>, vector<18x16x128xbf16> -> vector<18x16x384xbf16>
    %6 = vector.extract_strided_slice %5 {offsets = [0, 0, 0], sizes = [16, 16, 384], strides = [1, 1, 1]} : vector<18x16x384xbf16> to vector<16x16x384xbf16>
    %7 = vector.shape_cast %6 : vector<16x16x384xbf16> to vector<256x384xbf16>
    %c0_3 = arith.constant 0 : index
    %c0_4 = arith.constant 0 : index
    %c0_5 = arith.constant 0 : index
    %8 = vector.load %arg2[%c0_3, %c0_4, %c0_5] : memref<3x384x128xbf16, #tpu.memory_space<vmem>>, vector<1x384x128xbf16>
    %9 = vector.shape_cast %8 : vector<1x384x128xbf16> to vector<384x128xbf16>
    %cst = arith.constant dense<0.000000e+00> : vector<256x128xf32>
    %10 = tpu.matmul %7, %9, %cst {dimension_numbers = #tpu.dot_dimension_numbers<[1], [0], [0], [1], [0, 0, 1, 1], [], []>} : vector<256x384xbf16>, vector<384x128xbf16>, vector<256x128xf32> -> vector<256x128xf32>
    %11 = vector.extract_strided_slice %5 {offsets = [1, 0, 0], sizes = [16, 16, 384], strides = [1, 1, 1]} : vector<18x16x384xbf16> to vector<16x16x384xbf16>
    %12 = vector.shape_cast %11 : vector<16x16x384xbf16> to vector<256x384xbf16>
    %c1 = arith.constant 1 : index
    %c0_6 = arith.constant 0 : index
    %c0_7 = arith.constant 0 : index
    %13 = vector.load %arg2[%c1, %c0_6, %c0_7] : memref<3x384x128xbf16, #tpu.memory_space<vmem>>, vector<1x384x128xbf16>
    %14 = vector.shape_cast %13 : vector<1x384x128xbf16> to vector<384x128xbf16>
    %cst_8 = arith.constant dense<0.000000e+00> : vector<256x128xf32>
    %15 = tpu.matmul %12, %14, %cst_8 {dimension_numbers = #tpu.dot_dimension_numbers<[1], [0], [0], [1], [0, 0, 1, 1], [], []>} : vector<256x384xbf16>, vector<384x128xbf16>, vector<256x128xf32> -> vector<256x128xf32>
    %16 = arith.addf %10, %15 : vector<256x128xf32>
    %17 = vector.extract_strided_slice %5 {offsets = [2, 0, 0], sizes = [16, 16, 384], strides = [1, 1, 1]} : vector<18x16x384xbf16> to vector<16x16x384xbf16>
    %18 = vector.shape_cast %17 : vector<16x16x384xbf16> to vector<256x384xbf16>
    %c2 = arith.constant 2 : index
    %c0_9 = arith.constant 0 : index
    %c0_10 = arith.constant 0 : index
    %19 = vector.load %arg2[%c2, %c0_9, %c0_10] : memref<3x384x128xbf16, #tpu.memory_space<vmem>>, vector<1x384x128xbf16>
    %20 = vector.shape_cast %19 : vector<1x384x128xbf16> to vector<384x128xbf16>
    %cst_11 = arith.constant dense<0.000000e+00> : vector<256x128xf32>
    %21 = tpu.matmul %18, %20, %cst_11 {dimension_numbers = #tpu.dot_dimension_numbers<[1], [0], [0], [1], [0, 0, 1, 1], [], []>} : vector<256x384xbf16>, vector<384x128xbf16>, vector<256x128xf32> -> vector<256x128xf32>
    %22 = arith.addf %16, %21 : vector<256x128xf32>
    %c0_12 = arith.constant 0 : index
    %c0_13 = arith.constant 0 : index
    %23 = vector.load %arg3[%c0_12, %c0_13] : memref<1x128xf32, #tpu.memory_space<vmem>>, vector<1x128xf32>
    %24 = vector.shape_cast %23 : vector<1x128xf32> to vector<128xf32>
    %25 = vector.shape_cast %24 : vector<128xf32> to vector<1x128xf32>
    %26 = vector.broadcast %25 : vector<1x128xf32> to vector<256x128xf32>
    %27 = arith.addf %22, %26 : vector<256x128xf32>
    %cst_14 = arith.constant 0.000000e+00 : f32
    %28 = vector.broadcast %cst_14 : f32 to vector<256x128xf32>
    %29 = arith.maximumf %27, %28 : vector<256x128xf32>
    %cst_15 = arith.constant 0.000000e+00 : bf16
    %30 = vector.broadcast %cst_15 : bf16 to vector<1x18x128xbf16>
    %cst_16 = arith.constant 0.000000e+00 : bf16
    %31 = vector.broadcast %cst_16 : bf16 to vector<18x1x128xbf16>
    %c0_17 = arith.constant 0 : index
    %c0_18 = arith.constant 0 : index
    %c0_19 = arith.constant 0 : index
    %32 = vector.load %arg7[%c0_17, %c0_18, %c0_19] : memref<18x18x128xbf16, #tpu.memory_space<vmem>>, vector<1x18x128xbf16>
    tpu.vector_store %arg7[%c0_17, %c0_18, %c0_19], %30 {strides = array<i32>} : memref<18x18x128xbf16, #tpu.memory_space<vmem>>, vector<1x18x128xbf16>,
    %c17 = arith.constant 17 : index
    %c0_20 = arith.constant 0 : index
    %c0_21 = arith.constant 0 : index
    %33 = vector.load %arg7[%c17, %c0_20, %c0_21] : memref<18x18x128xbf16, #tpu.memory_space<vmem>>, vector<1x18x128xbf16>
    tpu.vector_store %arg7[%c17, %c0_20, %c0_21], %30 {strides = array<i32>} : memref<18x18x128xbf16, #tpu.memory_space<vmem>>, vector<1x18x128xbf16>,
    %c0_22 = arith.constant 0 : index
    %c0_23 = arith.constant 0 : index
    %c0_24 = arith.constant 0 : index
    %34 = vector.load %arg7[%c0_22, %c0_23, %c0_24] : memref<18x18x128xbf16, #tpu.memory_space<vmem>>, vector<18x1x128xbf16>
    tpu.vector_store %arg7[%c0_22, %c0_23, %c0_24], %31 {strides = array<i32>} : memref<18x18x128xbf16, #tpu.memory_space<vmem>>, vector<18x1x128xbf16>,
    %c0_25 = arith.constant 0 : index
    %c17_26 = arith.constant 17 : index
    %c0_27 = arith.constant 0 : index
    %35 = vector.load %arg7[%c0_25, %c17_26, %c0_27] : memref<18x18x128xbf16, #tpu.memory_space<vmem>>, vector<18x1x128xbf16>
    tpu.vector_store %arg7[%c0_25, %c17_26, %c0_27], %31 {strides = array<i32>} : memref<18x18x128xbf16, #tpu.memory_space<vmem>>, vector<18x1x128xbf16>,
    %36 = vector.shape_cast %29 : vector<256x128xf32> to vector<16x16x128xf32>
    %37 = arith.truncf %36 : vector<16x16x128xf32> to vector<16x16x128xbf16>
    %c1_28 = arith.constant 1 : index
    %c1_29 = arith.constant 1 : index
    %c0_30 = arith.constant 0 : index
    %38 = vector.load %arg7[%c1_28, %c1_29, %c0_30] : memref<18x18x128xbf16, #tpu.memory_space<vmem>>, vector<16x16x128xbf16>
    tpu.vector_store %arg7[%c1_28, %c1_29, %c0_30], %37 {strides = array<i32>} : memref<18x18x128xbf16, #tpu.memory_space<vmem>>, vector<16x16x128xbf16>,
    %c0_31 = arith.constant 0 : index
    %c0_32 = arith.constant 0 : index
    %c0_33 = arith.constant 0 : index
    %39 = vector.load %arg7[%c0_31, %c0_32, %c0_33] : memref<18x18x128xbf16, #tpu.memory_space<vmem>>, vector<18x18x128xbf16>
    %40 = vector.extract_strided_slice %39 {offsets = [0, 0, 0], sizes = [18, 16, 128], strides = [1, 1, 1]} : vector<18x18x128xbf16> to vector<18x16x128xbf16>
    %41 = vector.extract_strided_slice %39 {offsets = [0, 1, 0], sizes = [18, 16, 128], strides = [1, 1, 1]} : vector<18x18x128xbf16> to vector<18x16x128xbf16>
    %42 = vector.extract_strided_slice %39 {offsets = [0, 2, 0], sizes = [18, 16, 128], strides = [1, 1, 1]} : vector<18x18x128xbf16> to vector<18x16x128xbf16>
    %43 = tpu.concatenate %40, %41, %42 in 2 : vector<18x16x128xbf16>, vector<18x16x128xbf16>, vector<18x16x128xbf16> -> vector<18x16x384xbf16>
    %44 = vector.extract_strided_slice %43 {offsets = [0, 0, 0], sizes = [16, 16, 384], strides = [1, 1, 1]} : vector<18x16x384xbf16> to vector<16x16x384xbf16>
    %45 = vector.shape_cast %44 : vector<16x16x384xbf16> to vector<256x384xbf16>
    %c0_34 = arith.constant 0 : index
    %c0_35 = arith.constant 0 : index
    %c0_36 = arith.constant 0 : index
    %46 = vector.load %arg4[%c0_34, %c0_35, %c0_36] : memref<3x384x128xbf16, #tpu.memory_space<vmem>>, vector<1x384x128xbf16>
    %47 = vector.shape_cast %46 : vector<1x384x128xbf16> to vector<384x128xbf16>
    %cst_37 = arith.constant dense<0.000000e+00> : vector<256x128xf32>
    %48 = tpu.matmul %45, %47, %cst_37 {dimension_numbers = #tpu.dot_dimension_numbers<[1], [0], [0], [1], [0, 0, 1, 1], [], []>} : vector<256x384xbf16>, vector<384x128xbf16>, vector<256x128xf32> -> vector<256x128xf32>
    %49 = vector.extract_strided_slice %43 {offsets = [1, 0, 0], sizes = [16, 16, 384], strides = [1, 1, 1]} : vector<18x16x384xbf16> to vector<16x16x384xbf16>
    %50 = vector.shape_cast %49 : vector<16x16x384xbf16> to vector<256x384xbf16>
    %c1_38 = arith.constant 1 : index
    %c0_39 = arith.constant 0 : index
    %c0_40 = arith.constant 0 : index
    %51 = vector.load %arg4[%c1_38, %c0_39, %c0_40] : memref<3x384x128xbf16, #tpu.memory_space<vmem>>, vector<1x384x128xbf16>
    %52 = vector.shape_cast %51 : vector<1x384x128xbf16> to vector<384x128xbf16>
    %cst_41 = arith.constant dense<0.000000e+00> : vector<256x128xf32>
    %53 = tpu.matmul %50, %52, %cst_41 {dimension_numbers = #tpu.dot_dimension_numbers<[1], [0], [0], [1], [0, 0, 1, 1], [], []>} : vector<256x384xbf16>, vector<384x128xbf16>, vector<256x128xf32> -> vector<256x128xf32>
    %54 = arith.addf %48, %53 : vector<256x128xf32>
    %55 = vector.extract_strided_slice %43 {offsets = [2, 0, 0], sizes = [16, 16, 384], strides = [1, 1, 1]} : vector<18x16x384xbf16> to vector<16x16x384xbf16>
    %56 = vector.shape_cast %55 : vector<16x16x384xbf16> to vector<256x384xbf16>
    %c2_42 = arith.constant 2 : index
    %c0_43 = arith.constant 0 : index
    %c0_44 = arith.constant 0 : index
    %57 = vector.load %arg4[%c2_42, %c0_43, %c0_44] : memref<3x384x128xbf16, #tpu.memory_space<vmem>>, vector<1x384x128xbf16>
    %58 = vector.shape_cast %57 : vector<1x384x128xbf16> to vector<384x128xbf16>
    %cst_45 = arith.constant dense<0.000000e+00> : vector<256x128xf32>
    %59 = tpu.matmul %56, %58, %cst_45 {dimension_numbers = #tpu.dot_dimension_numbers<[1], [0], [0], [1], [0, 0, 1, 1], [], []>} : vector<256x384xbf16>, vector<384x128xbf16>, vector<256x128xf32> -> vector<256x128xf32>
    %60 = arith.addf %54, %59 : vector<256x128xf32>
    %c0_46 = arith.constant 0 : index
    %c0_47 = arith.constant 0 : index
    %61 = vector.load %arg5[%c0_46, %c0_47] : memref<1x128xf32, #tpu.memory_space<vmem>>, vector<1x128xf32>
    %62 = vector.shape_cast %61 : vector<1x128xf32> to vector<128xf32>
    %63 = vector.shape_cast %62 : vector<128xf32> to vector<1x128xf32>
    %64 = vector.broadcast %63 : vector<1x128xf32> to vector<256x128xf32>
    %65 = arith.addf %60, %64 : vector<256x128xf32>
    %cst_48 = arith.constant 0.000000e+00 : f32
    %66 = vector.broadcast %cst_48 : f32 to vector<256x128xf32>
    %67 = arith.maximumf %65, %66 : vector<256x128xf32>
    %68 = vector.shape_cast %67 : vector<256x128xf32> to vector<16x16x128xf32>
    %c0_49 = arith.constant 0 : index
    %c0_50 = arith.constant 0 : index
    %c0_51 = arith.constant 0 : index
    %c0_52 = arith.constant 0 : index
    %69 = vector.load %arg6[%c0_49, %c0_50, %c0_51, %c0_52] : memref<1x16x16x128xf32, #tpu.memory_space<vmem>>, vector<1x16x16x128xf32>
    %70 = vector.shape_cast %69 : vector<1x16x16x128xf32> to vector<16x16x128xf32>
    %71 = vector.shape_cast %68 : vector<16x16x128xf32> to vector<1x16x16x128xf32>
    tpu.vector_store %arg6[%c0_49, %c0_50, %c0_51, %c0_52], %71 {strides = array<i32>} : memref<1x16x16x128xf32, #tpu.memory_space<vmem>>, vector<1x16x16x128xf32>,
    return
  }
  func.func @transform_0(%arg0: i32) -> (i32, i32, i32, i32) {
    %c0_i32 = arith.constant 0 : i32
    %c0_i32_0 = arith.constant 0 : i32
    %c0_i32_1 = arith.constant 0 : i32
    %c0_i32_2 = arith.constant 0 : i32
    return %arg0, %c0_i32, %c0_i32_0, %c0_i32_1 : i32, i32, i32, i32
  }
  func.func @transform_1(%arg0: i32) -> (i32, i32, i32) {
    %c0_i32 = arith.constant 0 : i32
    %c0_i32_0 = arith.constant 0 : i32
    %c0_i32_1 = arith.constant 0 : i32
    %c0_i32_2 = arith.constant 0 : i32
    return %c0_i32, %c0_i32_0, %c0_i32_1 : i32, i32, i32
  }
  func.func @transform_2(%arg0: i32) -> (i32, i32) {
    %c0_i32 = arith.constant 0 : i32
    %c0_i32_0 = arith.constant 0 : i32
    %c0_i32_1 = arith.constant 0 : i32
    return %c0_i32, %c0_i32_0 : i32, i32
  }
  func.func @transform_3(%arg0: i32) -> (i32, i32, i32) {
    %c0_i32 = arith.constant 0 : i32
    %c0_i32_0 = arith.constant 0 : i32
    %c0_i32_1 = arith.constant 0 : i32
    %c0_i32_2 = arith.constant 0 : i32
    return %c0_i32, %c0_i32_0, %c0_i32_1 : i32, i32, i32
  }
  func.func @transform_4(%arg0: i32) -> (i32, i32) {
    %c0_i32 = arith.constant 0 : i32
    %c0_i32_0 = arith.constant 0 : i32
    %c0_i32_1 = arith.constant 0 : i32
    return %c0_i32, %c0_i32_0 : i32, i32
  }
  func.func @transform_5(%arg0: i32) -> (i32, i32, i32, i32) {
    %c0_i32 = arith.constant 0 : i32
    %c0_i32_0 = arith.constant 0 : i32
    %c0_i32_1 = arith.constant 0 : i32
    %c0_i32_2 = arith.constant 0 : i32
    return %arg0, %c0_i32, %c0_i32_0, %c0_i32_1 : i32, i32, i32, i32
  }
}

</mosaic_0001>

<llo_original>
// kernel: tpu_custom_call.1
$region0: #{tpu_custom_call.1}
  #allocation0 [shape = 'u32[]', space=smem, size = 0x4, offset = 0x4, fixed_abs, tag = 'smem constant byte address 0x4 - core index']
  #allocation1 [shape = 'u32[144,128]{1,0:T(1,128)}', space=vmem, size = 0x12000, scoped, tag = 'internal scratch']
  #allocation2 [shape = 'bf16[18,18,128]{2,1,0:T(8,128)(2,1)}', space=vmem, size = 0x1b000, scoped, tag = 'scratch operand']
  %s0 = inlined_call_operand.vmem [shape: bf16[2,18,18,128], index: 0, kind: input, shape index: {}]
  %s1 = inlined_call_operand.vmem [shape: bf16[3,384,128], index: 1, kind: input, shape index: {}]
  %s2 = inlined_call_operand.vmem [shape: f32[1,128], index: 2, kind: input, shape index: {}]
  %s3 = inlined_call_operand.hbm [shape: bf16[3,384,128], index: 3, kind: input, shape index: {}]
  %s4 = inlined_call_operand.vmem [shape: f32[1,128], index: 4, kind: input, shape index: {}]
  %s5 = inlined_call_operand.hbm [shape: f32[2,16,16,128], index: 5, kind: output, shape index: {}]
  %s6 = sld [smem:[#allocation0]]
  $region57: #{tpu_custom_call.1} parent=0
    _
  %s8 = ssub.s32 1, %s6
  %s9 = scalar_select 0, %s8, %s6
  $region1: #{tpu_custom_call.1} parent=0
    #allocation3 [shape = 'u8[294912]{0}', space=vmem, size = 0x48000, scoped, tag = 'input window, operand 3, single buffered']
    #allocation4 [shape = 's32[2]{0}', space=sflag, size = 0x8, scoped, tag = 'scoped memory for tpu_custom_call.1']
    #allocation5 [shape = 's32[2]{0}', space=sflag, size = 0x8, scoped, tag = 'scoped memory for tpu_custom_call.1']
    #allocation6 [shape = 'u8[262144]{0}', space=vmem, size = 0x40000, scoped, tag = 'output window, operand 0']
    %10 = vsyncpa [#allocation4], 0
    %11 = vsyncpa [#allocation5], 0
    %s12 = scalar_lea.sflag [#allocation5], 1
    %13 = vsyncpa %s12, 0
    loop: start=0, step=1, limit=4
    $region2: #{tpu_custom_call.1} parent=1 // loop_pre_header
      _
    $region3: #{tpu_custom_call.1} parent=1 // loop_header
      %s15 = sphi 0, %s19
      %p16 = scmp.ge.s32.totalorder %s15, 4
      %s25 = sphi 0, %s27
      %s28 = sphi 0, %s25
      %s29 = sphi 0, %s28
      %s45 = sphi 0, %s29
      %s49 = sphi 0, %s49
      %s51 = sphi 0, %s49
      %s52 = sphi 0, %s51
      %s66 = sphi 0, %s52
      %s70 = sphi 0, %s70
      %s72 = sphi 0, %s70
      %s73 = sphi 0, %s72
      %s87 = sphi 0, %s73
      %s91 = sphi 0, %s91
      %s93 = sphi 0, %s91
      %s94 = sphi 0, %s93
      %s108 = sphi 0, %s94
      %s112 = sphi 0, %s112
      %s114 = sphi 0, %s112
      %s115 = sphi 0, %s114
      %s129 = sphi 0, %s115
      %s135 = sphi 0, %s137
      %s138 = sphi 0, %s135
      %s139 = sphi 0, %s138
      %s155 = sphi 0, %s139
    $region4: #{tpu_custom_call.1} parent=1 // loop_header_branch
      %18 = sbr.rel (%p16) target = $region8
    $region5: #{tpu_custom_call.1} parent=1 // loop_body
      %s20 = ssub.s32 %s15, 1
      %s21 = ssub.s32 %s15, 2
      %s22 = sadd.s32 %s15, 1
      %s23 = ssub.s32 %s15, %s22
      %p24 = scmp.eq.s32.totalorder %s23, 0
      %s26 = sadd.s32 %s25, 1
      %s27 = scalar_select %p24, %s25, %s26
      %p30 = pneg %p24
      %p31 = scmp.eq.s32.totalorder %s15, 1
      %p32 = por %p30, %p31
      %p33 = scmp.ne.s32.totalorder %s25, %s28
      %p34 = scmp.eq.s32.totalorder %s15, 0
      %p35 = por %p33, %p34
      %p36 = scmp.ne.s32.totalorder %s25, %s28
      %p37 = scmp.eq.s32.totalorder %s20, 1
      %p38 = por %p36, %p37
      %p39 = scmp.ne.s32.totalorder %s28, %s29
      %p40 = scmp.eq.s32.totalorder %s20, 0
      %p41 = por %p39, %p40
      %p42 = scmp.ne.s32.totalorder %s28, %s29
      %p43 = scmp.eq.s32.totalorder %s21, 1
      %p44 = por %p42, %p43
      %p46 = scmp.ne.s32.totalorder %s29, %s45
      %p47 = scmp.eq.s32.totalorder %s21, 0
      %p48 = por %p46, %p47
      %s50 = sadd.s32 %s49, 1
      %p53 = scmp.eq.s32.totalorder %s15, 1
      %p54 = scmp.ne.s32.totalorder %s49, %s51
      %p55 = scmp.eq.s32.totalorder %s15, 0
      %p56 = por %p54, %p55
      %p57 = scmp.ne.s32.totalorder %s49, %s51
      %p58 = scmp.eq.s32.totalorder %s20, 1
      %p59 = por %p57, %p58
      %p60 = scmp.ne.s32.totalorder %s51, %s52
      %p61 = scmp.eq.s32.totalorder %s20, 0
      %p62 = por %p60, %p61
      %p63 = scmp.ne.s32.totalorder %s51, %s52
      %p64 = scmp.eq.s32.totalorder %s21, 1
      %p65 = por %p63, %p64
      %p67 = scmp.ne.s32.totalorder %s52, %s66
      %p68 = scmp.eq.s32.totalorder %s21, 0
      %p69 = por %p67, %p68
      %s71 = sadd.s32 %s70, 1
      %p74 = scmp.eq.s32.totalorder %s15, 1
      %p75 = scmp.ne.s32.totalorder %s70, %s72
      %p76 = scmp.eq.s32.totalorder %s15, 0
      %p77 = por %p75, %p76
      %p78 = scmp.ne.s32.totalorder %s70, %s72
      %p79 = scmp.eq.s32.totalorder %s20, 1
      %p80 = por %p78, %p79
      %p81 = scmp.ne.s32.totalorder %s72, %s73
      %p82 = scmp.eq.s32.totalorder %s20, 0
      %p83 = por %p81, %p82
      %p84 = scmp.ne.s32.totalorder %s72, %s73
      %p85 = scmp.eq.s32.totalorder %s21, 1
      %p86 = por %p84, %p85
      %p88 = scmp.ne.s32.totalorder %s73, %s87
      %p89 = scmp.eq.s32.totalorder %s21, 0
      %p90 = por %p88, %p89
      %s92 = sadd.s32 %s91, 1
      %p95 = scmp.eq.s32.totalorder %s15, 1
      %p96 = scmp.ne.s32.totalorder %s91, %s93
      %p97 = scmp.eq.s32.totalorder %s15, 0
      %p98 = por %p96, %p97
      %p99 = scmp.ne.s32.totalorder %s91, %s93
      %p100 = scmp.eq.s32.totalorder %s20, 1
      %p101 = por %p99, %p100
      %p102 = scmp.ne.s32.totalorder %s93, %s94
      %p103 = scmp.eq.s32.totalorder %s20, 0
      %p104 = por %p102, %p103
      %p105 = scmp.ne.s32.totalorder %s93, %s94
      %p106 = scmp.eq.s32.totalorder %s21, 1
      %p107 = por %p105, %p106
      %p109 = scmp.ne.s32.totalorder %s94, %s108
      %p110 = scmp.eq.s32.totalorder %s21, 0
      %p111 = por %p109, %p110
      %s113 = sadd.s32 %s112, 1
      %p116 = scmp.eq.s32.totalorder %s15, 1
      %p117 = scmp.ne.s32.totalorder %s112, %s114
      %p118 = scmp.eq.s32.totalorder %s15, 0
      %p119 = por %p117, %p118
      %p120 = scmp.ne.s32.totalorder %s112, %s114
      %p121 = scmp.eq.s32.totalorder %s20, 1
      %p122 = por %p120, %p121
      %p123 = scmp.ne.s32.totalorder %s114, %s115
      %p124 = scmp.eq.s32.totalorder %s20, 0
      %p125 = por %p123, %p124
      %p126 = scmp.ne.s32.totalorder %s114, %s115
      %p127 = scmp.eq.s32.totalorder %s21, 1
      %p128 = por %p126, %p127
      %p130 = scmp.ne.s32.totalorder %s115, %s129
      %p131 = scmp.eq.s32.totalorder %s21, 0
      %p132 = por %p130, %p131
      %s133 = ssub.s32 %s15, %s22
      %p134 = scmp.eq.s32.totalorder %s133, 0
      %s136 = sadd.s32 %s135, 1
      %s137 = scalar_select %p134, %s135, %s136
      %p140 = pneg %p134
      %p141 = scmp.eq.s32.totalorder %s15, 1
      %p142 = por %p140, %p141
      %p143 = scmp.ne.s32.totalorder %s135, %s138
      %p144 = scmp.eq.s32.totalorder %s15, 0
      %p145 = por %p143, %p144
      %p146 = scmp.ne.s32.totalorder %s135, %s138
      %p147 = scmp.eq.s32.totalorder %s20, 1
      %p148 = por %p146, %p147
      %p149 = scmp.ne.s32.totalorder %s138, %s139
      %p150 = scmp.eq.s32.totalorder %s20, 0
      %p151 = por %p149, %p150
      %p152 = scmp.ne.s32.totalorder %s138, %s139
      %p153 = scmp.eq.s32.totalorder %s21, 1
      %p154 = por %p152, %p153
      %p156 = scmp.ne.s32.totalorder %s139, %s155
      %p157 = scmp.eq.s32.totalorder %s21, 0
      %p158 = por %p156, %p157
      %p159 = scmp.le.s32.totalorder 1, %s15
      %p160 = scmp.lt.s32.totalorder %s15, 3
      %p161 = pnand %p159, %p160
      %p162 = pneg %p161
      // Predicated region
      $region9: #{tpu_custom_call.1} parent=5 // pred_check
        _
      $region10: #{tpu_custom_call.1} parent=5 // pred_check_branch
        %164 = sbr.rel (%p161) target = $region12
      $region11: #{tpu_custom_call.1} parent=5 // pred_region
        %s165 = ssub.s32 %s15, 1
        // Predicated region
        $region13: #{tpu_custom_call.1} parent=11 // pred_check
          %p166 = pneg %p62
        $region14: #{tpu_custom_call.1} parent=11 // pred_check_branch
          %168 = sbr.rel (%p166) target = $region16
        $region15: #{tpu_custom_call.1} parent=11 // pred_region
          _
        $region16: #{tpu_custom_call.1} parent=11 // pred_fallthru
          _
        // Predicated region
        $region17: #{tpu_custom_call.1} parent=11 // pred_check
          %p169 = pneg %p83
        $region18: #{tpu_custom_call.1} parent=11 // pred_check_branch
          %171 = sbr.rel (%p169) target = $region20
        $region19: #{tpu_custom_call.1} parent=11 // pred_region
          _
        $region20: #{tpu_custom_call.1} parent=11 // pred_fallthru
          _
        // Predicated region
        $region21: #{tpu_custom_call.1} parent=11 // pred_check
          %p172 = pneg %p104
        $region22: #{tpu_custom_call.1} parent=11 // pred_check_branch
          %174 = sbr.rel (%p172) target = $region24
        $region23: #{tpu_custom_call.1} parent=11 // pred_region
          %s176 = ssub.s32 9216, 9216
          %177 = vsyncadd [#allocation4], %s176
          %s178 = sshll.u32 [#allocation3], 4
          %s179 = int_to_ptr.vmem [resolvable:$true] %s178
          %184 = dma.hbm_to_vmem [thread:$0]  %s3, 9216, %s179, [#allocation4], 64, 64, 4
        $region24: #{tpu_custom_call.1} parent=11 // pred_fallthru
          _
        // Predicated region
        $region25: #{tpu_custom_call.1} parent=11 // pred_check
          %p185 = pneg %p125
        $region26: #{tpu_custom_call.1} parent=11 // pred_check_branch
          %187 = sbr.rel (%p185) target = $region28
        $region27: #{tpu_custom_call.1} parent=11 // pred_region
          _
        $region28: #{tpu_custom_call.1} parent=11 // pred_fallthru
          _
      $region12: #{tpu_custom_call.1} parent=5 // pred_fallthru
        _
      %p188 = scmp.lt.s32.totalorder %s15, 2
      // Predicated region
      $region29: #{tpu_custom_call.1} parent=5 // pred_check
        %p189 = pneg %p188
      $region30: #{tpu_custom_call.1} parent=5 // pred_check_branch
        %191 = sbr.rel (%p189) target = $region32
      $region31: #{tpu_custom_call.1} parent=5 // pred_region
        // Predicated region
        $region33: #{tpu_custom_call.1} parent=31 // pred_check
          %p192 = pneg %p35
        $region34: #{tpu_custom_call.1} parent=31 // pred_check_branch
          %194 = sbr.rel (%p192) target = $region36
        $region35: #{tpu_custom_call.1} parent=31 // pred_region
          %p195 = scmp.lt.s32.totalorder %s15, 1
          %s196 = scalar_select %p195, %s15, 1
          %s197 = smul.addr %s196, 54
          %s198 = smul.addr %s197, 4
          %s199 = scalar_lea.vmem %s0, %s198
        $region36: #{tpu_custom_call.1} parent=31 // pred_fallthru
          _
      $region32: #{tpu_custom_call.1} parent=5 // pred_fallthru
        _
      %p200 = scmp.le.s32.totalorder 1, %s15
      %p201 = scmp.lt.s32.totalorder %s15, 3
      %p202 = pnand %p200, %p201
      %p203 = pneg %p202
      // Predicated region
      $region37: #{tpu_custom_call.1} parent=5 // pred_check
        _
      $region38: #{tpu_custom_call.1} parent=5 // pred_check_branch
        %205 = sbr.rel (%p202) target = $region40
      $region39: #{tpu_custom_call.1} parent=5 // pred_region
        %s206 = ssub.s32 %s15, 1
        // Predicated region
        $region41: #{tpu_custom_call.1} parent=39 // pred_check
          %p207 = pneg %p104
        $region42: #{tpu_custom_call.1} parent=39 // pred_check_branch
          %209 = sbr.rel (%p207) target = $region44
        $region43: #{tpu_custom_call.1} parent=39 // pred_region
          %210 = dma.done [#allocation4], 9216
        $region44: #{tpu_custom_call.1} parent=39 // pred_fallthru
          _
        %p211 = scmp.lt.s32.totalorder %s20, 1
        %s212 = scalar_select %p211, %s20, 1
        %s213 = smul.addr %s212, 54
        %s214 = smul.addr %s213, 4
        %s215 = scalar_lea.vmem %s0, %s214
        %p216 = pneg %p41
        %p217 = pneg %p38
        %p218 = pneg %p62
        %p219 = pneg %p59
        %p220 = pneg %p83
        %p221 = pneg %p80
        %p222 = pneg %p104
        %p223 = pneg %p101
        %p224 = pneg %p125
        %p225 = pneg %p122
        %p226 = pneg %p151
        %p227 = pneg %p148
        %s228 = sand.u32 %s138, 1
        %s229 = scalar_lea.sflag [#allocation5], %s228
        %s230 = sand.u32 %s138, 1
        %s231 = smul.addr %s230, 256
        %s232 = scalar_lea.vmem [#allocation6], %s231
        %p233 = scmp.lt.s32.totalorder %s20, 1
        %s234 = scalar_select %p233, %s20, 1
        %s235 = smul.addr %s234, 54
        %s236 = smul.addr %s235, 4
        %s237 = scalar_lea.vmem %s0, %s236
        %v239 = vld [vmem:[%s237] sm:$0xf]
        %v240 = vld [vmem:[%s237 + $0x4] sm:$0xf]
        %v241 = vld [vmem:[%s237 + $0x8] sm:$0x1]
        %v242 = vld [vmem:[%s237 + $0xc] sm:$0xf]
        %v243 = vld [vmem:[%s237 + $0x10] sm:$0xf]
        %v244 = vld [vmem:[%s237 + $0x14] sm:$0x1]
        %v245 = vld [vmem:[%s237 + $0x18] sm:$0xf]
        %v246 = vld [vmem:[%s237 + $0x1c] sm:$0xf]
        %v247 = vld [vmem:[%s237 + $0x20] sm:$0x1]
        %v248 = vld [vmem:[%s237 + $0x24] sm:$0xf]
        %v249 = vld [vmem:[%s237 + $0x28] sm:$0xf]
        %v250 = vld [vmem:[%s237 + $0x2c] sm:$0x1]
        %v251 = vld [vmem:[%s237 + $0x30] sm:$0xf]
        %v252 = vld [vmem:[%s237 + $0x34] sm:$0xf]
        %v253 = vld [vmem:[%s237 + $0x38] sm:$0x1]
        %v254 = vld [vmem:[%s237 + $0x3c] sm:$0xf]
        %v255 = vld [vmem:[%s237 + $0x40] sm:$0xf]
        %v256 = vld [vmem:[%s237 + $0x44] sm:$0x1]
        %v257 = vld [vmem:[%s237 + $0x48] sm:$0xf]
        %v258 = vld [vmem:[%s237 + $0x4c] sm:$0xf]
        %v259 = vld [vmem:[%s237 + $0x50] sm:$0x1]
        %v260 = vld [vmem:[%s237 + $0x54] sm:$0xf]
        %v261 = vld [vmem:[%s237 + $0x58] sm:$0xf]
        %v262 = vld [vmem:[%s237 + $0x5c] sm:$0x1]
        %v263 = vld [vmem:[%s237 + $0x60] sm:$0xf]
        %v264 = vld [vmem:[%s237 + $0x64] sm:$0xf]
        %v265 = vld [vmem:[%s237 + $0x68] sm:$0x1]
        %v266 = vld [vmem:[%s237 + $0x6c] sm:$0xf]
        %v267 = vld [vmem:[%s237 + $0x70] sm:$0xf]
        %v268 = vld [vmem:[%s237 + $0x74] sm:$0x1]
        %v269 = vld [vmem:[%s237 + $0x78] sm:$0xf]
        %v270 = vld [vmem:[%s237 + $0x7c] sm:$0xf]
        %v271 = vld [vmem:[%s237 + $0x80] sm:$0x1]
        %v272 = vld [vmem:[%s237 + $0x84] sm:$0xf]
        %v273 = vld [vmem:[%s237 + $0x88] sm:$0xf]
        %v274 = vld [vmem:[%s237 + $0x8c] sm:$0x1]
        %v275 = vld [vmem:[%s237 + $0x90] sm:$0xf]
        %v276 = vld [vmem:[%s237 + $0x94] sm:$0xf]
        %v277 = vld [vmem:[%s237 + $0x98] sm:$0x1]
        %v278 = vld [vmem:[%s237 + $0x9c] sm:$0xf]
        %v279 = vld [vmem:[%s237 + $0xa0] sm:$0xf]
        %v280 = vld [vmem:[%s237 + $0xa4] sm:$0x1]
        %v281 = vld [vmem:[%s237 + $0xa8] sm:$0xf]
        %v282 = vld [vmem:[%s237 + $0xac] sm:$0xf]
        %v283 = vld [vmem:[%s237 + $0xb0] sm:$0x1]
        %v284 = vld [vmem:[%s237 + $0xb4] sm:$0xf]
        %v285 = vld [vmem:[%s237 + $0xb8] sm:$0xf]
        %v286 = vld [vmem:[%s237 + $0xbc] sm:$0x1]
        %v287 = vld [vmem:[%s237 + $0xc0] sm:$0xf]
        %v288 = vld [vmem:[%s237 + $0xc4] sm:$0xf]
        %v289 = vld [vmem:[%s237 + $0xc8] sm:$0x1]
        %v290 = vld [vmem:[%s237 + $0xcc] sm:$0xf]
        %v291 = vld [vmem:[%s237 + $0xd0] sm:$0xf]
        %v292 = vld [vmem:[%s237 + $0xd4] sm:$0x1]
        %v329 = vunpack.c.l.b16 %v239
        %v330 = vunpack.c.l.b16 %v240
        %v331 = vunpack.c.l.b16 %v242
        %v332 = vunpack.c.l.b16 %v243
        %v333 = vunpack.c.l.b16 %v245
        %v334 = vunpack.c.l.b16 %v246
        %v335 = vunpack.c.l.b16 %v248
        %v336 = vunpack.c.l.b16 %v249
        %v337 = vunpack.c.l.b16 %v251
        %v338 = vunpack.c.l.b16 %v252
        %v339 = vunpack.c.l.b16 %v254
        %v340 = vunpack.c.l.b16 %v255
        %v341 = vunpack.c.l.b16 %v257
        %v342 = vunpack.c.l.b16 %v258
        %v343 = vunpack.c.l.b16 %v260
        %v344 = vunpack.c.l.b16 %v261
        %v345 = vunpack.c.l.b16 %v263
        %v346 = vunpack.c.l.b16 %v264
        %v347 = vunpack.c.l.b16 %v266
        %v348 = vunpack.c.l.b16 %v267
        %v349 = vunpack.c.l.b16 %v269
        %v350 = vunpack.c.l.b16 %v270
        %v351 = vunpack.c.l.b16 %v272
        %v352 = vunpack.c.l.b16 %v273
        %v353 = vunpack.c.l.b16 %v275
        %v354 = vunpack.c.l.b16 %v276
        %v355 = vunpack.c.l.b16 %v278
        %v356 = vunpack.c.l.b16 %v279
        %v357 = vunpack.c.l.b16 %v281
        %v358 = vunpack.c.l.b16 %v282
        %v359 = vunpack.c.l.b16 %v284
        %v360 = vunpack.c.l.b16 %v285
        %v361 = vunpack.c.l.b16 %v287
        %v362 = vunpack.c.l.b16 %v288
        %v363 = vunpack.c.l.b16 %v290
        %v364 = vunpack.c.l.b16 %v291
        %v365 = vpack.c.b16 %v330, %v329
        %v366 = vpack.c.b16 %v332, %v331
        %v367 = vpack.c.b16 %v334, %v333
        %v368 = vpack.c.b16 %v336, %v335
        %v369 = vpack.c.b16 %v338, %v337
        %v370 = vpack.c.b16 %v340, %v339
        %v371 = vpack.c.b16 %v342, %v341
        %v372 = vpack.c.b16 %v344, %v343
        %v373 = vpack.c.b16 %v346, %v345
        %v374 = vpack.c.b16 %v348, %v347
        %v375 = vpack.c.b16 %v350, %v349
        %v376 = vpack.c.b16 %v352, %v351
        %v377 = vpack.c.b16 %v354, %v353
        %v378 = vpack.c.b16 %v356, %v355
        %v379 = vpack.c.b16 %v358, %v357
        %v380 = vpack.c.b16 %v360, %v359
        %v381 = vpack.c.b16 %v362, %v361
        %v382 = vpack.c.b16 %v364, %v363
        %v419 = vunpack.c.l.b16 %v241
        %v420 = vunpack.c.l.b16 %v244
        %v421 = vunpack.c.l.b16 %v247
        %v422 = vunpack.c.l.b16 %v250
        %v423 = vunpack.c.l.b16 %v253
        %v424 = vunpack.c.l.b16 %v256
        %v425 = vunpack.c.l.b16 %v259
        %v426 = vunpack.c.l.b16 %v262
        %v427 = vunpack.c.l.b16 %v265
        %v428 = vunpack.c.l.b16 %v268
        %v429 = vunpack.c.l.b16 %v271
        %v430 = vunpack.c.l.b16 %v274
        %v431 = vunpack.c.l.b16 %v277
        %v432 = vunpack.c.l.b16 %v280
        %v433 = vunpack.c.l.b16 %v283
        %v434 = vunpack.c.l.b16 %v286
        %v435 = vunpack.c.l.b16 %v289
        %v436 = vunpack.c.l.b16 %v292
        %v437 = vpack.c.b16 %v419, %v419
        %v438 = vpack.c.b16 %v420, %v420
        %v439 = vpack.c.b16 %v421, %v421
        %v440 = vpack.c.b16 %v422, %v422
        %v441 = vpack.c.b16 %v423, %v423
        %v442 = vpack.c.b16 %v424, %v424
        %v443 = vpack.c.b16 %v425, %v425
        %v444 = vpack.c.b16 %v426, %v426
        %v445 = vpack.c.b16 %v427, %v427
        %v446 = vpack.c.b16 %v428, %v428
        %v447 = vpack.c.b16 %v429, %v429
        %v448 = vpack.c.b16 %v430, %v430
        %v449 = vpack.c.b16 %v431, %v431
        %v450 = vpack.c.b16 %v432, %v432
        %v451 = vpack.c.b16 %v433, %v433
        %v452 = vpack.c.b16 %v434, %v434
        %v453 = vpack.c.b16 %v435, %v435
        %v454 = vpack.c.b16 %v436, %v436
        %vm455 = vsmask.f32 7424
        %v457 = vshrl.u32 %v365, 16
        %v459 = vshll.u32 %v365, 16
        %v461 = vrot.slane %v459, 1
        %v462 = vor.u32 %v457, %v461
        %v464 = vshll.u32 %v437, 16
        %v466 = vrot.slane %v464, 1
        %v467 = vsel %vm455, %v462, %v466
        %v469 = vshrl.u32 %v366, 16
        %v471 = vshll.u32 %v366, 16
        %v473 = vrot.slane %v471, 1
        %v474 = vor.u32 %v469, %v473
        %v476 = vshll.u32 %v438, 16
        %v478 = vrot.slane %v476, 1
        %v479 = vsel %vm455, %v474, %v478
        %v481 = vshrl.u32 %v367, 16
        %v483 = vshll.u32 %v367, 16
        %v485 = vrot.slane %v483, 1
        %v486 = vor.u32 %v481, %v485
        %v488 = vshll.u32 %v439, 16
        %v490 = vrot.slane %v488, 1
        %v491 = vsel %vm455, %v486, %v490
        %v493 = vshrl.u32 %v368, 16
        %v495 = vshll.u32 %v368, 16
        %v497 = vrot.slane %v495, 1
        %v498 = vor.u32 %v493, %v497
        %v500 = vshll.u32 %v440, 16
        %v502 = vrot.slane %v500, 1
        %v503 = vsel %vm455, %v498, %v502
        %v505 = vshrl.u32 %v369, 16
        %v507 = vshll.u32 %v369, 16
        %v509 = vrot.slane %v507, 1
        %v510 = vor.u32 %v505, %v509
        %v512 = vshll.u32 %v441, 16
        %v514 = vrot.slane %v512, 1
        %v515 = vsel %vm455, %v510, %v514
        %v517 = vshrl.u32 %v370, 16
        %v519 = vshll.u32 %v370, 16
        %v521 = vrot.slane %v519, 1
        %v522 = vor.u32 %v517, %v521
        %v524 = vshll.u32 %v442, 16
        %v526 = vrot.slane %v524, 1
        %v527 = vsel %vm455, %v522, %v526
        %v529 = vshrl.u32 %v371, 16
        %v531 = vshll.u32 %v371, 16
        %v533 = vrot.slane %v531, 1
        %v534 = vor.u32 %v529, %v533
        %v536 = vshll.u32 %v443, 16
        %v538 = vrot.slane %v536, 1
        %v539 = vsel %vm455, %v534, %v538
        %v541 = vshrl.u32 %v372, 16
        %v543 = vshll.u32 %v372, 16
        %v545 = vrot.slane %v543, 1
        %v546 = vor.u32 %v541, %v545
        %v548 = vshll.u32 %v444, 16
        %v550 = vrot.slane %v548, 1
        %v551 = vsel %vm455, %v546, %v550
        %v553 = vshrl.u32 %v373, 16
        %v555 = vshll.u32 %v373, 16
        %v557 = vrot.slane %v555, 1
        %v558 = vor.u32 %v553, %v557
        %v560 = vshll.u32 %v445, 16
        %v562 = vrot.slane %v560, 1
        %v563 = vsel %vm455, %v558, %v562
        %v565 = vshrl.u32 %v374, 16
        %v567 = vshll.u32 %v374, 16
        %v569 = vrot.slane %v567, 1
        %v570 = vor.u32 %v565, %v569
        %v572 = vshll.u32 %v446, 16
        %v574 = vrot.slane %v572, 1
        %v575 = vsel %vm455, %v570, %v574
        %v577 = vshrl.u32 %v375, 16
        %v579 = vshll.u32 %v375, 16
        %v581 = vrot.slane %v579, 1
        %v582 = vor.u32 %v577, %v581
        %v584 = vshll.u32 %v447, 16
        %v586 = vrot.slane %v584, 1
        %v587 = vsel %vm455, %v582, %v586
        %v589 = vshrl.u32 %v376, 16
        %v591 = vshll.u32 %v376, 16
        %v593 = vrot.slane %v591, 1
        %v594 = vor.u32 %v589, %v593
        %v596 = vshll.u32 %v448, 16
        %v598 = vrot.slane %v596, 1
        %v599 = vsel %vm455, %v594, %v598
        %v601 = vshrl.u32 %v377, 16
        %v603 = vshll.u32 %v377, 16
        %v605 = vrot.slane %v603, 1
        %v606 = vor.u32 %v601, %v605
        %v608 = vshll.u32 %v449, 16
        %v610 = vrot.slane %v608, 1
        %v611 = vsel %vm455, %v606, %v610
        %v613 = vshrl.u32 %v378, 16
        %v615 = vshll.u32 %v378, 16
        %v617 = vrot.slane %v615, 1
        %v618 = vor.u32 %v613, %v617
        %v620 = vshll.u32 %v450, 16
        %v622 = vrot.slane %v620, 1
        %v623 = vsel %vm455, %v618, %v622
        %v625 = vshrl.u32 %v379, 16
        %v627 = vshll.u32 %v379, 16
        %v629 = vrot.slane %v627, 1
        %v630 = vor.u32 %v625, %v629
        %v632 = vshll.u32 %v451, 16
        %v634 = vrot.slane %v632, 1
        %v635 = vsel %vm455, %v630, %v634
        %v637 = vshrl.u32 %v380, 16
        %v639 = vshll.u32 %v380, 16
        %v641 = vrot.slane %v639, 1
        %v642 = vor.u32 %v637, %v641
        %v644 = vshll.u32 %v452, 16
        %v646 = vrot.slane %v644, 1
        %v647 = vsel %vm455, %v642, %v646
        %v649 = vshrl.u32 %v381, 16
        %v651 = vshll.u32 %v381, 16
        %v653 = vrot.slane %v651, 1
        %v654 = vor.u32 %v649, %v653
        %v656 = vshll.u32 %v453, 16
        %v658 = vrot.slane %v656, 1
        %v659 = vsel %vm455, %v654, %v658
        %v661 = vshrl.u32 %v382, 16
        %v663 = vshll.u32 %v382, 16
        %v665 = vrot.slane %v663, 1
        %v666 = vor.u32 %v661, %v665
        %v668 = vshll.u32 %v454, 16
        %v670 = vrot.slane %v668, 1
        %v671 = vsel %vm455, %v666, %v670
        %vm690 = vcmask 1046528
        %v691 = vrot.slane %v365, 1
        %v692 = vrot.slane %v437, 1
        %v693 = vsel %vm690, %v691, %v692
        %v694 = vrot.slane %v366, 1
        %v695 = vrot.slane %v438, 1
        %v696 = vsel %vm690, %v694, %v695
        %v697 = vrot.slane %v367, 1
        %v698 = vrot.slane %v439, 1
        %v699 = vsel %vm690, %v697, %v698
        %v700 = vrot.slane %v368, 1
        %v701 = vrot.slane %v440, 1
        %v702 = vsel %vm690, %v700, %v701
        %v703 = vrot.slane %v369, 1
        %v704 = vrot.slane %v441, 1
        %v705 = vsel %vm690, %v703, %v704
        %v706 = vrot.slane %v370, 1
        %v707 = vrot.slane %v442, 1
        %v708 = vsel %vm690, %v706, %v707
        %v709 = vrot.slane %v371, 1
        %v710 = vrot.slane %v443, 1
        %v711 = vsel %vm690, %v709, %v710
        %v712 = vrot.slane %v372, 1
        %v713 = vrot.slane %v444, 1
        %v714 = vsel %vm690, %v712, %v713
        %v715 = vrot.slane %v373, 1
        %v716 = vrot.slane %v445, 1
        %v717 = vsel %vm690, %v715, %v716
        %v718 = vrot.slane %v374, 1
        %v719 = vrot.slane %v446, 1
        %v720 = vsel %vm690, %v718, %v719
        %v721 = vrot.slane %v375, 1
        %v722 = vrot.slane %v447, 1
        %v723 = vsel %vm690, %v721, %v722
        %v724 = vrot.slane %v376, 1
        %v725 = vrot.slane %v448, 1
        %v726 = vsel %vm690, %v724, %v725
        %v727 = vrot.slane %v377, 1
        %v728 = vrot.slane %v449, 1
        %v729 = vsel %vm690, %v727, %v728
        %v730 = vrot.slane %v378, 1
        %v731 = vrot.slane %v450, 1
        %v732 = vsel %vm690, %v730, %v731
        %v733 = vrot.slane %v379, 1
        %v734 = vrot.slane %v451, 1
        %v735 = vsel %vm690, %v733, %v734
        %v736 = vrot.slane %v380, 1
        %v737 = vrot.slane %v452, 1
        %v738 = vsel %vm690, %v736, %v737
        %v739 = vrot.slane %v381, 1
        %v740 = vrot.slane %v453, 1
        %v741 = vsel %vm690, %v739, %v740
        %v742 = vrot.slane %v382, 1
        %v743 = vrot.slane %v454, 1
        %v744 = vsel %vm690, %v742, %v743
        %v763 = vld [vmem:[%s1] sm:$0xf]
        %v764 = vld [vmem:[%s1 + $0x4] sm:$0xf]
        %v765 = vld [vmem:[%s1 + $0x8] sm:$0xf]
        %v766 = vld [vmem:[%s1 + $0xc] sm:$0xf]
        %v767 = vld [vmem:[%s1 + $0x10] sm:$0xf]
        %v768 = vld [vmem:[%s1 + $0x14] sm:$0xf]
        %v769 = vld [vmem:[%s1 + $0x18] sm:$0xf]
        %v770 = vld [vmem:[%s1 + $0x1c] sm:$0xf]
        %v771 = vld [vmem:[%s1 + $0x20] sm:$0xf]
        %v772 = vld [vmem:[%s1 + $0x24] sm:$0xf]
        %v773 = vld [vmem:[%s1 + $0x28] sm:$0xf]
        %v774 = vld [vmem:[%s1 + $0x2c] sm:$0xf]
        %v775 = vld [vmem:[%s1 + $0x30] sm:$0xf]
        %v776 = vld [vmem:[%s1 + $0x34] sm:$0xf]
        %v777 = vld [vmem:[%s1 + $0x38] sm:$0xf]
        %v778 = vld [vmem:[%s1 + $0x3c] sm:$0xf]
        %v779 = vld [vmem:[%s1 + $0x40] sm:$0xf]
        %v780 = vld [vmem:[%s1 + $0x44] sm:$0xf]
        %v781 = vld [vmem:[%s1 + $0x48] sm:$0xf]
        %v782 = vld [vmem:[%s1 + $0x4c] sm:$0xf]
        %v783 = vld [vmem:[%s1 + $0x50] sm:$0xf]
        %v784 = vld [vmem:[%s1 + $0x54] sm:$0xf]
        %v785 = vld [vmem:[%s1 + $0x58] sm:$0xf]
        %v786 = vld [vmem:[%s1 + $0x5c] sm:$0xf]
        %v787 = vld [vmem:[%s1 + $0x60] sm:$0xf]
        %v788 = vld [vmem:[%s1 + $0x64] sm:$0xf]
        %v789 = vld [vmem:[%s1 + $0x68] sm:$0xf]
        %v790 = vld [vmem:[%s1 + $0x6c] sm:$0xf]
        %v791 = vld [vmem:[%s1 + $0x70] sm:$0xf]
        %v792 = vld [vmem:[%s1 + $0x74] sm:$0xf]
        %v793 = vld [vmem:[%s1 + $0x78] sm:$0xf]
        %v794 = vld [vmem:[%s1 + $0x7c] sm:$0xf]
        %v795 = vld [vmem:[%s1 + $0x80] sm:$0xf]
        %v796 = vld [vmem:[%s1 + $0x84] sm:$0xf]
        %v797 = vld [vmem:[%s1 + $0x88] sm:$0xf]
        %v798 = vld [vmem:[%s1 + $0x8c] sm:$0xf]
        %v799 = vld [vmem:[%s1 + $0x90] sm:$0xf]
        %v800 = vld [vmem:[%s1 + $0x94] sm:$0xf]
        %v801 = vld [vmem:[%s1 + $0x98] sm:$0xf]
        %v802 = vld [vmem:[%s1 + $0x9c] sm:$0xf]
        %v803 = vld [vmem:[%s1 + $0xa0] sm:$0xf]
        %v804 = vld [vmem:[%s1 + $0xa4] sm:$0xf]
        %v805 = vld [vmem:[%s1 + $0xa8] sm:$0xf]
        %v806 = vld [vmem:[%s1 + $0xac] sm:$0xf]
        %v807 = vld [vmem:[%s1 + $0xb0] sm:$0xf]
        %v808 = vld [vmem:[%s1 + $0xb4] sm:$0xf]
        %v809 = vld [vmem:[%s1 + $0xb8] sm:$0xf]
        %v810 = vld [vmem:[%s1 + $0xbc] sm:$0xf]
        %s811 = scalar_lea.vmem %s1, 192
        %v812 = vld [vmem:[%s811] sm:$0xf]
        %v813 = vld [vmem:[%s811 + $0x4] sm:$0xf]
        %v814 = vld [vmem:[%s811 + $0x8] sm:$0xf]
        %v815 = vld [vmem:[%s811 + $0xc] sm:$0xf]
        %v816 = vld [vmem:[%s811 + $0x10] sm:$0xf]
        %v817 = vld [vmem:[%s811 + $0x14] sm:$0xf]
        %v818 = vld [vmem:[%s811 + $0x18] sm:$0xf]
        %v819 = vld [vmem:[%s811 + $0x1c] sm:$0xf]
        %v820 = vld [vmem:[%s811 + $0x20] sm:$0xf]
        %v821 = vld [vmem:[%s811 + $0x24] sm:$0xf]
        %v822 = vld [vmem:[%s811 + $0x28] sm:$0xf]
        %v823 = vld [vmem:[%s811 + $0x2c] sm:$0xf]
        %v824 = vld [vmem:[%s811 + $0x30] sm:$0xf]
        %v825 = vld [vmem:[%s811 + $0x34] sm:$0xf]
        %v826 = vld [vmem:[%s811 + $0x38] sm:$0xf]
        %v827 = vld [vmem:[%s811 + $0x3c] sm:$0xf]
        %v828 = vld [vmem:[%s811 + $0x40] sm:$0xf]
        %v829 = vld [vmem:[%s811 + $0x44] sm:$0xf]
        %v830 = vld [vmem:[%s811 + $0x48] sm:$0xf]
        %v831 = vld [vmem:[%s811 + $0x4c] sm:$0xf]
        %v832 = vld [vmem:[%s811 + $0x50] sm:$0xf]
        %v833 = vld [vmem:[%s811 + $0x54] sm:$0xf]
        %v834 = vld [vmem:[%s811 + $0x58] sm:$0xf]
        %v835 = vld [vmem:[%s811 + $0x5c] sm:$0xf]
        %v836 = vld [vmem:[%s811 + $0x60] sm:$0xf]
        %v837 = vld [vmem:[%s811 + $0x64] sm:$0xf]
        %v838 = vld [vmem:[%s811 + $0x68] sm:$0xf]
        %v839 = vld [vmem:[%s811 + $0x6c] sm:$0xf]
        %v840 = vld [vmem:[%s811 + $0x70] sm:$0xf]
        %v841 = vld [vmem:[%s811 + $0x74] sm:$0xf]
        %v842 = vld [vmem:[%s811 + $0x78] sm:$0xf]
        %v843 = vld [vmem:[%s811 + $0x7c] sm:$0xf]
        %v844 = vld [vmem:[%s811 + $0x80] sm:$0xf]
        %v845 = vld [vmem:[%s811 + $0x84] sm:$0xf]
        %v846 = vld [vmem:[%s811 + $0x88] sm:$0xf]
        %v847 = vld [vmem:[%s811 + $0x8c] sm:$0xf]
        %v848 = vld [vmem:[%s811 + $0x90] sm:$0xf]
        %v849 = vld [vmem:[%s811 + $0x94] sm:$0xf]
        %v850 = vld [vmem:[%s811 + $0x98] sm:$0xf]
        %v851 = vld [vmem:[%s811 + $0x9c] sm:$0xf]
        %v852 = vld [vmem:[%s811 + $0xa0] sm:$0xf]
        %v853 = vld [vmem:[%s811 + $0xa4] sm:$0xf]
        %v854 = vld [vmem:[%s811 + $0xa8] sm:$0xf]
        %v855 = vld [vmem:[%s811 + $0xac] sm:$0xf]
        %v856 = vld [vmem:[%s811 + $0xb0] sm:$0xf]
        %v857 = vld [vmem:[%s811 + $0xb4] sm:$0xf]
        %v858 = vld [vmem:[%s811 + $0xb8] sm:$0xf]
        %v859 = vld [vmem:[%s811 + $0xbc] sm:$0xf]
        %v908 = vunpack.c.l.b16 %v812
        %v909 = vunpack.c.l.b16 %v813
        %v910 = vunpack.c.l.b16 %v814
        %v911 = vunpack.c.l.b16 %v815
        %v912 = vunpack.c.l.b16 %v816
        %v913 = vunpack.c.l.b16 %v817
        %v914 = vunpack.c.l.b16 %v818
        %v915 = vunpack.c.l.b16 %v819
        %v916 = vunpack.c.l.b16 %v820
        %v917 = vunpack.c.l.b16 %v821
        %v918 = vunpack.c.l.b16 %v822
        %v919 = vunpack.c.l.b16 %v823
        %v920 = vunpack.c.l.b16 %v824
        %v921 = vunpack.c.l.b16 %v825
        %v922 = vunpack.c.l.b16 %v826
        %v923 = vunpack.c.l.b16 %v827
        %v924 = vunpack.c.l.b16 %v828
        %v925 = vunpack.c.l.b16 %v829
        %v926 = vunpack.c.l.b16 %v830
        %v927 = vunpack.c.l.b16 %v831
        %v928 = vunpack.c.l.b16 %v832
        %v929 = vunpack.c.l.b16 %v833
        %v930 = vunpack.c.l.b16 %v834
        %v931 = vunpack.c.l.b16 %v835
        %v932 = vunpack.c.l.b16 %v836
        %v933 = vunpack.c.l.b16 %v837
        %v934 = vunpack.c.l.b16 %v838
        %v935 = vunpack.c.l.b16 %v839
        %v936 = vunpack.c.l.b16 %v840
        %v937 = vunpack.c.l.b16 %v841
        %v938 = vunpack.c.l.b16 %v842
        %v939 = vunpack.c.l.b16 %v843
        %v940 = vunpack.c.l.b16 %v844
        %v941 = vunpack.c.l.b16 %v845
        %v942 = vunpack.c.l.b16 %v846
        %v943 = vunpack.c.l.b16 %v847
        %v944 = vunpack.c.l.b16 %v848
        %v945 = vunpack.c.l.b16 %v849
        %v946 = vunpack.c.l.b16 %v850
        %v947 = vunpack.c.l.b16 %v851
        %v948 = vunpack.c.l.b16 %v852
        %v949 = vunpack.c.l.b16 %v853
        %v950 = vunpack.c.l.b16 %v854
        %v951 = vunpack.c.l.b16 %v855
        %v952 = vunpack.c.l.b16 %v856
        %v953 = vunpack.c.l.b16 %v857
        %v954 = vunpack.c.l.b16 %v858
        %v955 = vunpack.c.l.b16 %v859
        %v956 = vpack.c.b16 %v909, %v908
        %v957 = vpack.c.b16 %v911, %v910
        %v958 = vpack.c.b16 %v913, %v912
        %v959 = vpack.c.b16 %v915, %v914
        %v960 = vpack.c.b16 %v917, %v916
        %v961 = vpack.c.b16 %v919, %v918
        %v962 = vpack.c.b16 %v921, %v920
        %v963 = vpack.c.b16 %v923, %v922
        %v964 = vpack.c.b16 %v925, %v924
        %v965 = vpack.c.b16 %v927, %v926
        %v966 = vpack.c.b16 %v929, %v928
        %v967 = vpack.c.b16 %v931, %v930
        %v968 = vpack.c.b16 %v933, %v932
        %v969 = vpack.c.b16 %v935, %v934
        %v970 = vpack.c.b16 %v937, %v936
        %v971 = vpack.c.b16 %v939, %v938
        %v972 = vpack.c.b16 %v941, %v940
        %v973 = vpack.c.b16 %v943, %v942
        %v974 = vpack.c.b16 %v945, %v944
        %v975 = vpack.c.b16 %v947, %v946
        %v976 = vpack.c.b16 %v949, %v948
        %v977 = vpack.c.b16 %v951, %v950
        %v978 = vpack.c.b16 %v953, %v952
        %v979 = vpack.c.b16 %v955, %v954
        %1004 = vmatprep.subr.bf16.mxu0 0
        %1005 = vmatpush1.bf16.msra.mxu0 %v956
        %1006 = vmatprep.subr.bf16.mxu0 0
        %1007 = vmatpush1.bf16.msra.mxu0 %v957
        %1008 = vmatprep.subr.bf16.mxu0 0
        %1009 = vmatpush1.bf16.msra.mxu0 %v958
        %1010 = vmatprep.subr.bf16.mxu0 0
        %1011 = vmatpush1.bf16.msra.mxu0 %v959
        %1012 = vmatprep.subr.bf16.mxu0 0
        %1013 = vmatpush1.bf16.msra.mxu0 %v960
        %1014 = vmatprep.subr.bf16.mxu0 0
        %1015 = vmatpush1.bf16.msra.mxu0 %v961
        %1016 = vmatprep.subr.bf16.mxu0 0
        %1017 = vmatpush1.bf16.msra.mxu0 %v962
        %1018 = vmatprep.subr.bf16.mxu0 0
        %1019 = vmatpush1.bf16.msra.mxu0 %v963
        %1020 = vmatprep.subr.bf16.mxu0 0
        %1021 = vmatpush1.bf16.msra.mxu0 %v964
        %1022 = vmatprep.subr.bf16.mxu0 0
        %1023 = vmatpush1.bf16.msra.mxu0 %v965
        %1024 = vmatprep.subr.bf16.mxu0 0
        %1025 = vmatpush1.bf16.msra.mxu0 %v966
        %1026 = vmatprep.subr.bf16.mxu0 0
        %1027 = vmatpush1.bf16.msra.mxu0 %v967
        %1028 = vmatprep.subr.bf16.mxu0 0
        %1029 = vmatpush1.bf16.msra.mxu0 %v968
        %1030 = vmatprep.subr.bf16.mxu0 0
        %1031 = vmatpush1.bf16.msra.mxu0 %v969
        %1032 = vmatprep.subr.bf16.mxu0 0
        %1033 = vmatpush1.bf16.msra.mxu0 %v970
        %1034 = vmatprep.subr.bf16.mxu0 0
        %1035 = vmatpush1.bf16.msra.mxu0 %v971
        %1036 = vmatprep.mubr.bf16.mxu0 %v479
        %1037 = vmatmul.mubr.bf16.gmra.mrb[0].mxu0 %v366
        %v1038 = vpop.f32.mrb[0].mxu0
        %v1039 = vadd.f32 0.0, %v1038
        %v1040 = vpop.f32.mrb[0].mxu0
        %v1041 = vpop.f32.mrb[0].mxu0
        %v1042 = vadd.f32 0.0, %v1041
        %v1043 = vpop.f32.mrb[0].mxu0
        %1044 = vmatprep.mubr.bf16.mxu0 %v491
        %1045 = vmatmul.mubr.bf16.gmra.mrb[0].mxu0 %v367
        %v1046 = vpop.f32.mrb[0].mxu0
        %v1047 = vadd.f32 0.0, %v1046
        %v1048 = vpop.f32.mrb[0].mxu0
        %v1049 = vpop.f32.mrb[0].mxu0
        %v1050 = vadd.f32 0.0, %v1049
        %v1051 = vpop.f32.mrb[0].mxu0
        %1052 = vmatprep.mubr.bf16.mxu0 %v503
        %1053 = vmatmul.mubr.bf16.gmra.mrb[0].mxu0 %v368
        %v1054 = vpop.f32.mrb[0].mxu0
        %v1055 = vadd.f32 0.0, %v1054
        %v1056 = vpop.f32.mrb[0].mxu0
        %v1057 = vpop.f32.mrb[0].mxu0
        %v1058 = vadd.f32 0.0, %v1057
        %v1059 = vpop.f32.mrb[0].mxu0
        %1060 = vmatprep.mubr.bf16.mxu0 %v515
        %1061 = vmatmul.mubr.bf16.gmra.mrb[0].mxu0 %v369
        %v1062 = vpop.f32.mrb[0].mxu0
        %v1063 = vadd.f32 0.0, %v1062
        %v1064 = vpop.f32.mrb[0].mxu0
        %v1065 = vpop.f32.mrb[0].mxu0
        %v1066 = vadd.f32 0.0, %v1065
        %v1067 = vpop.f32.mrb[0].mxu0
        %1068 = vmatprep.mubr.bf16.mxu0 %v527
        %1069 = vmatmul.mubr.bf16.gmra.mrb[0].mxu0 %v370
        %v1070 = vpop.f32.mrb[0].mxu0
        %v1071 = vadd.f32 0.0, %v1070
        %v1072 = vpop.f32.mrb[0].mxu0
        %v1073 = vpop.f32.mrb[0].mxu0
        %v1074 = vadd.f32 0.0, %v1073
        %v1075 = vpop.f32.mrb[0].mxu0
        %1076 = vmatprep.mubr.bf16.mxu0 %v539
        %1077 = vmatmul.mubr.bf16.gmra.mrb[0].mxu0 %v371
        %v1078 = vpop.f32.mrb[0].mxu0
        %v1079 = vadd.f32 0.0, %v1078
        %v1080 = vpop.f32.mrb[0].mxu0
        %v1081 = vpop.f32.mrb[0].mxu0
        %v1082 = vadd.f32 0.0, %v1081
        %v1083 = vpop.f32.mrb[0].mxu0
        %1084 = vmatprep.mubr.bf16.mxu0 %v551
        %1085 = vmatmul.mubr.bf16.gmra.mrb[0].mxu0 %v372
        %v1086 = vpop.f32.mrb[0].mxu0
        %v1087 = vadd.f32 0.0, %v1086
        %v1088 = vpop.f32.mrb[0].mxu0
        %v1089 = vpop.f32.mrb[0].mxu0
        %v1090 = vadd.f32 0.0, %v1089
        %v1091 = vpop.f32.mrb[0].mxu0
        %1092 = vmatprep.mubr.bf16.mxu0 %v563
        %1093 = vmatmul.mubr.bf16.gmra.mrb[0].mxu0 %v373
        %v1094 = vpop.f32.mrb[0].mxu0
        %v1095 = vadd.f32 0.0, %v1094
        %v1096 = vpop.f32.mrb[0].mxu0
        %v1097 = vpop.f32.mrb[0].mxu0
        %v1098 = vadd.f32 0.0, %v1097
        %v1099 = vpop.f32.mrb[0].mxu0
        %1100 = vmatprep.mubr.bf16.mxu0 %v575
        %1101 = vmatmul.mubr.bf16.gmra.mrb[0].mxu0 %v374
        %v1102 = vpop.f32.mrb[0].mxu0
        %v1103 = vadd.f32 0.0, %v1102
        %v1104 = vpop.f32.mrb[0].mxu0
        %v1105 = vpop.f32.mrb[0].mxu0
        %v1106 = vadd.f32 0.0, %v1105
        %v1107 = vpop.f32.mrb[0].mxu0
        %1108 = vmatprep.mubr.bf16.mxu0 %v587
        %1109 = vmatmul.mubr.bf16.gmra.mrb[0].mxu0 %v375
        %v1110 = vpop.f32.mrb[0].mxu0
        %v1111 = vadd.f32 0.0, %v1110
        %v1112 = vpop.f32.mrb[0].mxu0
        %v1113 = vpop.f32.mrb[0].mxu0
        %v1114 = vadd.f32 0.0, %v1113
        %v1115 = vpop.f32.mrb[0].mxu0
        %1116 = vmatprep.mubr.bf16.mxu0 %v599
        %1117 = vmatmul.mubr.bf16.gmra.mrb[0].mxu0 %v376
        %v1118 = vpop.f32.mrb[0].mxu0
        %v1119 = vadd.f32 0.0, %v1118
        %v1120 = vpop.f32.mrb[0].mxu0
        %v1121 = vpop.f32.mrb[0].mxu0
        %v1122 = vadd.f32 0.0, %v1121
        %v1123 = vpop.f32.mrb[0].mxu0
        %1124 = vmatprep.mubr.bf16.mxu0 %v611
        %1125 = vmatmul.mubr.bf16.gmra.mrb[0].mxu0 %v377
        %v1126 = vpop.f32.mrb[0].mxu0
        %v1127 = vadd.f32 0.0, %v1126
        %v1128 = vpop.f32.mrb[0].mxu0
        %v1129 = vpop.f32.mrb[0].mxu0
        %v1130 = vadd.f32 0.0, %v1129
        %v1131 = vpop.f32.mrb[0].mxu0
        %1132 = vmatprep.mubr.bf16.mxu0 %v623
        %1133 = vmatmul.mubr.bf16.gmra.mrb[0].mxu0 %v378
        %v1134 = vpop.f32.mrb[0].mxu0
        %v1135 = vadd.f32 0.0, %v1134
        %v1136 = vpop.f32.mrb[0].mxu0
        %v1137 = vpop.f32.mrb[0].mxu0
        %v1138 = vadd.f32 0.0, %v1137
        %v1139 = vpop.f32.mrb[0].mxu0
        %1140 = vmatprep.mubr.bf16.mxu0 %v635
        %1141 = vmatmul.mubr.bf16.gmra.mrb[0].mxu0 %v379
        %v1142 = vpop.f32.mrb[0].mxu0
        %v1143 = vadd.f32 0.0, %v1142
        %v1144 = vpop.f32.mrb[0].mxu0
        %v1145 = vpop.f32.mrb[0].mxu0
        %v1146 = vadd.f32 0.0, %v1145
        %v1147 = vpop.f32.mrb[0].mxu0
        %1148 = vmatprep.mubr.bf16.mxu0 %v647
        %1149 = vmatmul.mubr.bf16.gmra.mrb[0].mxu0 %v380
        %v1150 = vpop.f32.mrb[0].mxu0
        %v1151 = vadd.f32 0.0, %v1150
        %v1152 = vpop.f32.mrb[0].mxu0
        %v1153 = vpop.f32.mrb[0].mxu0
        %v1154 = vadd.f32 0.0, %v1153
        %v1155 = vpop.f32.mrb[0].mxu0
        %1156 = vmatprep.mubr.bf16.mxu0 %v659
        %1157 = vmatmul.mubr.bf16.gmra.mrb[0].mxu0 %v381
        %v1158 = vpop.f32.mrb[0].mxu0
        %v1159 = vadd.f32 0.0, %v1158
        %v1160 = vpop.f32.mrb[0].mxu0
        %v1161 = vpop.f32.mrb[0].mxu0
        %v1162 = vadd.f32 0.0, %v1161
        %v1163 = vpop.f32.mrb[0].mxu0
        %1164 = vdwg.mxu0
        %1165 = vmatprep.subr.bf16.mxu0 0
        %1166 = vmatpush1.bf16.msra.mxu0 %v972
        %1167 = vmatprep.subr.bf16.mxu0 0
        %1168 = vmatpush1.bf16.msra.mxu0 %v973
        %1169 = vmatprep.subr.bf16.mxu0 0
        %1170 = vmatpush1.bf16.msra.mxu0 %v974
        %1171 = vmatprep.subr.bf16.mxu0 0
        %1172 = vmatpush1.bf16.msra.mxu0 %v975
        %1173 = vmatprep.subr.bf16.mxu0 0
        %1174 = vmatpush1.bf16.msra.mxu0 %v976
        %1175 = vmatprep.subr.bf16.mxu0 0
        %1176 = vmatpush1.bf16.msra.mxu0 %v977
        %1177 = vmatprep.subr.bf16.mxu0 0
        %1178 = vmatpush1.bf16.msra.mxu0 %v978
        %1179 = vmatprep.subr.bf16.mxu0 0
        %1180 = vmatpush1.bf16.msra.mxu0 %v979
        %1181 = vmatprep.subr.bf16.mxu0 0
        %1182 = vmatpush1.bf16.msra.mxu0 0
        %1183 = vmatprep.subr.bf16.mxu0 0
        %1184 = vmatpush1.bf16.msra.mxu0 0
        %1185 = vmatprep.subr.bf16.mxu0 0
        %1186 = vmatpush1.bf16.msra.mxu0 0
        %1187 = vmatprep.subr.bf16.mxu0 0
        %1188 = vmatpush1.bf16.msra.mxu0 0
        %1189 = vmatprep.subr.bf16.mxu0 0
        %1190 = vmatpush1.bf16.msra.mxu0 0
        %1191 = vmatprep.subr.bf16.mxu0 0
        %1192 = vmatpush1.bf16.msra.mxu0 0
        %1193 = vmatprep.subr.bf16.mxu0 0
        %1194 = vmatpush1.bf16.msra.mxu0 0
        %1195 = vmatprep.subr.bf16.mxu0 0
        %1196 = vmatpush1.bf16.msra.mxu0 0
        %1197 = vmatprep.mubr.bf16.mxu0 0
        %1198 = vmatmul.mubr.bf16.gmra.mrb[0].mxu0 %v696
        %v1199 = vpop.f32.mrb[0].mxu0
        %v1200 = vadd.f32 %v1039, %v1199
        %v1201 = vpop.f32.mrb[0].mxu0
        %v1202 = vpop.f32.mrb[0].mxu0
        %v1203 = vadd.f32 %v1042, %v1202
        %v1204 = vpop.f32.mrb[0].mxu0
        %1205 = vmatprep.mubr.bf16.mxu0 0
        %1206 = vmatmul.mubr.bf16.gmra.mrb[0].mxu0 %v699
        %v1207 = vpop.f32.mrb[0].mxu0
        %v1208 = vadd.f32 %v1047, %v1207
        %v1209 = vpop.f32.mrb[0].mxu0
        %v1210 = vpop.f32.mrb[0].mxu0
        %v1211 = vadd.f32 %v1050, %v1210
        %v1212 = vpop.f32.mrb[0].mxu0
        %1213 = vmatprep.mubr.bf16.mxu0 0
        %1214 = vmatmul.mubr.bf16.gmra.mrb[0].mxu0 %v702
        %v1215 = vpop.f32.mrb[0].mxu0
        %v1216 = vadd.f32 %v1055, %v1215
        %v1217 = vpop.f32.mrb[0].mxu0
        %v1218 = vpop.f32.mrb[0].mxu0
        %v1219 = vadd.f32 %v1058, %v1218
        %v1220 = vpop.f32.mrb[0].mxu0
        %1221 = vmatprep.mubr.bf16.mxu0 0
        %1222 = vmatmul.mubr.bf16.gmra.mrb[0].mxu0 %v705
        %v1223 = vpop.f32.mrb[0].mxu0
        %v1224 = vadd.f32 %v1063, %v1223
        %v1225 = vpop.f32.mrb[0].mxu0
        %v1226 = vpop.f32.mrb[0].mxu0
        %v1227 = vadd.f32 %v1066, %v1226
        %v1228 = vpop.f32.mrb[0].mxu0
        %1229 = vmatprep.mubr.bf16.mxu0 0
        %1230 = vmatmul.mubr.bf16.gmra.mrb[0].mxu0 %v708
        %v1231 = vpop.f32.mrb[0].mxu0
        %v1232 = vadd.f32 %v1071, %v1231
        %v1233 = vpop.f32.mrb[0].mxu0
        %v1234 = vpop.f32.mrb[0].mxu0
        %v1235 = vadd.f32 %v1074, %v1234
        %v1236 = vpop.f32.mrb[0].mxu0
        %1237 = vmatprep.mubr.bf16.mxu0 0
        %1238 = vmatmul.mubr.bf16.gmra.mrb[0].mxu0 %v711
        %v1239 = vpop.f32.mrb[0].mxu0
        %v1240 = vadd.f32 %v1079, %v1239
        %v1241 = vpop.f32.mrb[0].mxu0
        %v1242 = vpop.f32.mrb[0].mxu0
        %v1243 = vadd.f32 %v1082, %v1242
        %v1244 = vpop.f32.mrb[0].mxu0
        %1245 = vmatprep.mubr.bf16.mxu0 0
        %1246 = vmatmul.mubr.bf16.gmra.mrb[0].mxu0 %v714
        %v1247 = vpop.f32.mrb[0].mxu0
        %v1248 = vadd.f32 %v1087, %v1247
        %v1249 = vpop.f32.mrb[0].mxu0
        %v1250 = vpop.f32.mrb[0].mxu0
        %v1251 = vadd.f32 %v1090, %v1250
        %v1252 = vpop.f32.mrb[0].mxu0
        %1253 = vmatprep.mubr.bf16.mxu0 0
        %1254 = vmatmul.mubr.bf16.gmra.mrb[0].mxu0 %v717
        %v1255 = vpop.f32.mrb[0].mxu0
        %v1256 = vadd.f32 %v1095, %v1255
        %v1257 = vpop.f32.mrb[0].mxu0
        %v1258 = vpop.f32.mrb[0].mxu0
        %v1259 = vadd.f32 %v1098, %v1258
        %v1260 = vpop.f32.mrb[0].mxu0
        %1261 = vmatprep.mubr.bf16.mxu0 0
        %1262 = vmatmul.mubr.bf16.gmra.mrb[0].mxu0 %v720
        %v1263 = vpop.f32.mrb[0].mxu0
        %v1264 = vadd.f32 %v1103, %v1263
        %v1265 = vpop.f32.mrb[0].mxu0
        %v1266 = vpop.f32.mrb[0].mxu0
        %v1267 = vadd.f32 %v1106, %v1266
        %v1268 = vpop.f32.mrb[0].mxu0
        %1269 = vmatprep.mubr.bf16.mxu0 0
        %1270 = vmatmul.mubr.bf16.gmra.mrb[0].mxu0 %v723
        %v1271 = vpop.f32.mrb[0].mxu0
        %v1272 = vadd.f32 %v1111, %v1271
        %v1273 = vpop.f32.mrb[0].mxu0
        %v1274 = vpop.f32.mrb[0].mxu0
        %v1275 = vadd.f32 %v1114, %v1274
        %v1276 = vpop.f32.mrb[0].mxu0
        %1277 = vmatprep.mubr.bf16.mxu0 0
        %1278 = vmatmul.mubr.bf16.gmra.mrb[0].mxu0 %v726
        %v1279 = vpop.f32.mrb[0].mxu0
        %v1280 = vadd.f32 %v1119, %v1279
        %v1281 = vpop.f32.mrb[0].mxu0
        %v1282 = vpop.f32.mrb[0].mxu0
        %v1283 = vadd.f32 %v1122, %v1282
        %v1284 = vpop.f32.mrb[0].mxu0
        %1285 = vmatprep.mubr.bf16.mxu0 0
        %1286 = vmatmul.mubr.bf16.gmra.mrb[0].mxu0 %v729
        %v1287 = vpop.f32.mrb[0].mxu0
        %v1288 = vadd.f32 %v1127, %v1287
        %v1289 = vpop.f32.mrb[0].mxu0
        %v1290 = vpop.f32.mrb[0].mxu0
        %v1291 = vadd.f32 %v1130, %v1290
        %v1292 = vpop.f32.mrb[0].mxu0
        %1293 = vmatprep.mubr.bf16.mxu0 0
        %1294 = vmatmul.mubr.bf16.gmra.mrb[0].mxu0 %v732
        %v1295 = vpop.f32.mrb[0].mxu0
        %v1296 = vadd.f32 %v1135, %v1295
        %v1297 = vpop.f32.mrb[0].mxu0
        %v1298 = vpop.f32.mrb[0].mxu0
        %v1299 = vadd.f32 %v1138, %v1298
        %v1300 = vpop.f32.mrb[0].mxu0
        %1301 = vmatprep.mubr.bf16.mxu0 0
        %1302 = vmatmul.mubr.bf16.gmra.mrb[0].mxu0 %v735
        %v1303 = vpop.f32.mrb[0].mxu0
        %v1304 = vadd.f32 %v1143, %v1303
        %v1305 = vpop.f32.mrb[0].mxu0
        %v1306 = vpop.f32.mrb[0].mxu0
        %v1307 = vadd.f32 %v1146, %v1306
        %v1308 = vpop.f32.mrb[0].mxu0
        %1309 = vmatprep.mubr.bf16.mxu0 0
        %1310 = vmatmul.mubr.bf16.gmra.mrb[0].mxu0 %v738
        %v1311 = vpop.f32.mrb[0].mxu0
        %v1312 = vadd.f32 %v1151, %v1311
        %v1313 = vpop.f32.mrb[0].mxu0
        %v1314 = vpop.f32.mrb[0].mxu0
        %v1315 = vadd.f32 %v1154, %v1314
        %v1316 = vpop.f32.mrb[0].mxu0
        %1317 = vmatprep.mubr.bf16.mxu0 0
        %1318 = vmatmul.mubr.bf16.gmra.mrb[0].mxu0 %v741
        %v1319 = vpop.f32.mrb[0].mxu0
        %v1320 = vadd.f32 %v1159, %v1319
        %v1321 = vpop.f32.mrb[0].mxu0
        %v1322 = vpop.f32.mrb[0].mxu0
        %v1323 = vadd.f32 %v1162, %v1322
        %v1324 = vpop.f32.mrb[0].mxu0
        %1325 = vdwg.mxu0
        %v1374 = vunpack.c.l.b16 %v763
        %v1375 = vunpack.c.l.b16 %v764
        %v1376 = vunpack.c.l.b16 %v765
        %v1377 = vunpack.c.l.b16 %v766
        %v1378 = vunpack.c.l.b16 %v767
        %v1379 = vunpack.c.l.b16 %v768
        %v1380 = vunpack.c.l.b16 %v769
        %v1381 = vunpack.c.l.b16 %v770
        %v1382 = vunpack.c.l.b16 %v771
        %v1383 = vunpack.c.l.b16 %v772
        %v1384 = vunpack.c.l.b16 %v773
        %v1385 = vunpack.c.l.b16 %v774
        %v1386 = vunpack.c.l.b16 %v775
        %v1387 = vunpack.c.l.b16 %v776
        %v1388 = vunpack.c.l.b16 %v777
        %v1389 = vunpack.c.l.b16 %v778
        %v1390 = vunpack.c.l.b16 %v779
        %v1391 = vunpack.c.l.b16 %v780
        %v1392 = vunpack.c.l.b16 %v781
        %v1393 = vunpack.c.l.b16 %v782
        %v1394 = vunpack.c.l.b16 %v783
        %v1395 = vunpack.c.l.b16 %v784
        %v1396 = vunpack.c.l.b16 %v785
        %v1397 = vunpack.c.l.b16 %v786
        %v1398 = vunpack.c.l.b16 %v787
        %v1399 = vunpack.c.l.b16 %v788
        %v1400 = vunpack.c.l.b16 %v789
        %v1401 = vunpack.c.l.b16 %v790
        %v1402 = vunpack.c.l.b16 %v791
        %v1403 = vunpack.c.l.b16 %v792
        %v1404 = vunpack.c.l.b16 %v793
        %v1405 = vunpack.c.l.b16 %v794
        %v1406 = vunpack.c.l.b16 %v795
        %v1407 = vunpack.c.l.b16 %v796
        %v1408 = vunpack.c.l.b16 %v797
        %v1409 = vunpack.c.l.b16 %v798
        %v1410 = vunpack.c.l.b16 %v799
        %v1411 = vunpack.c.l.b16 %v800
        %v1412 = vunpack.c.l.b16 %v801
        %v1413 = vunpack.c.l.b16 %v802
        %v1414 = vunpack.c.l.b16 %v803
        %v1415 = vunpack.c.l.b16 %v804
        %v1416 = vunpack.c.l.b16 %v805
        %v1417 = vunpack.c.l.b16 %v806
        %v1418 = vunpack.c.l.b16 %v807
        %v1419 = vunpack.c.l.b16 %v808
        %v1420 = vunpack.c.l.b16 %v809
        %v1421 = vunpack.c.l.b16 %v810
        %v1422 = vpack.c.b16 %v1375, %v1374
        %v1423 = vpack.c.b16 %v1377, %v1376
        %v1424 = vpack.c.b16 %v1379, %v1378
        %v1425 = vpack.c.b16 %v1381, %v1380
        %v1426 = vpack.c.b16 %v1383, %v1382
        %v1427 = vpack.c.b16 %v1385, %v1384
        %v1428 = vpack.c.b16 %v1387, %v1386
        %v1429 = vpack.c.b16 %v1389, %v1388
        %v1430 = vpack.c.b16 %v1391, %v1390
        %v1431 = vpack.c.b16 %v1393, %v1392
        %v1432 = vpack.c.b16 %v1395, %v1394
        %v1433 = vpack.c.b16 %v1397, %v1396
        %v1434 = vpack.c.b16 %v1399, %v1398
        %v1435 = vpack.c.b16 %v1401, %v1400
        %v1436 = vpack.c.b16 %v1403, %v1402
        %v1437 = vpack.c.b16 %v1405, %v1404
        %v1438 = vpack.c.b16 %v1407, %v1406
        %v1439 = vpack.c.b16 %v1409, %v1408
        %v1440 = vpack.c.b16 %v1411, %v1410
        %v1441 = vpack.c.b16 %v1413, %v1412
        %v1442 = vpack.c.b16 %v1415, %v1414
        %v1443 = vpack.c.b16 %v1417, %v1416
        %v1444 = vpack.c.b16 %v1419, %v1418
        %v1445 = vpack.c.b16 %v1421, %v1420
        %1470 = vmatprep.subr.bf16.mxu0 0
        %1471 = vmatpush1.bf16.msra.mxu0 %v1422
        %1472 = vmatprep.subr.bf16.mxu0 0
        %1473 = vmatpush1.bf16.msra.mxu0 %v1423
        %1474 = vmatprep.subr.bf16.mxu0 0
        %1475 = vmatpush1.bf16.msra.mxu0 %v1424
        %1476 = vmatprep.subr.bf16.mxu0 0
        %1477 = vmatpush1.bf16.msra.mxu0 %v1425
        %1478 = vmatprep.subr.bf16.mxu0 0
        %1479 = vmatpush1.bf16.msra.mxu0 %v1426
        %1480 = vmatprep.subr.bf16.mxu0 0
        %1481 = vmatpush1.bf16.msra.mxu0 %v1427
        %1482 = vmatprep.subr.bf16.mxu0 0
        %1483 = vmatpush1.bf16.msra.mxu0 %v1428
        %1484 = vmatprep.subr.bf16.mxu0 0
        %1485 = vmatpush1.bf16.msra.mxu0 %v1429
        %1486 = vmatprep.subr.bf16.mxu0 0
        %1487 = vmatpush1.bf16.msra.mxu0 %v1430
        %1488 = vmatprep.subr.bf16.mxu0 0
        %1489 = vmatpush1.bf16.msra.mxu0 %v1431
        %1490 = vmatprep.subr.bf16.mxu0 0
        %1491 = vmatpush1.bf16.msra.mxu0 %v1432
        %1492 = vmatprep.subr.bf16.mxu0 0
        %1493 = vmatpush1.bf16.msra.mxu0 %v1433
        %1494 = vmatprep.subr.bf16.mxu0 0
        %1495 = vmatpush1.bf16.msra.mxu0 %v1434
        %1496 = vmatprep.subr.bf16.mxu0 0
        %1497 = vmatpush1.bf16.msra.mxu0 %v1435
        %1498 = vmatprep.subr.bf16.mxu0 0
        %1499 = vmatpush1.bf16.msra.mxu0 %v1436
        %1500 = vmatprep.subr.bf16.mxu0 0
        %1501 = vmatpush1.bf16.msra.mxu0 %v1437
        %1502 = vmatprep.mubr.bf16.mxu0 %v467
        %1503 = vmatmul.mubr.bf16.gmra.mrb[0].mxu0 %v365
        %v1504 = vpop.f32.mrb[0].mxu0
        %v1505 = vadd.f32 %v1200, %v1504
        %v1506 = vpop.f32.mrb[0].mxu0
        %v1507 = vpop.f32.mrb[0].mxu0
        %v1508 = vadd.f32 %v1203, %v1507
        %v1509 = vpop.f32.mrb[0].mxu0
        %1510 = vmatprep.mubr.bf16.mxu0 %v479
        %1511 = vmatmul.mubr.bf16.gmra.mrb[0].mxu0 %v366
        %v1512 = vpop.f32.mrb[0].mxu0
        %v1513 = vadd.f32 %v1208, %v1512
        %v1514 = vpop.f32.mrb[0].mxu0
        %v1515 = vpop.f32.mrb[0].mxu0
        %v1516 = vadd.f32 %v1211, %v1515
        %v1517 = vpop.f32.mrb[0].mxu0
        %1518 = vmatprep.mubr.bf16.mxu0 %v491
        %1519 = vmatmul.mubr.bf16.gmra.mrb[0].mxu0 %v367
        %v1520 = vpop.f32.mrb[0].mxu0
        %v1521 = vadd.f32 %v1216, %v1520
        %v1522 = vpop.f32.mrb[0].mxu0
        %v1523 = vpop.f32.mrb[0].mxu0
        %v1524 = vadd.f32 %v1219, %v1523
        %v1525 = vpop.f32.mrb[0].mxu0
        %1526 = vmatprep.mubr.bf16.mxu0 %v503
        %1527 = vmatmul.mubr.bf16.gmra.mrb[0].mxu0 %v368
        %v1528 = vpop.f32.mrb[0].mxu0
        %v1529 = vadd.f32 %v1224, %v1528
        %v1530 = vpop.f32.mrb[0].mxu0
        %v1531 = vpop.f32.mrb[0].mxu0
        %v1532 = vadd.f32 %v1227, %v1531
        %v1533 = vpop.f32.mrb[0].mxu0
        %1534 = vmatprep.mubr.bf16.mxu0 %v515
        %1535 = vmatmul.mubr.bf16.gmra.mrb[0].mxu0 %v369
        %v1536 = vpop.f32.mrb[0].mxu0
        %v1537 = vadd.f32 %v1232, %v1536
        %v1538 = vpop.f32.mrb[0].mxu0
        %v1539 = vpop.f32.mrb[0].mxu0
        %v1540 = vadd.f32 %v1235, %v1539
        %v1541 = vpop.f32.mrb[0].mxu0
        %1542 = vmatprep.mubr.bf16.mxu0 %v527
        %1543 = vmatmul.mubr.bf16.gmra.mrb[0].mxu0 %v370
        %v1544 = vpop.f32.mrb[0].mxu0
        %v1545 = vadd.f32 %v1240, %v1544
        %v1546 = vpop.f32.mrb[0].mxu0
        %v1547 = vpop.f32.mrb[0].mxu0
        %v1548 = vadd.f32 %v1243, %v1547
        %v1549 = vpop.f32.mrb[0].mxu0
        %1550 = vmatprep.mubr.bf16.mxu0 %v539
        %1551 = vmatmul.mubr.bf16.gmra.mrb[0].mxu0 %v371
        %v1552 = vpop.f32.mrb[0].mxu0
        %v1553 = vadd.f32 %v1248, %v1552
        %v1554 = vpop.f32.mrb[0].mxu0
        %v1555 = vpop.f32.mrb[0].mxu0
        %v1556 = vadd.f32 %v1251, %v1555
        %v1557 = vpop.f32.mrb[0].mxu0
        %1558 = vmatprep.mubr.bf16.mxu0 %v551
        %1559 = vmatmul.mubr.bf16.gmra.mrb[0].mxu0 %v372
        %v1560 = vpop.f32.mrb[0].mxu0
        %v1561 = vadd.f32 %v1256, %v1560
        %v1562 = vpop.f32.mrb[0].mxu0
        %v1563 = vpop.f32.mrb[0].mxu0
        %v1564 = vadd.f32 %v1259, %v1563
        %v1565 = vpop.f32.mrb[0].mxu0
        %1566 = vmatprep.mubr.bf16.mxu0 %v563
        %1567 = vmatmul.mubr.bf16.gmra.mrb[0].mxu0 %v373
        %v1568 = vpop.f32.mrb[0].mxu0
        %v1569 = vadd.f32 %v1264, %v1568
        %v1570 = vpop.f32.mrb[0].mxu0
        %v1571 = vpop.f32.mrb[0].mxu0
        %v1572 = vadd.f32 %v1267, %v1571
        %v1573 = vpop.f32.mrb[0].mxu0
        %1574 = vmatprep.mubr.bf16.mxu0 %v575
        %1575 = vmatmul.mubr.bf16.gmra.mrb[0].mxu0 %v374
        %v1576 = vpop.f32.mrb[0].mxu0
        %v1577 = vadd.f32 %v1272, %v1576
        %v1578 = vpop.f32.mrb[0].mxu0
        %v1579 = vpop.f32.mrb[0].mxu0
        %v1580 = vadd.f32 %v1275, %v1579
        %v1581 = vpop.f32.mrb[0].mxu0
        %1582 = vmatprep.mubr.bf16.mxu0 %v587
        %1583 = vmatmul.mubr.bf16.gmra.mrb[0].mxu0 %v375
        %v1584 = vpop.f32.mrb[0].mxu0
        %v1585 = vadd.f32 %v1280, %v1584
        %v1586 = vpop.f32.mrb[0].mxu0
        %v1587 = vpop.f32.mrb[0].mxu0
        %v1588 = vadd.f32 %v1283, %v1587
        %v1589 = vpop.f32.mrb[0].mxu0
        %1590 = vmatprep.mubr.bf16.mxu0 %v599
        %1591 = vmatmul.mubr.bf16.gmra.mrb[0].mxu0 %v376
        %v1592 = vpop.f32.mrb[0].mxu0
        %v1593 = vadd.f32 %v1288, %v1592
        %v1594 = vpop.f32.mrb[0].mxu0
        %v1595 = vpop.f32.mrb[0].mxu0
        %v1596 = vadd.f32 %v1291, %v1595
        %v1597 = vpop.f32.mrb[0].mxu0
        %1598 = vmatprep.mubr.bf16.mxu0 %v611
        %1599 = vmatmul.mubr.bf16.gmra.mrb[0].mxu0 %v377
        %v1600 = vpop.f32.mrb[0].mxu0
        %v1601 = vadd.f32 %v1296, %v1600
        %v1602 = vpop.f32.mrb[0].mxu0
        %v1603 = vpop.f32.mrb[0].mxu0
        %v1604 = vadd.f32 %v1299, %v1603
        %v1605 = vpop.f32.mrb[0].mxu0
        %1606 = vmatprep.mubr.bf16.mxu0 %v623
        %1607 = vmatmul.mubr.bf16.gmra.mrb[0].mxu0 %v378
        %v1608 = vpop.f32.mrb[0].mxu0
        %v1609 = vadd.f32 %v1304, %v1608
        %v1610 = vpop.f32.mrb[0].mxu0
        %v1611 = vpop.f32.mrb[0].mxu0
        %v1612 = vadd.f32 %v1307, %v1611
        %v1613 = vpop.f32.mrb[0].mxu0
        %1614 = vmatprep.mubr.bf16.mxu0 %v635
        %1615 = vmatmul.mubr.bf16.gmra.mrb[0].mxu0 %v379
        %v1616 = vpop.f32.mrb[0].mxu0
        %v1617 = vadd.f32 %v1312, %v1616
        %v1618 = vpop.f32.mrb[0].mxu0
        %v1619 = vpop.f32.mrb[0].mxu0
        %v1620 = vadd.f32 %v1315, %v1619
        %v1621 = vpop.f32.mrb[0].mxu0
        %1622 = vmatprep.mubr.bf16.mxu0 %v647
        %1623 = vmatmul.mubr.bf16.gmra.mrb[0].mxu0 %v380
        %v1624 = vpop.f32.mrb[0].mxu0
        %v1625 = vadd.f32 %v1320, %v1624
        %v1626 = vpop.f32.mrb[0].mxu0
        %v1627 = vpop.f32.mrb[0].mxu0
        %v1628 = vadd.f32 %v1323, %v1627
        %v1629 = vpop.f32.mrb[0].mxu0
        %1630 = vdwg.mxu0
        %1631 = vmatprep.subr.bf16.mxu0 0
        %1632 = vmatpush1.bf16.msra.mxu0 %v1438
        %1633 = vmatprep.subr.bf16.mxu0 0
        %1634 = vmatpush1.bf16.msra.mxu0 %v1439
        %1635 = vmatprep.subr.bf16.mxu0 0
        %1636 = vmatpush1.bf16.msra.mxu0 %v1440
        %1637 = vmatprep.subr.bf16.mxu0 0
        %1638 = vmatpush1.bf16.msra.mxu0 %v1441
        %1639 = vmatprep.subr.bf16.mxu0 0
        %1640 = vmatpush1.bf16.msra.mxu0 %v1442
        %1641 = vmatprep.subr.bf16.mxu0 0
        %1642 = vmatpush1.bf16.msra.mxu0 %v1443
        %1643 = vmatprep.subr.bf16.mxu0 0
        %1644 = vmatpush1.bf16.msra.mxu0 %v1444
        %1645 = vmatprep.subr.bf16.mxu0 0
        %1646 = vmatpush1.bf16.msra.mxu0 %v1445
        %1647 = vmatprep.subr.bf16.mxu0 0
        %1648 = vmatpush1.bf16.msra.mxu0 0
        %1649 = vmatprep.subr.bf16.mxu0 0
        %1650 = vmatpush1.bf16.msra.mxu0 0
        %1651 = vmatprep.subr.bf16.mxu0 0
        %1652 = vmatpush1.bf16.msra.mxu0 0
        %1653 = vmatprep.subr.bf16.mxu0 0
        %1654 = vmatpush1.bf16.msra.mxu0 0
        %1655 = vmatprep.subr.bf16.mxu0 0
        %1656 = vmatpush1.bf16.msra.mxu0 0
        %1657 = vmatprep.subr.bf16.mxu0 0
        %1658 = vmatpush1.bf16.msra.mxu0 0
        %1659 = vmatprep.subr.bf16.mxu0 0
        %1660 = vmatpush1.bf16.msra.mxu0 0
        %1661 = vmatprep.subr.bf16.mxu0 0
        %1662 = vmatpush1.bf16.msra.mxu0 0
        %1663 = vmatprep.mubr.bf16.mxu0 0
        %1664 = vmatmul.mubr.bf16.gmra.mrb[0].mxu0 %v693
        %v1665 = vpop.f32.mrb[0].mxu0
        %v1666 = vadd.f32 %v1505, %v1665
        %v1667 = vpop.f32.mrb[0].mxu0
        %v1668 = vpop.f32.mrb[0].mxu0
        %v1669 = vadd.f32 %v1508, %v1668
        %v1670 = vpop.f32.mrb[0].mxu0
        %1671 = vmatprep.mubr.bf16.mxu0 0
        %1672 = vmatmul.mubr.bf16.gmra.mrb[0].mxu0 %v696
        %v1673 = vpop.f32.mrb[0].mxu0
        %v1674 = vadd.f32 %v1513, %v1673
        %v1675 = vpop.f32.mrb[0].mxu0
        %v1676 = vpop.f32.mrb[0].mxu0
        %v1677 = vadd.f32 %v1516, %v1676
        %v1678 = vpop.f32.mrb[0].mxu0
        %1679 = vmatprep.mubr.bf16.mxu0 0
        %1680 = vmatmul.mubr.bf16.gmra.mrb[0].mxu0 %v699
        %v1681 = vpop.f32.mrb[0].mxu0
        %v1682 = vadd.f32 %v1521, %v1681
        %v1683 = vpop.f32.mrb[0].mxu0
        %v1684 = vpop.f32.mrb[0].mxu0
        %v1685 = vadd.f32 %v1524, %v1684
        %v1686 = vpop.f32.mrb[0].mxu0
        %1687 = vmatprep.mubr.bf16.mxu0 0
        %1688 = vmatmul.mubr.bf16.gmra.mrb[0].mxu0 %v702
        %v1689 = vpop.f32.mrb[0].mxu0
        %v1690 = vadd.f32 %v1529, %v1689
        %v1691 = vpop.f32.mrb[0].mxu0
        %v1692 = vpop.f32.mrb[0].mxu0
        %v1693 = vadd.f32 %v1532, %v1692
        %v1694 = vpop.f32.mrb[0].mxu0
        %1695 = vmatprep.mubr.bf16.mxu0 0
        %1696 = vmatmul.mubr.bf16.gmra.mrb[0].mxu0 %v705
        %v1697 = vpop.f32.mrb[0].mxu0
        %v1698 = vadd.f32 %v1537, %v1697
        %v1699 = vpop.f32.mrb[0].mxu0
        %v1700 = vpop.f32.mrb[0].mxu0
        %v1701 = vadd.f32 %v1540, %v1700
        %v1702 = vpop.f32.mrb[0].mxu0
        %1703 = vmatprep.mubr.bf16.mxu0 0
        %1704 = vmatmul.mubr.bf16.gmra.mrb[0].mxu0 %v708
        %v1705 = vpop.f32.mrb[0].mxu0
        %v1706 = vadd.f32 %v1545, %v1705
        %v1707 = vpop.f32.mrb[0].mxu0
        %v1708 = vpop.f32.mrb[0].mxu0
        %v1709 = vadd.f32 %v1548, %v1708
        %v1710 = vpop.f32.mrb[0].mxu0
        %1711 = vmatprep.mubr.bf16.mxu0 0
        %1712 = vmatmul.mubr.bf16.gmra.mrb[0].mxu0 %v711
        %v1713 = vpop.f32.mrb[0].mxu0
        %v1714 = vadd.f32 %v1553, %v1713
        %v1715 = vpop.f32.mrb[0].mxu0
        %v1716 = vpop.f32.mrb[0].mxu0
        %v1717 = vadd.f32 %v1556, %v1716
        %v1718 = vpop.f32.mrb[0].mxu0
        %1719 = vmatprep.mubr.bf16.mxu0 0
        %1720 = vmatmul.mubr.bf16.gmra.mrb[0].mxu0 %v714
        %v1721 = vpop.f32.mrb[0].mxu0
        %v1722 = vadd.f32 %v1561, %v1721
        %v1723 = vpop.f32.mrb[0].mxu0
        %v1724 = vpop.f32.mrb[0].mxu0
        %v1725 = vadd.f32 %v1564, %v1724
        %v1726 = vpop.f32.mrb[0].mxu0
        %1727 = vmatprep.mubr.bf16.mxu0 0
        %1728 = vmatmul.mubr.bf16.gmra.mrb[0].mxu0 %v717
        %v1729 = vpop.f32.mrb[0].mxu0
        %v1730 = vadd.f32 %v1569, %v1729
        %v1731 = vpop.f32.mrb[0].mxu0
        %v1732 = vpop.f32.mrb[0].mxu0
        %v1733 = vadd.f32 %v1572, %v1732
        %v1734 = vpop.f32.mrb[0].mxu0
        %1735 = vmatprep.mubr.bf16.mxu0 0
        %1736 = vmatmul.mubr.bf16.gmra.mrb[0].mxu0 %v720
        %v1737 = vpop.f32.mrb[0].mxu0
        %v1738 = vadd.f32 %v1577, %v1737
        %v1739 = vpop.f32.mrb[0].mxu0
        %v1740 = vpop.f32.mrb[0].mxu0
        %v1741 = vadd.f32 %v1580, %v1740
        %v1742 = vpop.f32.mrb[0].mxu0
        %1743 = vmatprep.mubr.bf16.mxu0 0
        %1744 = vmatmul.mubr.bf16.gmra.mrb[0].mxu0 %v723
        %v1745 = vpop.f32.mrb[0].mxu0
        %v1746 = vadd.f32 %v1585, %v1745
        %v1747 = vpop.f32.mrb[0].mxu0
        %v1748 = vpop.f32.mrb[0].mxu0
        %v1749 = vadd.f32 %v1588, %v1748
        %v1750 = vpop.f32.mrb[0].mxu0
        %1751 = vmatprep.mubr.bf16.mxu0 0
        %1752 = vmatmul.mubr.bf16.gmra.mrb[0].mxu0 %v726
        %v1753 = vpop.f32.mrb[0].mxu0
        %v1754 = vadd.f32 %v1593, %v1753
        %v1755 = vpop.f32.mrb[0].mxu0
        %v1756 = vpop.f32.mrb[0].mxu0
        %v1757 = vadd.f32 %v1596, %v1756
        %v1758 = vpop.f32.mrb[0].mxu0
        %1759 = vmatprep.mubr.bf16.mxu0 0
        %1760 = vmatmul.mubr.bf16.gmra.mrb[0].mxu0 %v729
        %v1761 = vpop.f32.mrb[0].mxu0
        %v1762 = vadd.f32 %v1601, %v1761
        %v1763 = vpop.f32.mrb[0].mxu0
        %v1764 = vpop.f32.mrb[0].mxu0
        %v1765 = vadd.f32 %v1604, %v1764
        %v1766 = vpop.f32.mrb[0].mxu0
        %1767 = vmatprep.mubr.bf16.mxu0 0
        %1768 = vmatmul.mubr.bf16.gmra.mrb[0].mxu0 %v732
        %v1769 = vpop.f32.mrb[0].mxu0
        %v1770 = vadd.f32 %v1609, %v1769
        %v1771 = vpop.f32.mrb[0].mxu0
        %v1772 = vpop.f32.mrb[0].mxu0
        %v1773 = vadd.f32 %v1612, %v1772
        %v1774 = vpop.f32.mrb[0].mxu0
        %1775 = vmatprep.mubr.bf16.mxu0 0
        %1776 = vmatmul.mubr.bf16.gmra.mrb[0].mxu0 %v735
        %v1777 = vpop.f32.mrb[0].mxu0
        %v1778 = vadd.f32 %v1617, %v1777
        %v1779 = vpop.f32.mrb[0].mxu0
        %v1780 = vpop.f32.mrb[0].mxu0
        %v1781 = vadd.f32 %v1620, %v1780
        %v1782 = vpop.f32.mrb[0].mxu0
        %1783 = vmatprep.mubr.bf16.mxu0 0
        %1784 = vmatmul.mubr.bf16.gmra.mrb[0].mxu0 %v738
        %v1785 = vpop.f32.mrb[0].mxu0
        %v1786 = vadd.f32 %v1625, %v1785
        %v1787 = vpop.f32.mrb[0].mxu0
        %v1788 = vpop.f32.mrb[0].mxu0
        %v1789 = vadd.f32 %v1628, %v1788
        %v1790 = vpop.f32.mrb[0].mxu0
        %1791 = vdwg.mxu0
        %s1792 = scalar_lea.vmem %s1, 384
        %v1793 = vld [vmem:[%s1792] sm:$0xf]
        %v1794 = vld [vmem:[%s1792 + $0x4] sm:$0xf]
        %v1795 = vld [vmem:[%s1792 + $0x8] sm:$0xf]
        %v1796 = vld [vmem:[%s1792 + $0xc] sm:$0xf]
        %v1797 = vld [vmem:[%s1792 + $0x10] sm:$0xf]
        %v1798 = vld [vmem:[%s1792 + $0x14] sm:$0xf]
        %v1799 = vld [vmem:[%s1792 + $0x18] sm:$0xf]
        %v1800 = vld [vmem:[%s1792 + $0x1c] sm:$0xf]
        %v1801 = vld [vmem:[%s1792 + $0x20] sm:$0xf]
        %v1802 = vld [vmem:[%s1792 + $0x24] sm:$0xf]
        %v1803 = vld [vmem:[%s1792 + $0x28] sm:$0xf]
        %v1804 = vld [vmem:[%s1792 + $0x2c] sm:$0xf]
        %v1805 = vld [vmem:[%s1792 + $0x30] sm:$0xf]
        %v1806 = vld [vmem:[%s1792 + $0x34] sm:$0xf]
        %v1807 = vld [vmem:[%s1792 + $0x38] sm:$0xf]
        %v1808 = vld [vmem:[%s1792 + $0x3c] sm:$0xf]
        %v1809 = vld [vmem:[%s1792 + $0x40] sm:$0xf]
        %v1810 = vld [vmem:[%s1792 + $0x44] sm:$0xf]
        %v1811 = vld [vmem:[%s1792 + $0x48] sm:$0xf]
        %v1812 = vld [vmem:[%s1792 + $0x4c] sm:$0xf]
        %v1813 = vld [vmem:[%s1792 + $0x50] sm:$0xf]
        %v1814 = vld [vmem:[%s1792 + $0x54] sm:$0xf]
        %v1815 = vld [vmem:[%s1792 + $0x58] sm:$0xf]
        %v1816 = vld [vmem:[%s1792 + $0x5c] sm:$0xf]
        %v1817 = vld [vmem:[%s1792 + $0x60] sm:$0xf]
        %v1818 = vld [vmem:[%s1792 + $0x64] sm:$0xf]
        %v1819 = vld [vmem:[%s1792 + $0x68] sm:$0xf]
        %v1820 = vld [vmem:[%s1792 + $0x6c] sm:$0xf]
        %v1821 = vld [vmem:[%s1792 + $0x70] sm:$0xf]
        %v1822 = vld [vmem:[%s1792 + $0x74] sm:$0xf]
        %v1823 = vld [vmem:[%s1792 + $0x78] sm:$0xf]
        %v1824 = vld [vmem:[%s1792 + $0x7c] sm:$0xf]
        %v1825 = vld [vmem:[%s1792 + $0x80] sm:$0xf]
        %v1826 = vld [vmem:[%s1792 + $0x84] sm:$0xf]
        %v1827 = vld [vmem:[%s1792 + $0x88] sm:$0xf]
        %v1828 = vld [vmem:[%s1792 + $0x8c] sm:$0xf]
        %v1829 = vld [vmem:[%s1792 + $0x90] sm:$0xf]
        %v1830 = vld [vmem:[%s1792 + $0x94] sm:$0xf]
        %v1831 = vld [vmem:[%s1792 + $0x98] sm:$0xf]
        %v1832 = vld [vmem:[%s1792 + $0x9c] sm:$0xf]
        %v1833 = vld [vmem:[%s1792 + $0xa0] sm:$0xf]
        %v1834 = vld [vmem:[%s1792 + $0xa4] sm:$0xf]
        %v1835 = vld [vmem:[%s1792 + $0xa8] sm:$0xf]
        %v1836 = vld [vmem:[%s1792 + $0xac] sm:$0xf]
        %v1837 = vld [vmem:[%s1792 + $0xb0] sm:$0xf]
        %v1838 = vld [vmem:[%s1792 + $0xb4] sm:$0xf]
        %v1839 = vld [vmem:[%s1792 + $0xb8] sm:$0xf]
        %v1840 = vld [vmem:[%s1792 + $0xbc] sm:$0xf]
        %v1889 = vunpack.c.l.b16 %v1793
        %v1890 = vunpack.c.l.b16 %v1794
        %v1891 = vunpack.c.l.b16 %v1795
        %v1892 = vunpack.c.l.b16 %v1796
        %v1893 = vunpack.c.l.b16 %v1797
        %v1894 = vunpack.c.l.b16 %v1798
        %v1895 = vunpack.c.l.b16 %v1799
        %v1896 = vunpack.c.l.b16 %v1800
        %v1897 = vunpack.c.l.b16 %v1801
        %v1898 = vunpack.c.l.b16 %v1802
        %v1899 = vunpack.c.l.b16 %v1803
        %v1900 = vunpack.c.l.b16 %v1804
        %v1901 = vunpack.c.l.b16 %v1805
        %v1902 = vunpack.c.l.b16 %v1806
        %v1903 = vunpack.c.l.b16 %v1807
        %v1904 = vunpack.c.l.b16 %v1808
        %v1905 = vunpack.c.l.b16 %v1809
        %v1906 = vunpack.c.l.b16 %v1810
        %v1907 = vunpack.c.l.b16 %v1811
        %v1908 = vunpack.c.l.b16 %v1812
        %v1909 = vunpack.c.l.b16 %v1813
        %v1910 = vunpack.c.l.b16 %v1814
        %v1911 = vunpack.c.l.b16 %v1815
        %v1912 = vunpack.c.l.b16 %v1816
        %v1913 = vunpack.c.l.b16 %v1817
        %v1914 = vunpack.c.l.b16 %v1818
        %v1915 = vunpack.c.l.b16 %v1819
        %v1916 = vunpack.c.l.b16 %v1820
        %v1917 = vunpack.c.l.b16 %v1821
        %v1918 = vunpack.c.l.b16 %v1822
        %v1919 = vunpack.c.l.b16 %v1823
        %v1920 = vunpack.c.l.b16 %v1824
        %v1921 = vunpack.c.l.b16 %v1825
        %v1922 = vunpack.c.l.b16 %v1826
        %v1923 = vunpack.c.l.b16 %v1827
        %v1924 = vunpack.c.l.b16 %v1828
        %v1925 = vunpack.c.l.b16 %v1829
        %v1926 = vunpack.c.l.b16 %v1830
        %v1927 = vunpack.c.l.b16 %v1831
        %v1928 = vunpack.c.l.b16 %v1832
        %v1929 = vunpack.c.l.b16 %v1833
        %v1930 = vunpack.c.l.b16 %v1834
        %v1931 = vunpack.c.l.b16 %v1835
        %v1932 = vunpack.c.l.b16 %v1836
        %v1933 = vunpack.c.l.b16 %v1837
        %v1934 = vunpack.c.l.b16 %v1838
        %v1935 = vunpack.c.l.b16 %v1839
        %v1936 = vunpack.c.l.b16 %v1840
        %v1937 = vpack.c.b16 %v1890, %v1889
        %v1938 = vpack.c.b16 %v1892, %v1891
        %v1939 = vpack.c.b16 %v1894, %v1893
        %v1940 = vpack.c.b16 %v1896, %v1895
        %v1941 = vpack.c.b16 %v1898, %v1897
        %v1942 = vpack.c.b16 %v1900, %v1899
        %v1943 = vpack.c.b16 %v1902, %v1901
        %v1944 = vpack.c.b16 %v1904, %v1903
        %v1945 = vpack.c.b16 %v1906, %v1905
        %v1946 = vpack.c.b16 %v1908, %v1907
        %v1947 = vpack.c.b16 %v1910, %v1909
        %v1948 = vpack.c.b16 %v1912, %v1911
        %v1949 = vpack.c.b16 %v1914, %v1913
        %v1950 = vpack.c.b16 %v1916, %v1915
        %v1951 = vpack.c.b16 %v1918, %v1917
        %v1952 = vpack.c.b16 %v1920, %v1919
        %v1953 = vpack.c.b16 %v1922, %v1921
        %v1954 = vpack.c.b16 %v1924, %v1923
        %v1955 = vpack.c.b16 %v1926, %v1925
        %v1956 = vpack.c.b16 %v1928, %v1927
        %v1957 = vpack.c.b16 %v1930, %v1929
        %v1958 = vpack.c.b16 %v1932, %v1931
        %v1959 = vpack.c.b16 %v1934, %v1933
        %v1960 = vpack.c.b16 %v1936, %v1935
        %1985 = vmatprep.subr.bf16.mxu0 0
        %1986 = vmatpush1.bf16.msra.mxu0 %v1937
        %1987 = vmatprep.subr.bf16.mxu0 0
        %1988 = vmatpush1.bf16.msra.mxu0 %v1938
        %1989 = vmatprep.subr.bf16.mxu0 0
        %1990 = vmatpush1.bf16.msra.mxu0 %v1939
        %1991 = vmatprep.subr.bf16.mxu0 0
        %1992 = vmatpush1.bf16.msra.mxu0 %v1940
        %1993 = vmatprep.subr.bf16.mxu0 0
        %1994 = vmatpush1.bf16.msra.mxu0 %v1941
        %1995 = vmatprep.subr.bf16.mxu0 0
        %1996 = vmatpush1.bf16.msra.mxu0 %v1942
        %1997 = vmatprep.subr.bf16.mxu0 0
        %1998 = vmatpush1.bf16.msra.mxu0 %v1943
        %1999 = vmatprep.subr.bf16.mxu0 0
        %2000 = vmatpush1.bf16.msra.mxu0 %v1944
        %2001 = vmatprep.subr.bf16.mxu0 0
        %2002 = vmatpush1.bf16.msra.mxu0 %v1945
        %2003 = vmatprep.subr.bf16.mxu0 0
        %2004 = vmatpush1.bf16.msra.mxu0 %v1946
        %2005 = vmatprep.subr.bf16.mxu0 0
        %2006 = vmatpush1.bf16.msra.mxu0 %v1947
        %2007 = vmatprep.subr.bf16.mxu0 0
        %2008 = vmatpush1.bf16.msra.mxu0 %v1948
        %2009 = vmatprep.subr.bf16.mxu0 0
        %2010 = vmatpush1.bf16.msra.mxu0 %v1949
        %2011 = vmatprep.subr.bf16.mxu0 0
        %2012 = vmatpush1.bf16.msra.mxu0 %v1950
        %2013 = vmatprep.subr.bf16.mxu0 0
        %2014 = vmatpush1.bf16.msra.mxu0 %v1951
        %2015 = vmatprep.subr.bf16.mxu0 0
        %2016 = vmatpush1.bf16.msra.mxu0 %v1952
        %2017 = vmatprep.mubr.bf16.mxu0 %v491
        %2018 = vmatmul.mubr.bf16.gmra.mrb[0].mxu0 %v367
        %v2019 = vpop.f32.mrb[0].mxu0
        %v2020 = vadd.f32 0.0, %v2019
        %v2021 = vpop.f32.mrb[0].mxu0
        %v2022 = vpop.f32.mrb[0].mxu0
        %v2023 = vadd.f32 0.0, %v2022
        %v2024 = vpop.f32.mrb[0].mxu0
        %2025 = vmatprep.mubr.bf16.mxu0 %v503
        %2026 = vmatmul.mubr.bf16.gmra.mrb[0].mxu0 %v368
        %v2027 = vpop.f32.mrb[0].mxu0
        %v2028 = vadd.f32 0.0, %v2027
        %v2029 = vpop.f32.mrb[0].mxu0
        %v2030 = vpop.f32.mrb[0].mxu0
        %v2031 = vadd.f32 0.0, %v2030
        %v2032 = vpop.f32.mrb[0].mxu0
        %2033 = vmatprep.mubr.bf16.mxu0 %v515
        %2034 = vmatmul.mubr.bf16.gmra.mrb[0].mxu0 %v369
        %v2035 = vpop.f32.mrb[0].mxu0
        %v2036 = vadd.f32 0.0, %v2035
        %v2037 = vpop.f32.mrb[0].mxu0
        %v2038 = vpop.f32.mrb[0].mxu0
        %v2039 = vadd.f32 0.0, %v2038
        %v2040 = vpop.f32.mrb[0].mxu0
        %2041 = vmatprep.mubr.bf16.mxu0 %v527
        %2042 = vmatmul.mubr.bf16.gmra.mrb[0].mxu0 %v370
        %v2043 = vpop.f32.mrb[0].mxu0
        %v2044 = vadd.f32 0.0, %v2043
        %v2045 = vpop.f32.mrb[0].mxu0
        %v2046 = vpop.f32.mrb[0].mxu0
        %v2047 = vadd.f32 0.0, %v2046
        %v2048 = vpop.f32.mrb[0].mxu0
        %2049 = vmatprep.mubr.bf16.mxu0 %v539
        %2050 = vmatmul.mubr.bf16.gmra.mrb[0].mxu0 %v371
        %v2051 = vpop.f32.mrb[0].mxu0
        %v2052 = vadd.f32 0.0, %v2051
        %v2053 = vpop.f32.mrb[0].mxu0
        %v2054 = vpop.f32.mrb[0].mxu0
        %v2055 = vadd.f32 0.0, %v2054
        %v2056 = vpop.f32.mrb[0].mxu0
        %2057 = vmatprep.mubr.bf16.mxu0 %v551
        %2058 = vmatmul.mubr.bf16.gmra.mrb[0].mxu0 %v372
        %v2059 = vpop.f32.mrb[0].mxu0
        %v2060 = vadd.f32 0.0, %v2059
        %v2061 = vpop.f32.mrb[0].mxu0
        %v2062 = vpop.f32.mrb[0].mxu0
        %v2063 = vadd.f32 0.0, %v2062
        %v2064 = vpop.f32.mrb[0].mxu0
        %2065 = vmatprep.mubr.bf16.mxu0 %v563
        %2066 = vmatmul.mubr.bf16.gmra.mrb[0].mxu0 %v373
        %v2067 = vpop.f32.mrb[0].mxu0
        %v2068 = vadd.f32 0.0, %v2067
        %v2069 = vpop.f32.mrb[0].mxu0
        %v2070 = vpop.f32.mrb[0].mxu0
        %v2071 = vadd.f32 0.0, %v2070
        %v2072 = vpop.f32.mrb[0].mxu0
        %2073 = vmatprep.mubr.bf16.mxu0 %v575
        %2074 = vmatmul.mubr.bf16.gmra.mrb[0].mxu0 %v374
        %v2075 = vpop.f32.mrb[0].mxu0
        %v2076 = vadd.f32 0.0, %v2075
        %v2077 = vpop.f32.mrb[0].mxu0
        %v2078 = vpop.f32.mrb[0].mxu0
        %v2079 = vadd.f32 0.0, %v2078
        %v2080 = vpop.f32.mrb[0].mxu0
        %2081 = vmatprep.mubr.bf16.mxu0 %v587
        %2082 = vmatmul.mubr.bf16.gmra.mrb[0].mxu0 %v375
        %v2083 = vpop.f32.mrb[0].mxu0
        %v2084 = vadd.f32 0.0, %v2083
        %v2085 = vpop.f32.mrb[0].mxu0
        %v2086 = vpop.f32.mrb[0].mxu0
        %v2087 = vadd.f32 0.0, %v2086
        %v2088 = vpop.f32.mrb[0].mxu0
        %2089 = vmatprep.mubr.bf16.mxu0 %v599
        %2090 = vmatmul.mubr.bf16.gmra.mrb[0].mxu0 %v376
        %v2091 = vpop.f32.mrb[0].mxu0
        %v2092 = vadd.f32 0.0, %v2091
        %v2093 = vpop.f32.mrb[0].mxu0
        %v2094 = vpop.f32.mrb[0].mxu0
        %v2095 = vadd.f32 0.0, %v2094
        %v2096 = vpop.f32.mrb[0].mxu0
        %2097 = vmatprep.mubr.bf16.mxu0 %v611
        %2098 = vmatmul.mubr.bf16.gmra.mrb[0].mxu0 %v377
        %v2099 = vpop.f32.mrb[0].mxu0
        %v2100 = vadd.f32 0.0, %v2099
        %v2101 = vpop.f32.mrb[0].mxu0
        %v2102 = vpop.f32.mrb[0].mxu0
        %v2103 = vadd.f32 0.0, %v2102
        %v2104 = vpop.f32.mrb[0].mxu0
        %2105 = vmatprep.mubr.bf16.mxu0 %v623
        %2106 = vmatmul.mubr.bf16.gmra.mrb[0].mxu0 %v378
        %v2107 = vpop.f32.mrb[0].mxu0
        %v2108 = vadd.f32 0.0, %v2107
        %v2109 = vpop.f32.mrb[0].mxu0
        %v2110 = vpop.f32.mrb[0].mxu0
        %v2111 = vadd.f32 0.0, %v2110
        %v2112 = vpop.f32.mrb[0].mxu0
        %2113 = vmatprep.mubr.bf16.mxu0 %v635
        %2114 = vmatmul.mubr.bf16.gmra.mrb[0].mxu0 %v379
        %v2115 = vpop.f32.mrb[0].mxu0
        %v2116 = vadd.f32 0.0, %v2115
        %v2117 = vpop.f32.mrb[0].mxu0
        %v2118 = vpop.f32.mrb[0].mxu0
        %v2119 = vadd.f32 0.0, %v2118
        %v2120 = vpop.f32.mrb[0].mxu0
        %2121 = vmatprep.mubr.bf16.mxu0 %v647
        %2122 = vmatmul.mubr.bf16.gmra.mrb[0].mxu0 %v380
        %v2123 = vpop.f32.mrb[0].mxu0
        %v2124 = vadd.f32 0.0, %v2123
        %v2125 = vpop.f32.mrb[0].mxu0
        %v2126 = vpop.f32.mrb[0].mxu0
        %v2127 = vadd.f32 0.0, %v2126
        %v2128 = vpop.f32.mrb[0].mxu0
        %2129 = vmatprep.mubr.bf16.mxu0 %v659
        %2130 = vmatmul.mubr.bf16.gmra.mrb[0].mxu0 %v381
        %v2131 = vpop.f32.mrb[0].mxu0
        %v2132 = vadd.f32 0.0, %v2131
        %v2133 = vpop.f32.mrb[0].mxu0
        %v2134 = vpop.f32.mrb[0].mxu0
        %v2135 = vadd.f32 0.0, %v2134
        %v2136 = vpop.f32.mrb[0].mxu0
        %2137 = vmatprep.mubr.bf16.mxu0 %v671
        %2138 = vmatmul.mubr.bf16.gmra.mrb[0].mxu0 %v382
        %v2139 = vpop.f32.mrb[0].mxu0
        %v2140 = vadd.f32 0.0, %v2139
        %v2141 = vpop.f32.mrb[0].mxu0
        %v2142 = vpop.f32.mrb[0].mxu0
        %v2143 = vadd.f32 0.0, %v2142
        %v2144 = vpop.f32.mrb[0].mxu0
        %2145 = vdwg.mxu0
        %2146 = vmatprep.subr.bf16.mxu0 0
        %2147 = vmatpush1.bf16.msra.mxu0 %v1953
        %2148 = vmatprep.subr.bf16.mxu0 0
        %2149 = vmatpush1.bf16.msra.mxu0 %v1954
        %2150 = vmatprep.subr.bf16.mxu0 0
        %2151 = vmatpush1.bf16.msra.mxu0 %v1955
        %2152 = vmatprep.subr.bf16.mxu0 0
        %2153 = vmatpush1.bf16.msra.mxu0 %v1956
        %2154 = vmatprep.subr.bf16.mxu0 0
        %2155 = vmatpush1.bf16.msra.mxu0 %v1957
        %2156 = vmatprep.subr.bf16.mxu0 0
        %2157 = vmatpush1.bf16.msra.mxu0 %v1958
        %2158 = vmatprep.subr.bf16.mxu0 0
        %2159 = vmatpush1.bf16.msra.mxu0 %v1959
        %2160 = vmatprep.subr.bf16.mxu0 0
        %2161 = vmatpush1.bf16.msra.mxu0 %v1960
        %2162 = vmatprep.subr.bf16.mxu0 0
        %2163 = vmatpush1.bf16.msra.mxu0 0
        %2164 = vmatprep.subr.bf16.mxu0 0
        %2165 = vmatpush1.bf16.msra.mxu0 0
        %2166 = vmatprep.subr.bf16.mxu0 0
        %2167 = vmatpush1.bf16.msra.mxu0 0
        %2168 = vmatprep.subr.bf16.mxu0 0
        %2169 = vmatpush1.bf16.msra.mxu0 0
        %2170 = vmatprep.subr.bf16.mxu0 0
        %2171 = vmatpush1.bf16.msra.mxu0 0
        %2172 = vmatprep.subr.bf16.mxu0 0
        %2173 = vmatpush1.bf16.msra.mxu0 0
        %2174 = vmatprep.subr.bf16.mxu0 0
        %2175 = vmatpush1.bf16.msra.mxu0 0
        %2176 = vmatprep.subr.bf16.mxu0 0
        %2177 = vmatpush1.bf16.msra.mxu0 0
        %2178 = vmatprep.mubr.bf16.mxu0 0
        %2179 = vmatmul.mubr.bf16.gmra.mrb[0].mxu0 %v699
        %v2180 = vpop.f32.mrb[0].mxu0
        %v2181 = vadd.f32 %v2020, %v2180
        %v2182 = vpop.f32.mrb[0].mxu0
        %v2183 = vpop.f32.mrb[0].mxu0
        %v2184 = vadd.f32 %v2023, %v2183
        %v2185 = vpop.f32.mrb[0].mxu0
        %2186 = vmatprep.mubr.bf16.mxu0 0
        %2187 = vmatmul.mubr.bf16.gmra.mrb[0].mxu0 %v702
        %v2188 = vpop.f32.mrb[0].mxu0
        %v2189 = vadd.f32 %v2028, %v2188
        %v2190 = vpop.f32.mrb[0].mxu0
        %v2191 = vpop.f32.mrb[0].mxu0
        %v2192 = vadd.f32 %v2031, %v2191
        %v2193 = vpop.f32.mrb[0].mxu0
        %2194 = vmatprep.mubr.bf16.mxu0 0
        %2195 = vmatmul.mubr.bf16.gmra.mrb[0].mxu0 %v705
        %v2196 = vpop.f32.mrb[0].mxu0
        %v2197 = vadd.f32 %v2036, %v2196
        %v2198 = vpop.f32.mrb[0].mxu0
        %v2199 = vpop.f32.mrb[0].mxu0
        %v2200 = vadd.f32 %v2039, %v2199
        %v2201 = vpop.f32.mrb[0].mxu0
        %2202 = vmatprep.mubr.bf16.mxu0 0
        %2203 = vmatmul.mubr.bf16.gmra.mrb[0].mxu0 %v708
        %v2204 = vpop.f32.mrb[0].mxu0
        %v2205 = vadd.f32 %v2044, %v2204
        %v2206 = vpop.f32.mrb[0].mxu0
        %v2207 = vpop.f32.mrb[0].mxu0
        %v2208 = vadd.f32 %v2047, %v2207
        %v2209 = vpop.f32.mrb[0].mxu0
        %2210 = vmatprep.mubr.bf16.mxu0 0
        %2211 = vmatmul.mubr.bf16.gmra.mrb[0].mxu0 %v711
        %v2212 = vpop.f32.mrb[0].mxu0
        %v2213 = vadd.f32 %v2052, %v2212
        %v2214 = vpop.f32.mrb[0].mxu0
        %v2215 = vpop.f32.mrb[0].mxu0
        %v2216 = vadd.f32 %v2055, %v2215
        %v2217 = vpop.f32.mrb[0].mxu0
        %2218 = vmatprep.mubr.bf16.mxu0 0
        %2219 = vmatmul.mubr.bf16.gmra.mrb[0].mxu0 %v714
        %v2220 = vpop.f32.mrb[0].mxu0
        %v2221 = vadd.f32 %v2060, %v2220
        %v2222 = vpop.f32.mrb[0].mxu0
        %v2223 = vpop.f32.mrb[0].mxu0
        %v2224 = vadd.f32 %v2063, %v2223
        %v2225 = vpop.f32.mrb[0].mxu0
        %2226 = vmatprep.mubr.bf16.mxu0 0
        %2227 = vmatmul.mubr.bf16.gmra.mrb[0].mxu0 %v717
        %v2228 = vpop.f32.mrb[0].mxu0
        %v2229 = vadd.f32 %v2068, %v2228
        %v2230 = vpop.f32.mrb[0].mxu0
        %v2231 = vpop.f32.mrb[0].mxu0
        %v2232 = vadd.f32 %v2071, %v2231
        %v2233 = vpop.f32.mrb[0].mxu0
        %2234 = vmatprep.mubr.bf16.mxu0 0
        %2235 = vmatmul.mubr.bf16.gmra.mrb[0].mxu0 %v720
        %v2236 = vpop.f32.mrb[0].mxu0
        %v2237 = vadd.f32 %v2076, %v2236
        %v2238 = vpop.f32.mrb[0].mxu0
        %v2239 = vpop.f32.mrb[0].mxu0
        %v2240 = vadd.f32 %v2079, %v2239
        %v2241 = vpop.f32.mrb[0].mxu0
        %2242 = vmatprep.mubr.bf16.mxu0 0
        %2243 = vmatmul.mubr.bf16.gmra.mrb[0].mxu0 %v723
        %v2244 = vpop.f32.mrb[0].mxu0
        %v2245 = vadd.f32 %v2084, %v2244
        %v2246 = vpop.f32.mrb[0].mxu0
        %v2247 = vpop.f32.mrb[0].mxu0
        %v2248 = vadd.f32 %v2087, %v2247
        %v2249 = vpop.f32.mrb[0].mxu0
        %2250 = vmatprep.mubr.bf16.mxu0 0
        %2251 = vmatmul.mubr.bf16.gmra.mrb[0].mxu0 %v726
        %v2252 = vpop.f32.mrb[0].mxu0
        %v2253 = vadd.f32 %v2092, %v2252
        %v2254 = vpop.f32.mrb[0].mxu0
        %v2255 = vpop.f32.mrb[0].mxu0
        %v2256 = vadd.f32 %v2095, %v2255
        %v2257 = vpop.f32.mrb[0].mxu0
        %2258 = vmatprep.mubr.bf16.mxu0 0
        %2259 = vmatmul.mubr.bf16.gmra.mrb[0].mxu0 %v729
        %v2260 = vpop.f32.mrb[0].mxu0
        %v2261 = vadd.f32 %v2100, %v2260
        %v2262 = vpop.f32.mrb[0].mxu0
        %v2263 = vpop.f32.mrb[0].mxu0
        %v2264 = vadd.f32 %v2103, %v2263
        %v2265 = vpop.f32.mrb[0].mxu0
        %2266 = vmatprep.mubr.bf16.mxu0 0
        %2267 = vmatmul.mubr.bf16.gmra.mrb[0].mxu0 %v732
        %v2268 = vpop.f32.mrb[0].mxu0
        %v2269 = vadd.f32 %v2108, %v2268
        %v2270 = vpop.f32.mrb[0].mxu0
        %v2271 = vpop.f32.mrb[0].mxu0
        %v2272 = vadd.f32 %v2111, %v2271
        %v2273 = vpop.f32.mrb[0].mxu0
        %2274 = vmatprep.mubr.bf16.mxu0 0
        %2275 = vmatmul.mubr.bf16.gmra.mrb[0].mxu0 %v735
        %v2276 = vpop.f32.mrb[0].mxu0
        %v2277 = vadd.f32 %v2116, %v2276
        %v2278 = vpop.f32.mrb[0].mxu0
        %v2279 = vpop.f32.mrb[0].mxu0
        %v2280 = vadd.f32 %v2119, %v2279
        %v2281 = vpop.f32.mrb[0].mxu0
        %2282 = vmatprep.mubr.bf16.mxu0 0
        %2283 = vmatmul.mubr.bf16.gmra.mrb[0].mxu0 %v738
        %v2284 = vpop.f32.mrb[0].mxu0
        %v2285 = vadd.f32 %v2124, %v2284
        %v2286 = vpop.f32.mrb[0].mxu0
        %v2287 = vpop.f32.mrb[0].mxu0
        %v2288 = vadd.f32 %v2127, %v2287
        %v2289 = vpop.f32.mrb[0].mxu0
        %2290 = vmatprep.mubr.bf16.mxu0 0
        %2291 = vmatmul.mubr.bf16.gmra.mrb[0].mxu0 %v741
        %v2292 = vpop.f32.mrb[0].mxu0
        %v2293 = vadd.f32 %v2132, %v2292
        %v2294 = vpop.f32.mrb[0].mxu0
        %v2295 = vpop.f32.mrb[0].mxu0
        %v2296 = vadd.f32 %v2135, %v2295
        %v2297 = vpop.f32.mrb[0].mxu0
        %2298 = vmatprep.mubr.bf16.mxu0 0
        %2299 = vmatmul.mubr.bf16.gmra.mrb[0].mxu0 %v744
        %v2300 = vpop.f32.mrb[0].mxu0
        %v2301 = vadd.f32 %v2140, %v2300
        %v2302 = vpop.f32.mrb[0].mxu0
        %v2303 = vpop.f32.mrb[0].mxu0
        %v2304 = vadd.f32 %v2143, %v2303
        %v2305 = vpop.f32.mrb[0].mxu0
        %2306 = vdwg.mxu0
        %v2307 = vadd.f32 %v1666, %v2181
        %v2308 = vadd.f32 %v1669, %v2184
        %v2309 = vadd.f32 %v1674, %v2189
        %v2310 = vadd.f32 %v1677, %v2192
        %v2311 = vadd.f32 %v1682, %v2197
        %v2312 = vadd.f32 %v1685, %v2200
        %v2313 = vadd.f32 %v1690, %v2205
        %v2314 = vadd.f32 %v1693, %v2208
        %v2315 = vadd.f32 %v1698, %v2213
        %v2316 = vadd.f32 %v1701, %v2216
        %v2317 = vadd.f32 %v1706, %v2221
        %v2318 = vadd.f32 %v1709, %v2224
        %v2319 = vadd.f32 %v1714, %v2229
        %v2320 = vadd.f32 %v1717, %v2232
        %v2321 = vadd.f32 %v1722, %v2237
        %v2322 = vadd.f32 %v1725, %v2240
        %v2323 = vadd.f32 %v1730, %v2245
        %v2324 = vadd.f32 %v1733, %v2248
        %v2325 = vadd.f32 %v1738, %v2253
        %v2326 = vadd.f32 %v1741, %v2256
        %v2327 = vadd.f32 %v1746, %v2261
        %v2328 = vadd.f32 %v1749, %v2264
        %v2329 = vadd.f32 %v1754, %v2269
        %v2330 = vadd.f32 %v1757, %v2272
        %v2331 = vadd.f32 %v1762, %v2277
        %v2332 = vadd.f32 %v1765, %v2280
        %v2333 = vadd.f32 %v1770, %v2285
        %v2334 = vadd.f32 %v1773, %v2288
        %v2335 = vadd.f32 %v1778, %v2293
        %v2336 = vadd.f32 %v1781, %v2296
        %v2337 = vadd.f32 %v1786, %v2301
        %v2338 = vadd.f32 %v1789, %v2304
        %v2339 = vld [vmem:[%s2] sm:$0x1]
        %v2341 = vlaneseq
        %v2342 = vshrl.u32 %v2341, 7
        %v2343 = vsub.s32 0, %v2342
        %v2344 = vrot.slane %v2339, %v2343
        %v2346 = vadd.f32 %v2307, %v2344
        %v2347 = vadd.f32 %v2308, %v2344
        %v2348 = vadd.f32 %v2309, %v2344
        %v2349 = vadd.f32 %v2310, %v2344
        %v2350 = vadd.f32 %v2311, %v2344
        %v2351 = vadd.f32 %v2312, %v2344
        %v2352 = vadd.f32 %v2313, %v2344
        %v2353 = vadd.f32 %v2314, %v2344
        %v2354 = vadd.f32 %v2315, %v2344
        %v2355 = vadd.f32 %v2316, %v2344
        %v2356 = vadd.f32 %v2317, %v2344
        %v2357 = vadd.f32 %v2318, %v2344
        %v2358 = vadd.f32 %v2319, %v2344
        %v2359 = vadd.f32 %v2320, %v2344
        %v2360 = vadd.f32 %v2321, %v2344
        %v2361 = vadd.f32 %v2322, %v2344
        %v2362 = vadd.f32 %v2323, %v2344
        %v2363 = vadd.f32 %v2324, %v2344
        %v2364 = vadd.f32 %v2325, %v2344
        %v2365 = vadd.f32 %v2326, %v2344
        %v2366 = vadd.f32 %v2327, %v2344
        %v2367 = vadd.f32 %v2328, %v2344
        %v2368 = vadd.f32 %v2329, %v2344
        %v2369 = vadd.f32 %v2330, %v2344
        %v2370 = vadd.f32 %v2331, %v2344
        %v2371 = vadd.f32 %v2332, %v2344
        %v2372 = vadd.f32 %v2333, %v2344
        %v2373 = vadd.f32 %v2334, %v2344
        %v2374 = vadd.f32 %v2335, %v2344
        %v2375 = vadd.f32 %v2336, %v2344
        %v2376 = vadd.f32 %v2337, %v2344
        %v2377 = vadd.f32 %v2338, %v2344
        %v2378 = vmax.f32 %v2346, 0.0
        %v2379 = vmax.f32 %v2347, 0.0
        %v2380 = vmax.f32 %v2348, 0.0
        %v2381 = vmax.f32 %v2349, 0.0
        %v2382 = vmax.f32 %v2350, 0.0
        %v2383 = vmax.f32 %v2351, 0.0
        %v2384 = vmax.f32 %v2352, 0.0
        %v2385 = vmax.f32 %v2353, 0.0
        %v2386 = vmax.f32 %v2354, 0.0
        %v2387 = vmax.f32 %v2355, 0.0
        %v2388 = vmax.f32 %v2356, 0.0
        %v2389 = vmax.f32 %v2357, 0.0
        %v2390 = vmax.f32 %v2358, 0.0
        %v2391 = vmax.f32 %v2359, 0.0
        %v2392 = vmax.f32 %v2360, 0.0
        %v2393 = vmax.f32 %v2361, 0.0
        %v2394 = vmax.f32 %v2362, 0.0
        %v2395 = vmax.f32 %v2363, 0.0
        %v2396 = vmax.f32 %v2364, 0.0
        %v2397 = vmax.f32 %v2365, 0.0
        %v2398 = vmax.f32 %v2366, 0.0
        %v2399 = vmax.f32 %v2367, 0.0
        %v2400 = vmax.f32 %v2368, 0.0
        %v2401 = vmax.f32 %v2369, 0.0
        %v2402 = vmax.f32 %v2370, 0.0
        %v2403 = vmax.f32 %v2371, 0.0
        %v2404 = vmax.f32 %v2372, 0.0
        %v2405 = vmax.f32 %v2373, 0.0
        %v2406 = vmax.f32 %v2374, 0.0
        %v2407 = vmax.f32 %v2375, 0.0
        %v2408 = vmax.f32 %v2376, 0.0
        %v2409 = vmax.f32 %v2377, 0.0
        %2410 = vst [vmem:[#allocation2] sm:$0xf] 0
        %2411 = vst [vmem:[#allocation2 + $0x4] sm:$0xf] 0
        %2412 = vst [vmem:[#allocation2 + $0x8] sm:$0x1] 0
        %s2413 = scalar_lea.vmem [#allocation2], 204
        %2414 = vst [vmem:[%s2413] sm:$0xf] 0
        %2415 = vst [vmem:[%s2413 + $0x4] sm:$0xf] 0
        %2416 = vst [vmem:[%s2413 + $0x8] sm:$0x1] 0
        %vm2417 = vcmask 1040384
        %vm2418 = vsmask.f32 256
        %vm2419 = vmand %vm2417, %vm2418
        %v2420 = vld [vmem:[#allocation2] sm:$0x1]
        %v2421 = vsel %vm2419, 0, %v2420
        %2422 = vst [vmem:[#allocation2] sm:$0x1] %v2421
        %v2423 = vld [vmem:[#allocation2 + $0xc] sm:$0x1]
        %v2424 = vsel %vm2419, 0, %v2423
        %2425 = vst [vmem:[#allocation2 + $0xc] sm:$0x1] %v2424
        %v2426 = vld [vmem:[#allocation2 + $0x18] sm:$0x1]
        %v2427 = vsel %vm2419, 0, %v2426
        %2428 = vst [vmem:[#allocation2 + $0x18] sm:$0x1] %v2427
        %v2429 = vld [vmem:[#allocation2 + $0x24] sm:$0x1]
        %v2430 = vsel %vm2419, 0, %v2429
        %2431 = vst [vmem:[#allocation2 + $0x24] sm:$0x1] %v2430
        %v2432 = vld [vmem:[#allocation2 + $0x30] sm:$0x1]
        %v2433 = vsel %vm2419, 0, %v2432
        %2434 = vst [vmem:[#allocation2 + $0x30] sm:$0x1] %v2433
        %v2435 = vld [vmem:[#allocation2 + $0x3c] sm:$0x1]
        %v2436 = vsel %vm2419, 0, %v2435
        %2437 = vst [vmem:[#allocation2 + $0x3c] sm:$0x1] %v2436
        %v2438 = vld [vmem:[#allocation2 + $0x48] sm:$0x1]
        %v2439 = vsel %vm2419, 0, %v2438
        %2440 = vst [vmem:[#allocation2 + $0x48] sm:$0x1] %v2439
        %v2441 = vld [vmem:[#allocation2 + $0x54] sm:$0x1]
        %v2442 = vsel %vm2419, 0, %v2441
        %2443 = vst [vmem:[#allocation2 + $0x54] sm:$0x1] %v2442
        %v2444 = vld [vmem:[#allocation2 + $0x60] sm:$0x1]
        %v2445 = vsel %vm2419, 0, %v2444
        %2446 = vst [vmem:[#allocation2 + $0x60] sm:$0x1] %v2445
        %v2447 = vld [vmem:[#allocation2 + $0x6c] sm:$0x1]
        %v2448 = vsel %vm2419, 0, %v2447
        %2449 = vst [vmem:[#allocation2 + $0x6c] sm:$0x1] %v2448
        %v2450 = vld [vmem:[#allocation2 + $0x78] sm:$0x1]
        %v2451 = vsel %vm2419, 0, %v2450
        %2452 = vst [vmem:[#allocation2 + $0x78] sm:$0x1] %v2451
        %v2453 = vld [vmem:[#allocation2 + $0x84] sm:$0x1]
        %v2454 = vsel %vm2419, 0, %v2453
        %2455 = vst [vmem:[#allocation2 + $0x84] sm:$0x1] %v2454
        %v2456 = vld [vmem:[#allocation2 + $0x90] sm:$0x1]
        %v2457 = vsel %vm2419, 0, %v2456
        %2458 = vst [vmem:[#allocation2 + $0x90] sm:$0x1] %v2457
        %v2459 = vld [vmem:[#allocation2 + $0x9c] sm:$0x1]
        %v2460 = vsel %vm2419, 0, %v2459
        %2461 = vst [vmem:[#allocation2 + $0x9c] sm:$0x1] %v2460
        %v2462 = vld [vmem:[#allocation2 + $0xa8] sm:$0x1]
        %v2463 = vsel %vm2419, 0, %v2462
        %2464 = vst [vmem:[#allocation2 + $0xa8] sm:$0x1] %v2463
        %v2465 = vld [vmem:[#allocation2 + $0xb4] sm:$0x1]
        %v2466 = vsel %vm2419, 0, %v2465
        %2467 = vst [vmem:[#allocation2 + $0xb4] sm:$0x1] %v2466
        %v2468 = vld [vmem:[#allocation2 + $0xc0] sm:$0x1]
        %v2469 = vsel %vm2419, 0, %v2468
        %2470 = vst [vmem:[#allocation2 + $0xc0] sm:$0x1] %v2469
        %v2471 = vld [vmem:[#allocation2 + $0xcc] sm:$0x1]
        %v2472 = vsel %vm2419, 0, %v2471
        %2473 = vst [vmem:[#allocation2 + $0xcc] sm:$0x1] %v2472
        %vm2474 = vsmask.f32 7938
        %vm2475 = vmand %vm2417, %vm2474
        %v2476 = vld [vmem:[#allocation2 + $0x8] sm:$0x1]
        %v2477 = vsel %vm2475, 0, %v2476
        %2478 = vst [vmem:[#allocation2 + $0x8] sm:$0x1] %v2477
        %v2479 = vld [vmem:[#allocation2 + $0x14] sm:$0x1]
        %v2480 = vsel %vm2475, 0, %v2479
        %2481 = vst [vmem:[#allocation2 + $0x14] sm:$0x1] %v2480
        %v2482 = vld [vmem:[#allocation2 + $0x20] sm:$0x1]
        %v2483 = vsel %vm2475, 0, %v2482
        %2484 = vst [vmem:[#allocation2 + $0x20] sm:$0x1] %v2483
        %v2485 = vld [vmem:[#allocation2 + $0x2c] sm:$0x1]
        %v2486 = vsel %vm2475, 0, %v2485
        %2487 = vst [vmem:[#allocation2 + $0x2c] sm:$0x1] %v2486
        %v2488 = vld [vmem:[#allocation2 + $0x38] sm:$0x1]
        %v2489 = vsel %vm2475, 0, %v2488
        %2490 = vst [vmem:[#allocation2 + $0x38] sm:$0x1] %v2489
        %v2491 = vld [vmem:[#allocation2 + $0x44] sm:$0x1]
        %v2492 = vsel %vm2475, 0, %v2491
        %2493 = vst [vmem:[#allocation2 + $0x44] sm:$0x1] %v2492
        %v2494 = vld [vmem:[#allocation2 + $0x50] sm:$0x1]
        %v2495 = vsel %vm2475, 0, %v2494
        %2496 = vst [vmem:[#allocation2 + $0x50] sm:$0x1] %v2495
        %v2497 = vld [vmem:[#allocation2 + $0x5c] sm:$0x1]
        %v2498 = vsel %vm2475, 0, %v2497
        %2499 = vst [vmem:[#allocation2 + $0x5c] sm:$0x1] %v2498
        %v2500 = vld [vmem:[#allocation2 + $0x68] sm:$0x1]
        %v2501 = vsel %vm2475, 0, %v2500
        %2502 = vst [vmem:[#allocation2 + $0x68] sm:$0x1] %v2501
        %v2503 = vld [vmem:[#allocation2 + $0x74] sm:$0x1]
        %v2504 = vsel %vm2475, 0, %v2503
        %2505 = vst [vmem:[#allocation2 + $0x74] sm:$0x1] %v2504
        %v2506 = vld [vmem:[#allocation2 + $0x80] sm:$0x1]
        %v2507 = vsel %vm2475, 0, %v2506
        %2508 = vst [vmem:[#allocation2 + $0x80] sm:$0x1] %v2507
        %v2509 = vld [vmem:[#allocation2 + $0x8c] sm:$0x1]
        %v2510 = vsel %vm2475, 0, %v2509
        %2511 = vst [vmem:[#allocation2 + $0x8c] sm:$0x1] %v2510
        %v2512 = vld [vmem:[#allocation2 + $0x98] sm:$0x1]
        %v2513 = vsel %vm2475, 0, %v2512
        %2514 = vst [vmem:[#allocation2 + $0x98] sm:$0x1] %v2513
        %v2515 = vld [vmem:[#allocation2 + $0xa4] sm:$0x1]
        %v2516 = vsel %vm2475, 0, %v2515
        %2517 = vst [vmem:[#allocation2 + $0xa4] sm:$0x1] %v2516
        %v2518 = vld [vmem:[#allocation2 + $0xb0] sm:$0x1]
        %v2519 = vsel %vm2475, 0, %v2518
        %2520 = vst [vmem:[#allocation2 + $0xb0] sm:$0x1] %v2519
        %v2521 = vld [vmem:[#allocation2 + $0xbc] sm:$0x1]
        %v2522 = vsel %vm2475, 0, %v2521
        %2523 = vst [vmem:[#allocation2 + $0xbc] sm:$0x1] %v2522
        %v2524 = vld [vmem:[#allocation2 + $0xc8] sm:$0x1]
        %v2525 = vsel %vm2475, 0, %v2524
        %2526 = vst [vmem:[#allocation2 + $0xc8] sm:$0x1] %v2525
        %v2527 = vld [vmem:[#allocation2 + $0xd4] sm:$0x1]
        %v2528 = vsel %vm2475, 0, %v2527
        %2529 = vst [vmem:[#allocation2 + $0xd4] sm:$0x1] %v2528
        %v2530 = vpack.c.bf16 %v2379, %v2378
        %v2531 = vpack.c.bf16 %v2381, %v2380
        %v2532 = vpack.c.bf16 %v2383, %v2382
        %v2533 = vpack.c.bf16 %v2385, %v2384
        %v2534 = vpack.c.bf16 %v2387, %v2386
        %v2535 = vpack.c.bf16 %v2389, %v2388
        %v2536 = vpack.c.bf16 %v2391, %v2390
        %v2537 = vpack.c.bf16 %v2393, %v2392
        %v2538 = vpack.c.bf16 %v2395, %v2394
        %v2539 = vpack.c.bf16 %v2397, %v2396
        %v2540 = vpack.c.bf16 %v2399, %v2398
        %v2541 = vpack.c.bf16 %v2401, %v2400
        %v2542 = vpack.c.bf16 %v2403, %v2402
        %v2543 = vpack.c.bf16 %v2405, %v2404
        %v2544 = vpack.c.bf16 %v2407, %v2406
        %v2545 = vpack.c.bf16 %v2409, %v2408
        %v2562 = vunpack.c.l.b16 %v2530
        %v2563 = vunpack.c.h.b16 %v2530
        %v2564 = vunpack.c.l.b16 %v2531
        %v2565 = vunpack.c.h.b16 %v2531
        %v2566 = vunpack.c.l.b16 %v2532
        %v2567 = vunpack.c.h.b16 %v2532
        %v2568 = vunpack.c.l.b16 %v2533
        %v2569 = vunpack.c.h.b16 %v2533
        %v2570 = vunpack.c.l.b16 %v2534
        %v2571 = vunpack.c.h.b16 %v2534
        %v2572 = vunpack.c.l.b16 %v2535
        %v2573 = vunpack.c.h.b16 %v2535
        %v2574 = vunpack.c.l.b16 %v2536
        %v2575 = vunpack.c.h.b16 %v2536
        %v2576 = vunpack.c.l.b16 %v2537
        %v2577 = vunpack.c.h.b16 %v2537
        %v2578 = vunpack.c.l.b16 %v2538
        %v2579 = vunpack.c.h.b16 %v2538
        %v2580 = vunpack.c.l.b16 %v2539
        %v2581 = vunpack.c.h.b16 %v2539
        %v2582 = vunpack.c.l.b16 %v2540
        %v2583 = vunpack.c.h.b16 %v2540
        %v2584 = vunpack.c.l.b16 %v2541
        %v2585 = vunpack.c.h.b16 %v2541
        %v2586 = vunpack.c.l.b16 %v2542
        %v2587 = vunpack.c.h.b16 %v2542
        %v2588 = vunpack.c.l.b16 %v2543
        %v2589 = vunpack.c.h.b16 %v2543
        %v2590 = vunpack.c.l.b16 %v2544
        %v2591 = vunpack.c.h.b16 %v2544
        %v2592 = vunpack.c.l.b16 %v2545
        %v2593 = vunpack.c.h.b16 %v2545
        %v2594 = vpack.c.b16 %v2562, %v2562
        %v2595 = vpack.c.b16 %v2563, %v2563
        %v2596 = vpack.c.b16 %v2564, %v2564
        %v2597 = vpack.c.b16 %v2565, %v2565
        %v2598 = vpack.c.b16 %v2566, %v2566
        %v2599 = vpack.c.b16 %v2567, %v2567
        %v2600 = vpack.c.b16 %v2568, %v2568
        %v2601 = vpack.c.b16 %v2569, %v2569
        %v2602 = vpack.c.b16 %v2570, %v2570
        %v2603 = vpack.c.b16 %v2571, %v2571
        %v2604 = vpack.c.b16 %v2572, %v2572
        %v2605 = vpack.c.b16 %v2573, %v2573
        %v2606 = vpack.c.b16 %v2574, %v2574
        %v2607 = vpack.c.b16 %v2575, %v2575
        %v2608 = vpack.c.b16 %v2576, %v2576
        %v2609 = vpack.c.b16 %v2577, %v2577
        %v2610 = vpack.c.b16 %v2578, %v2578
        %v2611 = vpack.c.b16 %v2579, %v2579
        %v2612 = vpack.c.b16 %v2580, %v2580
        %v2613 = vpack.c.b16 %v2581, %v2581
        %v2614 = vpack.c.b16 %v2582, %v2582
        %v2615 = vpack.c.b16 %v2583, %v2583
        %v2616 = vpack.c.b16 %v2584, %v2584
        %v2617 = vpack.c.b16 %v2585, %v2585
        %v2618 = vpack.c.b16 %v2586, %v2586
        %v2619 = vpack.c.b16 %v2587, %v2587
        %v2620 = vpack.c.b16 %v2588, %v2588
        %v2621 = vpack.c.b16 %v2589, %v2589
        %v2622 = vpack.c.b16 %v2590, %v2590
        %v2623 = vpack.c.b16 %v2591, %v2591
        %v2624 = vpack.c.b16 %v2592, %v2592
        %v2625 = vpack.c.b16 %v2593, %v2593
        %vm2626 = vsmask.f32 4368
        %vm2627 = vmor %vm2418, %vm2626
        %v2629 = vshrl.u32 %v2594, 16
        %v2631 = vrot.slane %v2629, 7
        %v2632 = vshll.u32 %v2594, 16
        %v2634 = vor.u32 %v2631, %v2632
        %v2635 = vrot.slane %v2631, 4
        %v2637 = vshrl.u32 %v2595, 16
        %v2639 = vrot.slane %v2637, 7
        %v2640 = vshll.u32 %v2595, 16
        %v2642 = vor.u32 %v2639, %v2640
        %v2643 = vsel %vm2627, %v2635, %v2642
        %v2644 = vrot.slane %v2639, 4
        %v2646 = vshrl.u32 %v2596, 16
        %v2648 = vrot.slane %v2646, 7
        %v2649 = vshll.u32 %v2596, 16
        %v2651 = vor.u32 %v2648, %v2649
        %v2652 = vrot.slane %v2648, 4
        %v2654 = vshrl.u32 %v2597, 16
        %v2656 = vrot.slane %v2654, 7
        %v2657 = vshll.u32 %v2597, 16
        %v2659 = vor.u32 %v2656, %v2657
        %v2660 = vsel %vm2627, %v2652, %v2659
        %v2661 = vrot.slane %v2656, 4
        %v2663 = vshrl.u32 %v2598, 16
        %v2665 = vrot.slane %v2663, 7
        %v2666 = vshll.u32 %v2598, 16
        %v2668 = vor.u32 %v2665, %v2666
        %v2669 = vrot.slane %v2665, 4
        %v2671 = vshrl.u32 %v2599, 16
        %v2673 = vrot.slane %v2671, 7
        %v2674 = vshll.u32 %v2599, 16
        %v2676 = vor.u32 %v2673, %v2674
        %v2677 = vsel %vm2627, %v2669, %v2676
        %v2678 = vrot.slane %v2673, 4
        %v2680 = vshrl.u32 %v2600, 16
        %v2682 = vrot.slane %v2680, 7
        %v2683 = vshll.u32 %v2600, 16
        %v2685 = vor.u32 %v2682, %v2683
        %v2686 = vrot.slane %v2682, 4
        %v2688 = vshrl.u32 %v2601, 16
        %v2690 = vrot.slane %v2688, 7
        %v2691 = vshll.u32 %v2601, 16
        %v2693 = vor.u32 %v2690, %v2691
        %v2694 = vsel %vm2627, %v2686, %v2693
        %v2695 = vrot.slane %v2690, 4
        %v2697 = vshrl.u32 %v2602, 16
        %v2699 = vrot.slane %v2697, 7
        %v2700 = vshll.u32 %v2602, 16
        %v2702 = vor.u32 %v2699, %v2700
        %v2703 = vrot.slane %v2699, 4
        %v2705 = vshrl.u32 %v2603, 16
        %v2707 = vrot.slane %v2705, 7
        %v2708 = vshll.u32 %v2603, 16
        %v2710 = vor.u32 %v2707, %v2708
        %v2711 = vsel %vm2627, %v2703, %v2710
        %v2712 = vrot.slane %v2707, 4
        %v2714 = vshrl.u32 %v2604, 16
        %v2716 = vrot.slane %v2714, 7
        %v2717 = vshll.u32 %v2604, 16
        %v2719 = vor.u32 %v2716, %v2717
        %v2720 = vrot.slane %v2716, 4
        %v2722 = vshrl.u32 %v2605, 16
        %v2724 = vrot.slane %v2722, 7
        %v2725 = vshll.u32 %v2605, 16
        %v2727 = vor.u32 %v2724, %v2725
        %v2728 = vsel %vm2627, %v2720, %v2727
        %v2729 = vrot.slane %v2724, 4
        %v2731 = vshrl.u32 %v2606, 16
        %v2733 = vrot.slane %v2731, 7
        %v2734 = vshll.u32 %v2606, 16
        %v2736 = vor.u32 %v2733, %v2734
        %v2737 = vrot.slane %v2733, 4
        %v2739 = vshrl.u32 %v2607, 16
        %v2741 = vrot.slane %v2739, 7
        %v2742 = vshll.u32 %v2607, 16
        %v2744 = vor.u32 %v2741, %v2742
        %v2745 = vsel %vm2627, %v2737, %v2744
        %v2746 = vrot.slane %v2741, 4
        %v2748 = vshrl.u32 %v2608, 16
        %v2750 = vrot.slane %v2748, 7
        %v2751 = vshll.u32 %v2608, 16
        %v2753 = vor.u32 %v2750, %v2751
        %v2754 = vrot.slane %v2750, 4
        %v2756 = vshrl.u32 %v2609, 16
        %v2758 = vrot.slane %v2756, 7
        %v2759 = vshll.u32 %v2609, 16
        %v2761 = vor.u32 %v2758, %v2759
        %v2762 = vsel %vm2627, %v2754, %v2761
        %v2763 = vrot.slane %v2758, 4
        %v2765 = vshrl.u32 %v2610, 16
        %v2767 = vrot.slane %v2765, 7
        %v2768 = vshll.u32 %v2610, 16
        %v2770 = vor.u32 %v2767, %v2768
        %v2771 = vrot.slane %v2767, 4
        %v2773 = vshrl.u32 %v2611, 16
        %v2775 = vrot.slane %v2773, 7
        %v2776 = vshll.u32 %v2611, 16
        %v2778 = vor.u32 %v2775, %v2776
        %v2779 = vsel %vm2627, %v2771, %v2778
        %v2780 = vrot.slane %v2775, 4
        %v2782 = vshrl.u32 %v2612, 16
        %v2784 = vrot.slane %v2782, 7
        %v2785 = vshll.u32 %v2612, 16
        %v2787 = vor.u32 %v2784, %v2785
        %v2788 = vrot.slane %v2784, 4
        %v2790 = vshrl.u32 %v2613, 16
        %v2792 = vrot.slane %v2790, 7
        %v2793 = vshll.u32 %v2613, 16
        %v2795 = vor.u32 %v2792, %v2793
        %v2796 = vsel %vm2627, %v2788, %v2795
        %v2797 = vrot.slane %v2792, 4
        %v2799 = vshrl.u32 %v2614, 16
        %v2801 = vrot.slane %v2799, 7
        %v2802 = vshll.u32 %v2614, 16
        %v2804 = vor.u32 %v2801, %v2802
        %v2805 = vrot.slane %v2801, 4
        %v2807 = vshrl.u32 %v2615, 16
        %v2809 = vrot.slane %v2807, 7
        %v2810 = vshll.u32 %v2615, 16
        %v2812 = vor.u32 %v2809, %v2810
        %v2813 = vsel %vm2627, %v2805, %v2812
        %v2814 = vrot.slane %v2809, 4
        %v2816 = vshrl.u32 %v2616, 16
        %v2818 = vrot.slane %v2816, 7
        %v2819 = vshll.u32 %v2616, 16
        %v2821 = vor.u32 %v2818, %v2819
        %v2822 = vrot.slane %v2818, 4
        %v2824 = vshrl.u32 %v2617, 16
        %v2826 = vrot.slane %v2824, 7
        %v2827 = vshll.u32 %v2617, 16
        %v2829 = vor.u32 %v2826, %v2827
        %v2830 = vsel %vm2627, %v2822, %v2829
        %v2831 = vrot.slane %v2826, 4
        %v2833 = vshrl.u32 %v2618, 16
        %v2835 = vrot.slane %v2833, 7
        %v2836 = vshll.u32 %v2618, 16
        %v2838 = vor.u32 %v2835, %v2836
        %v2839 = vrot.slane %v2835, 4
        %v2841 = vshrl.u32 %v2619, 16
        %v2843 = vrot.slane %v2841, 7
        %v2844 = vshll.u32 %v2619, 16
        %v2846 = vor.u32 %v2843, %v2844
        %v2847 = vsel %vm2627, %v2839, %v2846
        %v2848 = vrot.slane %v2843, 4
        %v2850 = vshrl.u32 %v2620, 16
        %v2852 = vrot.slane %v2850, 7
        %v2853 = vshll.u32 %v2620, 16
        %v2855 = vor.u32 %v2852, %v2853
        %v2856 = vrot.slane %v2852, 4
        %v2858 = vshrl.u32 %v2621, 16
        %v2860 = vrot.slane %v2858, 7
        %v2861 = vshll.u32 %v2621, 16
        %v2863 = vor.u32 %v2860, %v2861
        %v2864 = vsel %vm2627, %v2856, %v2863
        %v2865 = vrot.slane %v2860, 4
        %v2867 = vshrl.u32 %v2622, 16
        %v2869 = vrot.slane %v2867, 7
        %v2870 = vshll.u32 %v2622, 16
        %v2872 = vor.u32 %v2869, %v2870
        %v2873 = vrot.slane %v2869, 4
        %v2875 = vshrl.u32 %v2623, 16
        %v2877 = vrot.slane %v2875, 7
        %v2878 = vshll.u32 %v2623, 16
        %v2880 = vor.u32 %v2877, %v2878
        %v2881 = vsel %vm2627, %v2873, %v2880
        %v2882 = vrot.slane %v2877, 4
        %v2884 = vshrl.u32 %v2624, 16
        %v2886 = vrot.slane %v2884, 7
        %v2887 = vshll.u32 %v2624, 16
        %v2889 = vor.u32 %v2886, %v2887
        %v2890 = vrot.slane %v2886, 4
        %v2892 = vshrl.u32 %v2625, 16
        %v2894 = vrot.slane %v2892, 7
        %v2895 = vshll.u32 %v2625, 16
        %v2897 = vor.u32 %v2894, %v2895
        %v2898 = vsel %vm2627, %v2890, %v2897
        %v2899 = vrot.slane %v2894, 4
        %s2948 = scalar_lea.vmem [#allocation2], 12
        %vm2949 = vcmask 1043456
        %vm2950 = vmand %vm2949, %vm2474
        %v2951 = vld [vmem:[%s2948] sm:$0xf]
        %v2952 = vsel %vm2950, %v2634, %v2951
        %2953 = vst [vmem:[%s2948] sm:$0xf] %v2952
        %2954 = vst [vmem:[%s2948 + $0x4] sm:$0xf] %v2643
        %v2955 = vld [vmem:[%s2948 + $0x8] sm:$0x1]
        %v2956 = vsel %vm2419, %v2644, %v2955
        %2957 = vst [vmem:[%s2948 + $0x8] sm:$0x1] %v2956
        %v2958 = vld [vmem:[%s2948 + $0xc] sm:$0xf]
        %v2959 = vsel %vm2950, %v2651, %v2958
        %2960 = vst [vmem:[%s2948 + $0xc] sm:$0xf] %v2959
        %2961 = vst [vmem:[%s2948 + $0x10] sm:$0xf] %v2660
        %v2962 = vld [vmem:[%s2948 + $0x14] sm:$0x1]
        %v2963 = vsel %vm2419, %v2661, %v2962
        %2964 = vst [vmem:[%s2948 + $0x14] sm:$0x1] %v2963
        %v2965 = vld [vmem:[%s2948 + $0x18] sm:$0xf]
        %v2966 = vsel %vm2950, %v2668, %v2965
        %2967 = vst [vmem:[%s2948 + $0x18] sm:$0xf] %v2966
        %2968 = vst [vmem:[%s2948 + $0x1c] sm:$0xf] %v2677
        %v2969 = vld [vmem:[%s2948 + $0x20] sm:$0x1]
        %v2970 = vsel %vm2419, %v2678, %v2969
        %2971 = vst [vmem:[%s2948 + $0x20] sm:$0x1] %v2970
        %v2972 = vld [vmem:[%s2948 + $0x24] sm:$0xf]
        %v2973 = vsel %vm2950, %v2685, %v2972
        %2974 = vst [vmem:[%s2948 + $0x24] sm:$0xf] %v2973
        %2975 = vst [vmem:[%s2948 + $0x28] sm:$0xf] %v2694
        %v2976 = vld [vmem:[%s2948 + $0x2c] sm:$0x1]
        %v2977 = vsel %vm2419, %v2695, %v2976
        %2978 = vst [vmem:[%s2948 + $0x2c] sm:$0x1] %v2977
        %v2979 = vld [vmem:[%s2948 + $0x30] sm:$0xf]
        %v2980 = vsel %vm2950, %v2702, %v2979
        %2981 = vst [vmem:[%s2948 + $0x30] sm:$0xf] %v2980
        %2982 = vst [vmem:[%s2948 + $0x34] sm:$0xf] %v2711
        %v2983 = vld [vmem:[%s2948 + $0x38] sm:$0x1]
        %v2984 = vsel %vm2419, %v2712, %v2983
        %2985 = vst [vmem:[%s2948 + $0x38] sm:$0x1] %v2984
        %v2986 = vld [vmem:[%s2948 + $0x3c] sm:$0xf]
        %v2987 = vsel %vm2950, %v2719, %v2986
        %2988 = vst [vmem:[%s2948 + $0x3c] sm:$0xf] %v2987
        %2989 = vst [vmem:[%s2948 + $0x40] sm:$0xf] %v2728
        %v2990 = vld [vmem:[%s2948 + $0x44] sm:$0x1]
        %v2991 = vsel %vm2419, %v2729, %v2990
        %2992 = vst [vmem:[%s2948 + $0x44] sm:$0x1] %v2991
        %v2993 = vld [vmem:[%s2948 + $0x48] sm:$0xf]
        %v2994 = vsel %vm2950, %v2736, %v2993
        %2995 = vst [vmem:[%s2948 + $0x48] sm:$0xf] %v2994
        %2996 = vst [vmem:[%s2948 + $0x4c] sm:$0xf] %v2745
        %v2997 = vld [vmem:[%s2948 + $0x50] sm:$0x1]
        %v2998 = vsel %vm2419, %v2746, %v2997
        %2999 = vst [vmem:[%s2948 + $0x50] sm:$0x1] %v2998
        %v3000 = vld [vmem:[%s2948 + $0x54] sm:$0xf]
        %v3001 = vsel %vm2950, %v2753, %v3000
        %3002 = vst [vmem:[%s2948 + $0x54] sm:$0xf] %v3001
        %3003 = vst [vmem:[%s2948 + $0x58] sm:$0xf] %v2762
        %v3004 = vld [vmem:[%s2948 + $0x5c] sm:$0x1]
        %v3005 = vsel %vm2419, %v2763, %v3004
        %3006 = vst [vmem:[%s2948 + $0x5c] sm:$0x1] %v3005
        %v3007 = vld [vmem:[%s2948 + $0x60] sm:$0xf]
        %v3008 = vsel %vm2950, %v2770, %v3007
        %3009 = vst [vmem:[%s2948 + $0x60] sm:$0xf] %v3008
        %3010 = vst [vmem:[%s2948 + $0x64] sm:$0xf] %v2779
        %v3011 = vld [vmem:[%s2948 + $0x68] sm:$0x1]
        %v3012 = vsel %vm2419, %v2780, %v3011
        %3013 = vst [vmem:[%s2948 + $0x68] sm:$0x1] %v3012
        %v3014 = vld [vmem:[%s2948 + $0x6c] sm:$0xf]
        %v3015 = vsel %vm2950, %v2787, %v3014
        %3016 = vst [vmem:[%s2948 + $0x6c] sm:$0xf] %v3015
        %3017 = vst [vmem:[%s2948 + $0x70] sm:$0xf] %v2796
        %v3018 = vld [vmem:[%s2948 + $0x74] sm:$0x1]
        %v3019 = vsel %vm2419, %v2797, %v3018
        %3020 = vst [vmem:[%s2948 + $0x74] sm:$0x1] %v3019
        %v3021 = vld [vmem:[%s2948 + $0x78] sm:$0xf]
        %v3022 = vsel %vm2950, %v2804, %v3021
        %3023 = vst [vmem:[%s2948 + $0x78] sm:$0xf] %v3022
        %3024 = vst [vmem:[%s2948 + $0x7c] sm:$0xf] %v2813
        %v3025 = vld [vmem:[%s2948 + $0x80] sm:$0x1]
        %v3026 = vsel %vm2419, %v2814, %v3025
        %3027 = vst [vmem:[%s2948 + $0x80] sm:$0x1] %v3026
        %v3028 = vld [vmem:[%s2948 + $0x84] sm:$0xf]
        %v3029 = vsel %vm2950, %v2821, %v3028
        %3030 = vst [vmem:[%s2948 + $0x84] sm:$0xf] %v3029
        %3031 = vst [vmem:[%s2948 + $0x88] sm:$0xf] %v2830
        %v3032 = vld [vmem:[%s2948 + $0x8c] sm:$0x1]
        %v3033 = vsel %vm2419, %v2831, %v3032
        %3034 = vst [vmem:[%s2948 + $0x8c] sm:$0x1] %v3033
        %v3035 = vld [vmem:[%s2948 + $0x90] sm:$0xf]
        %v3036 = vsel %vm2950, %v2838, %v3035
        %3037 = vst [vmem:[%s2948 + $0x90] sm:$0xf] %v3036
        %3038 = vst [vmem:[%s2948 + $0x94] sm:$0xf] %v2847
        %v3039 = vld [vmem:[%s2948 + $0x98] sm:$0x1]
        %v3040 = vsel %vm2419, %v2848, %v3039
        %3041 = vst [vmem:[%s2948 + $0x98] sm:$0x1] %v3040
        %v3042 = vld [vmem:[%s2948 + $0x9c] sm:$0xf]
        %v3043 = vsel %vm2950, %v2855, %v3042
        %3044 = vst [vmem:[%s2948 + $0x9c] sm:$0xf] %v3043
        %3045 = vst [vmem:[%s2948 + $0xa0] sm:$0xf] %v2864
        %v3046 = vld [vmem:[%s2948 + $0xa4] sm:$0x1]
        %v3047 = vsel %vm2419, %v2865, %v3046
        %3048 = vst [vmem:[%s2948 + $0xa4] sm:$0x1] %v3047
        %v3049 = vld [vmem:[%s2948 + $0xa8] sm:$0xf]
        %v3050 = vsel %vm2950, %v2872, %v3049
        %3051 = vst [vmem:[%s2948 + $0xa8] sm:$0xf] %v3050
        %3052 = vst [vmem:[%s2948 + $0xac] sm:$0xf] %v2881
        %v3053 = vld [vmem:[%s2948 + $0xb0] sm:$0x1]
        %v3054 = vsel %vm2419, %v2882, %v3053
        %3055 = vst [vmem:[%s2948 + $0xb0] sm:$0x1] %v3054
        %v3056 = vld [vmem:[%s2948 + $0xb4] sm:$0xf]
        %v3057 = vsel %vm2950, %v2889, %v3056
        %3058 = vst [vmem:[%s2948 + $0xb4] sm:$0xf] %v3057
        %3059 = vst [vmem:[%s2948 + $0xb8] sm:$0xf] %v2898
        %v3060 = vld [vmem:[%s2948 + $0xbc] sm:$0x1]
        %v3061 = vsel %vm2419, %v2899, %v3060
        %3062 = vst [vmem:[%s2948 + $0xbc] sm:$0x1] %v3061
        %v3063 = vld [vmem:[#allocation2] sm:$0xf]
        %v3064 = vld [vmem:[#allocation2 + $0x4] sm:$0xf]
        %v3065 = vld [vmem:[#allocation2 + $0x8] sm:$0x1]
        %v3066 = vld [vmem:[#allocation2 + $0xc] sm:$0xf]
        %v3067 = vld [vmem:[#allocation2 + $0x10] sm:$0xf]
        %v3068 = vld [vmem:[#allocation2 + $0x14] sm:$0x1]
        %v3069 = vld [vmem:[#allocation2 + $0x18] sm:$0xf]
        %v3070 = vld [vmem:[#allocation2 + $0x1c] sm:$0xf]
        %v3071 = vld [vmem:[#allocation2 + $0x20] sm:$0x1]
        %v3072 = vld [vmem:[#allocation2 + $0x24] sm:$0xf]
        %v3073 = vld [vmem:[#allocation2 + $0x28] sm:$0xf]
        %v3074 = vld [vmem:[#allocation2 + $0x2c] sm:$0x1]
        %v3075 = vld [vmem:[#allocation2 + $0x30] sm:$0xf]
        %v3076 = vld [vmem:[#allocation2 + $0x34] sm:$0xf]
        %v3077 = vld [vmem:[#allocation2 + $0x38] sm:$0x1]
        %v3078 = vld [vmem:[#allocation2 + $0x3c] sm:$0xf]
        %v3079 = vld [vmem:[#allocation2 + $0x40] sm:$0xf]
        %v3080 = vld [vmem:[#allocation2 + $0x44] sm:$0x1]
        %v3081 = vld [vmem:[#allocation2 + $0x48] sm:$0xf]
        %v3082 = vld [vmem:[#allocation2 + $0x4c] sm:$0xf]
        %v3083 = vld [vmem:[#allocation2 + $0x50] sm:$0x1]
        %v3084 = vld [vmem:[#allocation2 + $0x54] sm:$0xf]
        %v3085 = vld [vmem:[#allocation2 + $0x58] sm:$0xf]
        %v3086 = vld [vmem:[#allocation2 + $0x5c] sm:$0x1]
        %v3087 = vld [vmem:[#allocation2 + $0x60] sm:$0xf]
        %v3088 = vld [vmem:[#allocation2 + $0x64] sm:$0xf]
        %v3089 = vld [vmem:[#allocation2 + $0x68] sm:$0x1]
        %v3090 = vld [vmem:[#allocation2 + $0x6c] sm:$0xf]
        %v3091 = vld [vmem:[#allocation2 + $0x70] sm:$0xf]
        %v3092 = vld [vmem:[#allocation2 + $0x74] sm:$0x1]
        %v3093 = vld [vmem:[#allocation2 + $0x78] sm:$0xf]
        %v3094 = vld [vmem:[#allocation2 + $0x7c] sm:$0xf]
        %v3095 = vld [vmem:[#allocation2 + $0x80] sm:$0x1]
        %v3096 = vld [vmem:[#allocation2 + $0x84] sm:$0xf]
        %v3097 = vld [vmem:[#allocation2 + $0x88] sm:$0xf]
        %v3098 = vld [vmem:[#allocation2 + $0x8c] sm:$0x1]
        %v3099 = vld [vmem:[#allocation2 + $0x90] sm:$0xf]
        %v3100 = vld [vmem:[#allocation2 + $0x94] sm:$0xf]
        %v3101 = vld [vmem:[#allocation2 + $0x98] sm:$0x1]
        %v3102 = vld [vmem:[#allocation2 + $0x9c] sm:$0xf]
        %v3103 = vld [vmem:[#allocation2 + $0xa0] sm:$0xf]
        %v3104 = vld [vmem:[#allocation2 + $0xa4] sm:$0x1]
        %v3105 = vld [vmem:[#allocation2 + $0xa8] sm:$0xf]
        %v3106 = vld [vmem:[#allocation2 + $0xac] sm:$0xf]
        %v3107 = vld [vmem:[#allocation2 + $0xb0] sm:$0x1]
        %v3108 = vld [vmem:[#allocation2 + $0xb4] sm:$0xf]
        %v3109 = vld [vmem:[#allocation2 + $0xb8] sm:$0xf]
        %v3110 = vld [vmem:[#allocation2 + $0xbc] sm:$0x1]
        %v3111 = vld [vmem:[#allocation2 + $0xc0] sm:$0xf]
        %v3112 = vld [vmem:[#allocation2 + $0xc4] sm:$0xf]
        %v3113 = vld [vmem:[#allocation2 + $0xc8] sm:$0x1]
        %v3114 = vld [vmem:[#allocation2 + $0xcc] sm:$0xf]
        %v3115 = vld [vmem:[#allocation2 + $0xd0] sm:$0xf]
        %v3116 = vld [vmem:[#allocation2 + $0xd4] sm:$0x1]
        %v3153 = vunpack.c.l.b16 %v3063
        %v3154 = vunpack.c.l.b16 %v3064
        %v3155 = vunpack.c.l.b16 %v3066
        %v3156 = vunpack.c.l.b16 %v3067
        %v3157 = vunpack.c.l.b16 %v3069
        %v3158 = vunpack.c.l.b16 %v3070
        %v3159 = vunpack.c.l.b16 %v3072
        %v3160 = vunpack.c.l.b16 %v3073
        %v3161 = vunpack.c.l.b16 %v3075
        %v3162 = vunpack.c.l.b16 %v3076
        %v3163 = vunpack.c.l.b16 %v3078
        %v3164 = vunpack.c.l.b16 %v3079
        %v3165 = vunpack.c.l.b16 %v3081
        %v3166 = vunpack.c.l.b16 %v3082
        %v3167 = vunpack.c.l.b16 %v3084
        %v3168 = vunpack.c.l.b16 %v3085
        %v3169 = vunpack.c.l.b16 %v3087
        %v3170 = vunpack.c.l.b16 %v3088
        %v3171 = vunpack.c.l.b16 %v3090
        %v3172 = vunpack.c.l.b16 %v3091
        %v3173 = vunpack.c.l.b16 %v3093
        %v3174 = vunpack.c.l.b16 %v3094
        %v3175 = vunpack.c.l.b16 %v3096
        %v3176 = vunpack.c.l.b16 %v3097
        %v3177 = vunpack.c.l.b16 %v3099
        %v3178 = vunpack.c.l.b16 %v3100
        %v3179 = vunpack.c.l.b16 %v3102
        %v3180 = vunpack.c.l.b16 %v3103
        %v3181 = vunpack.c.l.b16 %v3105
        %v3182 = vunpack.c.l.b16 %v3106
        %v3183 = vunpack.c.l.b16 %v3108
        %v3184 = vunpack.c.l.b16 %v3109
        %v3185 = vunpack.c.l.b16 %v3111
        %v3186 = vunpack.c.l.b16 %v3112
        %v3187 = vunpack.c.l.b16 %v3114
        %v3188 = vunpack.c.l.b16 %v3115
        %v3189 = vpack.c.b16 %v3154, %v3153
        %v3190 = vpack.c.b16 %v3156, %v3155
        %v3191 = vpack.c.b16 %v3158, %v3157
        %v3192 = vpack.c.b16 %v3160, %v3159
        %v3193 = vpack.c.b16 %v3162, %v3161
        %v3194 = vpack.c.b16 %v3164, %v3163
        %v3195 = vpack.c.b16 %v3166, %v3165
        %v3196 = vpack.c.b16 %v3168, %v3167
        %v3197 = vpack.c.b16 %v3170, %v3169
        %v3198 = vpack.c.b16 %v3172, %v3171
        %v3199 = vpack.c.b16 %v3174, %v3173
        %v3200 = vpack.c.b16 %v3176, %v3175
        %v3201 = vpack.c.b16 %v3178, %v3177
        %v3202 = vpack.c.b16 %v3180, %v3179
        %v3203 = vpack.c.b16 %v3182, %v3181
        %v3204 = vpack.c.b16 %v3184, %v3183
        %v3205 = vpack.c.b16 %v3186, %v3185
        %v3206 = vpack.c.b16 %v3188, %v3187
        %v3243 = vunpack.c.l.b16 %v3065
        %v3244 = vunpack.c.l.b16 %v3068
        %v3245 = vunpack.c.l.b16 %v3071
        %v3246 = vunpack.c.l.b16 %v3074
        %v3247 = vunpack.c.l.b16 %v3077
        %v3248 = vunpack.c.l.b16 %v3080
        %v3249 = vunpack.c.l.b16 %v3083
        %v3250 = vunpack.c.l.b16 %v3086
        %v3251 = vunpack.c.l.b16 %v3089
        %v3252 = vunpack.c.l.b16 %v3092
        %v3253 = vunpack.c.l.b16 %v3095
        %v3254 = vunpack.c.l.b16 %v3098
        %v3255 = vunpack.c.l.b16 %v3101
        %v3256 = vunpack.c.l.b16 %v3104
        %v3257 = vunpack.c.l.b16 %v3107
        %v3258 = vunpack.c.l.b16 %v3110
        %v3259 = vunpack.c.l.b16 %v3113
        %v3260 = vunpack.c.l.b16 %v3116
        %v3261 = vpack.c.b16 %v3243, %v3243
        %v3262 = vpack.c.b16 %v3244, %v3244
        %v3263 = vpack.c.b16 %v3245, %v3245
        %v3264 = vpack.c.b16 %v3246, %v3246
        %v3265 = vpack.c.b16 %v3247, %v3247
        %v3266 = vpack.c.b16 %v3248, %v3248
        %v3267 = vpack.c.b16 %v3249, %v3249
        %v3268 = vpack.c.b16 %v3250, %v3250
        %v3269 = vpack.c.b16 %v3251, %v3251
        %v3270 = vpack.c.b16 %v3252, %v3252
        %v3271 = vpack.c.b16 %v3253, %v3253
        %v3272 = vpack.c.b16 %v3254, %v3254
        %v3273 = vpack.c.b16 %v3255, %v3255
        %v3274 = vpack.c.b16 %v3256, %v3256
        %v3275 = vpack.c.b16 %v3257, %v3257
        %v3276 = vpack.c.b16 %v3258, %v3258
        %v3277 = vpack.c.b16 %v3259, %v3259
        %v3278 = vpack.c.b16 %v3260, %v3260
        %v3280 = vshrl.u32 %v3189, 16
        %v3282 = vshll.u32 %v3189, 16
        %v3284 = vrot.slane %v3282, 1
        %v3285 = vor.u32 %v3280, %v3284
        %v3287 = vshll.u32 %v3261, 16
        %v3289 = vrot.slane %v3287, 1
        %v3290 = vsel %vm455, %v3285, %v3289
        %v3292 = vshrl.u32 %v3190, 16
        %v3294 = vshll.u32 %v3190, 16
        %v3296 = vrot.slane %v3294, 1
        %v3297 = vor.u32 %v3292, %v3296
        %v3299 = vshll.u32 %v3262, 16
        %v3301 = vrot.slane %v3299, 1
        %v3302 = vsel %vm455, %v3297, %v3301
        %v3304 = vshrl.u32 %v3191, 16
        %v3306 = vshll.u32 %v3191, 16
        %v3308 = vrot.slane %v3306, 1
        %v3309 = vor.u32 %v3304, %v3308
        %v3311 = vshll.u32 %v3263, 16
        %v3313 = vrot.slane %v3311, 1
        %v3314 = vsel %vm455, %v3309, %v3313
        %v3316 = vshrl.u32 %v3192, 16
        %v3318 = vshll.u32 %v3192, 16
        %v3320 = vrot.slane %v3318, 1
        %v3321 = vor.u32 %v3316, %v3320
        %v3323 = vshll.u32 %v3264, 16
        %v3325 = vrot.slane %v3323, 1
        %v3326 = vsel %vm455, %v3321, %v3325
        %v3328 = vshrl.u32 %v3193, 16
        %v3330 = vshll.u32 %v3193, 16
        %v3332 = vrot.slane %v3330, 1
        %v3333 = vor.u32 %v3328, %v3332
        %v3335 = vshll.u32 %v3265, 16
        %v3337 = vrot.slane %v3335, 1
        %v3338 = vsel %vm455, %v3333, %v3337
        %v3340 = vshrl.u32 %v3194, 16
        %v3342 = vshll.u32 %v3194, 16
        %v3344 = vrot.slane %v3342, 1
        %v3345 = vor.u32 %v3340, %v3344
        %v3347 = vshll.u32 %v3266, 16
        %v3349 = vrot.slane %v3347, 1
        %v3350 = vsel %vm455, %v3345, %v3349
        %v3352 = vshrl.u32 %v3195, 16
        %v3354 = vshll.u32 %v3195, 16
        %v3356 = vrot.slane %v3354, 1
        %v3357 = vor.u32 %v3352, %v3356
        %v3359 = vshll.u32 %v3267, 16
        %v3361 = vrot.slane %v3359, 1
        %v3362 = vsel %vm455, %v3357, %v3361
        %v3364 = vshrl.u32 %v3196, 16
        %v3366 = vshll.u32 %v3196, 16
        %v3368 = vrot.slane %v3366, 1
        %v3369 = vor.u32 %v3364, %v3368
        %v3371 = vshll.u32 %v3268, 16
        %v3373 = vrot.slane %v3371, 1
        %v3374 = vsel %vm455, %v3369, %v3373
        %v3376 = vshrl.u32 %v3197, 16
        %v3378 = vshll.u32 %v3197, 16
        %v3380 = vrot.slane %v3378, 1
        %v3381 = vor.u32 %v3376, %v3380
        %v3383 = vshll.u32 %v3269, 16
        %v3385 = vrot.slane %v3383, 1
        %v3386 = vsel %vm455, %v3381, %v3385
        %v3388 = vshrl.u32 %v3198, 16
        %v3390 = vshll.u32 %v3198, 16
        %v3392 = vrot.slane %v3390, 1
        %v3393 = vor.u32 %v3388, %v3392
        %v3395 = vshll.u32 %v3270, 16
        %v3397 = vrot.slane %v3395, 1
        %v3398 = vsel %vm455, %v3393, %v3397
        %v3400 = vshrl.u32 %v3199, 16
        %v3402 = vshll.u32 %v3199, 16
        %v3404 = vrot.slane %v3402, 1
        %v3405 = vor.u32 %v3400, %v3404
        %v3407 = vshll.u32 %v3271, 16
        %v3409 = vrot.slane %v3407, 1
        %v3410 = vsel %vm455, %v3405, %v3409
        %v3412 = vshrl.u32 %v3200, 16
        %v3414 = vshll.u32 %v3200, 16
        %v3416 = vrot.slane %v3414, 1
        %v3417 = vor.u32 %v3412, %v3416
        %v3419 = vshll.u32 %v3272, 16
        %v3421 = vrot.slane %v3419, 1
        %v3422 = vsel %vm455, %v3417, %v3421
        %v3424 = vshrl.u32 %v3201, 16
        %v3426 = vshll.u32 %v3201, 16
        %v3428 = vrot.slane %v3426, 1
        %v3429 = vor.u32 %v3424, %v3428
        %v3431 = vshll.u32 %v3273, 16
        %v3433 = vrot.slane %v3431, 1
        %v3434 = vsel %vm455, %v3429, %v3433
        %v3436 = vshrl.u32 %v3202, 16
        %v3438 = vshll.u32 %v3202, 16
        %v3440 = vrot.slane %v3438, 1
        %v3441 = vor.u32 %v3436, %v3440
        %v3443 = vshll.u32 %v3274, 16
        %v3445 = vrot.slane %v3443, 1
        %v3446 = vsel %vm455, %v3441, %v3445
        %v3448 = vshrl.u32 %v3203, 16
        %v3450 = vshll.u32 %v3203, 16
        %v3452 = vrot.slane %v3450, 1
        %v3453 = vor.u32 %v3448, %v3452
        %v3455 = vshll.u32 %v3275, 16
        %v3457 = vrot.slane %v3455, 1
        %v3458 = vsel %vm455, %v3453, %v3457
        %v3460 = vshrl.u32 %v3204, 16
        %v3462 = vshll.u32 %v3204, 16
        %v3464 = vrot.slane %v3462, 1
        %v3465 = vor.u32 %v3460, %v3464
        %v3467 = vshll.u32 %v3276, 16
        %v3469 = vrot.slane %v3467, 1
        %v3470 = vsel %vm455, %v3465, %v3469
        %v3472 = vshrl.u32 %v3205, 16
        %v3474 = vshll.u32 %v3205, 16
        %v3476 = vrot.slane %v3474, 1
        %v3477 = vor.u32 %v3472, %v3476
        %v3479 = vshll.u32 %v3277, 16
        %v3481 = vrot.slane %v3479, 1
        %v3482 = vsel %vm455, %v3477, %v3481
        %v3484 = vshrl.u32 %v3206, 16
        %v3486 = vshll.u32 %v3206, 16
        %v3488 = vrot.slane %v3486, 1
        %v3489 = vor.u32 %v3484, %v3488
        %v3491 = vshll.u32 %v3278, 16
        %v3493 = vrot.slane %v3491, 1
        %v3494 = vsel %vm455, %v3489, %v3493
        %v3513 = vrot.slane %v3189, 1
        %v3514 = vrot.slane %v3261, 1
        %v3515 = vsel %vm690, %v3513, %v3514
        %v3516 = vrot.slane %v3190, 1
        %v3517 = vrot.slane %v3262, 1
        %v3518 = vsel %vm690, %v3516, %v3517
        %v3519 = vrot.slane %v3191, 1
        %v3520 = vrot.slane %v3263, 1
        %v3521 = vsel %vm690, %v3519, %v3520
        %v3522 = vrot.slane %v3192, 1
        %v3523 = vrot.slane %v3264, 1
        %v3524 = vsel %vm690, %v3522, %v3523
        %v3525 = vrot.slane %v3193, 1
        %v3526 = vrot.slane %v3265, 1
        %v3527 = vsel %vm690, %v3525, %v3526
        %v3528 = vrot.slane %v3194, 1
        %v3529 = vrot.slane %v3266, 1
        %v3530 = vsel %vm690, %v3528, %v3529
        %v3531 = vrot.slane %v3195, 1
        %v3532 = vrot.slane %v3267, 1
        %v3533 = vsel %vm690, %v3531, %v3532
        %v3534 = vrot.slane %v3196, 1
        %v3535 = vrot.slane %v3268, 1
        %v3536 = vsel %vm690, %v3534, %v3535
        %v3537 = vrot.slane %v3197, 1
        %v3538 = vrot.slane %v3269, 1
        %v3539 = vsel %vm690, %v3537, %v3538
        %v3540 = vrot.slane %v3198, 1
        %v3541 = vrot.slane %v3270, 1
        %v3542 = vsel %vm690, %v3540, %v3541
        %v3543 = vrot.slane %v3199, 1
        %v3544 = vrot.slane %v3271, 1
        %v3545 = vsel %vm690, %v3543, %v3544
        %v3546 = vrot.slane %v3200, 1
        %v3547 = vrot.slane %v3272, 1
        %v3548 = vsel %vm690, %v3546, %v3547
        %v3549 = vrot.slane %v3201, 1
        %v3550 = vrot.slane %v3273, 1
        %v3551 = vsel %vm690, %v3549, %v3550
        %v3552 = vrot.slane %v3202, 1
        %v3553 = vrot.slane %v3274, 1
        %v3554 = vsel %vm690, %v3552, %v3553
        %v3555 = vrot.slane %v3203, 1
        %v3556 = vrot.slane %v3275, 1
        %v3557 = vsel %vm690, %v3555, %v3556
        %v3558 = vrot.slane %v3204, 1
        %v3559 = vrot.slane %v3276, 1
        %v3560 = vsel %vm690, %v3558, %v3559
        %v3561 = vrot.slane %v3205, 1
        %v3562 = vrot.slane %v3277, 1
        %v3563 = vsel %vm690, %v3561, %v3562
        %v3564 = vrot.slane %v3206, 1
        %v3565 = vrot.slane %v3278, 1
        %v3566 = vsel %vm690, %v3564, %v3565
        %v3585 = vld [vmem:[#allocation3] sm:$0xf]
        %v3586 = vld [vmem:[#allocation3 + $0x4] sm:$0xf]
        %v3587 = vld [vmem:[#allocation3 + $0x8] sm:$0xf]
        %v3588 = vld [vmem:[#allocation3 + $0xc] sm:$0xf]
        %v3589 = vld [vmem:[#allocation3 + $0x10] sm:$0xf]
        %v3590 = vld [vmem:[#allocation3 + $0x14] sm:$0xf]
        %v3591 = vld [vmem:[#allocation3 + $0x18] sm:$0xf]
        %v3592 = vld [vmem:[#allocation3 + $0x1c] sm:$0xf]
        %v3593 = vld [vmem:[#allocation3 + $0x20] sm:$0xf]
        %v3594 = vld [vmem:[#allocation3 + $0x24] sm:$0xf]
        %v3595 = vld [vmem:[#allocation3 + $0x28] sm:$0xf]
        %v3596 = vld [vmem:[#allocation3 + $0x2c] sm:$0xf]
        %v3597 = vld [vmem:[#allocation3 + $0x30] sm:$0xf]
        %v3598 = vld [vmem:[#allocation3 + $0x34] sm:$0xf]
        %v3599 = vld [vmem:[#allocation3 + $0x38] sm:$0xf]
        %v3600 = vld [vmem:[#allocation3 + $0x3c] sm:$0xf]
        %v3601 = vld [vmem:[#allocation3 + $0x40] sm:$0xf]
        %v3602 = vld [vmem:[#allocation3 + $0x44] sm:$0xf]
        %v3603 = vld [vmem:[#allocation3 + $0x48] sm:$0xf]
        %v3604 = vld [vmem:[#allocation3 + $0x4c] sm:$0xf]
        %v3605 = vld [vmem:[#allocation3 + $0x50] sm:$0xf]
        %v3606 = vld [vmem:[#allocation3 + $0x54] sm:$0xf]
        %v3607 = vld [vmem:[#allocation3 + $0x58] sm:$0xf]
        %v3608 = vld [vmem:[#allocation3 + $0x5c] sm:$0xf]
        %v3609 = vld [vmem:[#allocation3 + $0x60] sm:$0xf]
        %v3610 = vld [vmem:[#allocation3 + $0x64] sm:$0xf]
        %v3611 = vld [vmem:[#allocation3 + $0x68] sm:$0xf]
        %v3612 = vld [vmem:[#allocation3 + $0x6c] sm:$0xf]
        %v3613 = vld [vmem:[#allocation3 + $0x70] sm:$0xf]
        %v3614 = vld [vmem:[#allocation3 + $0x74] sm:$0xf]
        %v3615 = vld [vmem:[#allocation3 + $0x78] sm:$0xf]
        %v3616 = vld [vmem:[#allocation3 + $0x7c] sm:$0xf]
        %v3617 = vld [vmem:[#allocation3 + $0x80] sm:$0xf]
        %v3618 = vld [vmem:[#allocation3 + $0x84] sm:$0xf]
        %v3619 = vld [vmem:[#allocation3 + $0x88] sm:$0xf]
        %v3620 = vld [vmem:[#allocation3 + $0x8c] sm:$0xf]
        %v3621 = vld [vmem:[#allocation3 + $0x90] sm:$0xf]
        %v3622 = vld [vmem:[#allocation3 + $0x94] sm:$0xf]
        %v3623 = vld [vmem:[#allocation3 + $0x98] sm:$0xf]
        %v3624 = vld [vmem:[#allocation3 + $0x9c] sm:$0xf]
        %v3625 = vld [vmem:[#allocation3 + $0xa0] sm:$0xf]
        %v3626 = vld [vmem:[#allocation3 + $0xa4] sm:$0xf]
        %v3627 = vld [vmem:[#allocation3 + $0xa8] sm:$0xf]
        %v3628 = vld [vmem:[#allocation3 + $0xac] sm:$0xf]
        %v3629 = vld [vmem:[#allocation3 + $0xb0] sm:$0xf]
        %v3630 = vld [vmem:[#allocation3 + $0xb4] sm:$0xf]
        %v3631 = vld [vmem:[#allocation3 + $0xb8] sm:$0xf]
        %v3632 = vld [vmem:[#allocation3 + $0xbc] sm:$0xf]
        %s3633 = scalar_lea.vmem [#allocation3], 192
        %v3634 = vld [vmem:[%s3633] sm:$0xf]
        %v3635 = vld [vmem:[%s3633 + $0x4] sm:$0xf]
        %v3636 = vld [vmem:[%s3633 + $0x8] sm:$0xf]
        %v3637 = vld [vmem:[%s3633 + $0xc] sm:$0xf]
        %v3638 = vld [vmem:[%s3633 + $0x10] sm:$0xf]
        %v3639 = vld [vmem:[%s3633 + $0x14] sm:$0xf]
        %v3640 = vld [vmem:[%s3633 + $0x18] sm:$0xf]
        %v3641 = vld [vmem:[%s3633 + $0x1c] sm:$0xf]
        %v3642 = vld [vmem:[%s3633 + $0x20] sm:$0xf]
        %v3643 = vld [vmem:[%s3633 + $0x24] sm:$0xf]
        %v3644 = vld [vmem:[%s3633 + $0x28] sm:$0xf]
        %v3645 = vld [vmem:[%s3633 + $0x2c] sm:$0xf]
        %v3646 = vld [vmem:[%s3633 + $0x30] sm:$0xf]
        %v3647 = vld [vmem:[%s3633 + $0x34] sm:$0xf]
        %v3648 = vld [vmem:[%s3633 + $0x38] sm:$0xf]
        %v3649 = vld [vmem:[%s3633 + $0x3c] sm:$0xf]
        %v3650 = vld [vmem:[%s3633 + $0x40] sm:$0xf]
        %v3651 = vld [vmem:[%s3633 + $0x44] sm:$0xf]
        %v3652 = vld [vmem:[%s3633 + $0x48] sm:$0xf]
        %v3653 = vld [vmem:[%s3633 + $0x4c] sm:$0xf]
        %v3654 = vld [vmem:[%s3633 + $0x50] sm:$0xf]
        %v3655 = vld [vmem:[%s3633 + $0x54] sm:$0xf]
        %v3656 = vld [vmem:[%s3633 + $0x58] sm:$0xf]
        %v3657 = vld [vmem:[%s3633 + $0x5c] sm:$0xf]
        %v3658 = vld [vmem:[%s3633 + $0x60] sm:$0xf]
        %v3659 = vld [vmem:[%s3633 + $0x64] sm:$0xf]
        %v3660 = vld [vmem:[%s3633 + $0x68] sm:$0xf]
        %v3661 = vld [vmem:[%s3633 + $0x6c] sm:$0xf]
        %v3662 = vld [vmem:[%s3633 + $0x70] sm:$0xf]
        %v3663 = vld [vmem:[%s3633 + $0x74] sm:$0xf]
        %v3664 = vld [vmem:[%s3633 + $0x78] sm:$0xf]
        %v3665 = vld [vmem:[%s3633 + $0x7c] sm:$0xf]
        %v3666 = vld [vmem:[%s3633 + $0x80] sm:$0xf]
        %v3667 = vld [vmem:[%s3633 + $0x84] sm:$0xf]
        %v3668 = vld [vmem:[%s3633 + $0x88] sm:$0xf]
        %v3669 = vld [vmem:[%s3633 + $0x8c] sm:$0xf]
        %v3670 = vld [vmem:[%s3633 + $0x90] sm:$0xf]
        %v3671 = vld [vmem:[%s3633 + $0x94] sm:$0xf]
        %v3672 = vld [vmem:[%s3633 + $0x98] sm:$0xf]
        %v3673 = vld [vmem:[%s3633 + $0x9c] sm:$0xf]
        %v3674 = vld [vmem:[%s3633 + $0xa0] sm:$0xf]
        %v3675 = vld [vmem:[%s3633 + $0xa4] sm:$0xf]
        %v3676 = vld [vmem:[%s3633 + $0xa8] sm:$0xf]
        %v3677 = vld [vmem:[%s3633 + $0xac] sm:$0xf]
        %v3678 = vld [vmem:[%s3633 + $0xb0] sm:$0xf]
        %v3679 = vld [vmem:[%s3633 + $0xb4] sm:$0xf]
        %v3680 = vld [vmem:[%s3633 + $0xb8] sm:$0xf]
        %v3681 = vld [vmem:[%s3633 + $0xbc] sm:$0xf]
        %v3730 = vunpack.c.l.b16 %v3634
        %v3731 = vunpack.c.l.b16 %v3635
        %v3732 = vunpack.c.l.b16 %v3636
        %v3733 = vunpack.c.l.b16 %v3637
        %v3734 = vunpack.c.l.b16 %v3638
        %v3735 = vunpack.c.l.b16 %v3639
        %v3736 = vunpack.c.l.b16 %v3640
        %v3737 = vunpack.c.l.b16 %v3641
        %v3738 = vunpack.c.l.b16 %v3642
        %v3739 = vunpack.c.l.b16 %v3643
        %v3740 = vunpack.c.l.b16 %v3644
        %v3741 = vunpack.c.l.b16 %v3645
        %v3742 = vunpack.c.l.b16 %v3646
        %v3743 = vunpack.c.l.b16 %v3647
        %v3744 = vunpack.c.l.b16 %v3648
        %v3745 = vunpack.c.l.b16 %v3649
        %v3746 = vunpack.c.l.b16 %v3650
        %v3747 = vunpack.c.l.b16 %v3651
        %v3748 = vunpack.c.l.b16 %v3652
        %v3749 = vunpack.c.l.b16 %v3653
        %v3750 = vunpack.c.l.b16 %v3654
        %v3751 = vunpack.c.l.b16 %v3655
        %v3752 = vunpack.c.l.b16 %v3656
        %v3753 = vunpack.c.l.b16 %v3657
        %v3754 = vunpack.c.l.b16 %v3658
        %v3755 = vunpack.c.l.b16 %v3659
        %v3756 = vunpack.c.l.b16 %v3660
        %v3757 = vunpack.c.l.b16 %v3661
        %v3758 = vunpack.c.l.b16 %v3662
        %v3759 = vunpack.c.l.b16 %v3663
        %v3760 = vunpack.c.l.b16 %v3664
        %v3761 = vunpack.c.l.b16 %v3665
        %v3762 = vunpack.c.l.b16 %v3666
        %v3763 = vunpack.c.l.b16 %v3667
        %v3764 = vunpack.c.l.b16 %v3668
        %v3765 = vunpack.c.l.b16 %v3669
        %v3766 = vunpack.c.l.b16 %v3670
        %v3767 = vunpack.c.l.b16 %v3671
        %v3768 = vunpack.c.l.b16 %v3672
        %v3769 = vunpack.c.l.b16 %v3673
        %v3770 = vunpack.c.l.b16 %v3674
        %v3771 = vunpack.c.l.b16 %v3675
        %v3772 = vunpack.c.l.b16 %v3676
        %v3773 = vunpack.c.l.b16 %v3677
        %v3774 = vunpack.c.l.b16 %v3678
        %v3775 = vunpack.c.l.b16 %v3679
        %v3776 = vunpack.c.l.b16 %v3680
        %v3777 = vunpack.c.l.b16 %v3681
        %v3778 = vpack.c.b16 %v3731, %v3730
        %v3779 = vpack.c.b16 %v3733, %v3732
        %v3780 = vpack.c.b16 %v3735, %v3734
        %v3781 = vpack.c.b16 %v3737, %v3736
        %v3782 = vpack.c.b16 %v3739, %v3738
        %v3783 = vpack.c.b16 %v3741, %v3740
        %v3784 = vpack.c.b16 %v3743, %v3742
        %v3785 = vpack.c.b16 %v3745, %v3744
        %v3786 = vpack.c.b16 %v3747, %v3746
        %v3787 = vpack.c.b16 %v3749, %v3748
        %v3788 = vpack.c.b16 %v3751, %v3750
        %v3789 = vpack.c.b16 %v3753, %v3752
        %v3790 = vpack.c.b16 %v3755, %v3754
        %v3791 = vpack.c.b16 %v3757, %v3756
        %v3792 = vpack.c.b16 %v3759, %v3758
        %v3793 = vpack.c.b16 %v3761, %v3760
        %v3794 = vpack.c.b16 %v3763, %v3762
        %v3795 = vpack.c.b16 %v3765, %v3764
        %v3796 = vpack.c.b16 %v3767, %v3766
        %v3797 = vpack.c.b16 %v3769, %v3768
        %v3798 = vpack.c.b16 %v3771, %v3770
        %v3799 = vpack.c.b16 %v3773, %v3772
        %v3800 = vpack.c.b16 %v3775, %v3774
        %v3801 = vpack.c.b16 %v3777, %v3776
        %3826 = vmatprep.subr.bf16.mxu0 0
        %3827 = vmatpush1.bf16.msra.mxu0 %v3778
        %3828 = vmatprep.subr.bf16.mxu0 0
        %3829 = vmatpush1.bf16.msra.mxu0 %v3779
        %3830 = vmatprep.subr.bf16.mxu0 0
        %3831 = vmatpush1.bf16.msra.mxu0 %v3780
        %3832 = vmatprep.subr.bf16.mxu0 0
        %3833 = vmatpush1.bf16.msra.mxu0 %v3781
        %3834 = vmatprep.subr.bf16.mxu0 0
        %3835 = vmatpush1.bf16.msra.mxu0 %v3782
        %3836 = vmatprep.subr.bf16.mxu0 0
        %3837 = vmatpush1.bf16.msra.mxu0 %v3783
        %3838 = vmatprep.subr.bf16.mxu0 0
        %3839 = vmatpush1.bf16.msra.mxu0 %v3784
        %3840 = vmatprep.subr.bf16.mxu0 0
        %3841 = vmatpush1.bf16.msra.mxu0 %v3785
        %3842 = vmatprep.subr.bf16.mxu0 0
        %3843 = vmatpush1.bf16.msra.mxu0 %v3786
        %3844 = vmatprep.subr.bf16.mxu0 0
        %3845 = vmatpush1.bf16.msra.mxu0 %v3787
        %3846 = vmatprep.subr.bf16.mxu0 0
        %3847 = vmatpush1.bf16.msra.mxu0 %v3788
        %3848 = vmatprep.subr.bf16.mxu0 0
        %3849 = vmatpush1.bf16.msra.mxu0 %v3789
        %3850 = vmatprep.subr.bf16.mxu0 0
        %3851 = vmatpush1.bf16.msra.mxu0 %v3790
        %3852 = vmatprep.subr.bf16.mxu0 0
        %3853 = vmatpush1.bf16.msra.mxu0 %v3791
        %3854 = vmatprep.subr.bf16.mxu0 0
        %3855 = vmatpush1.bf16.msra.mxu0 %v3792
        %3856 = vmatprep.subr.bf16.mxu0 0
        %3857 = vmatpush1.bf16.msra.mxu0 %v3793
        %3858 = vmatprep.mubr.bf16.mxu0 %v3302
        %3859 = vmatmul.mubr.bf16.gmra.mrb[0].mxu0 %v3190
        %v3860 = vpop.f32.mrb[0].mxu0
        %v3861 = vadd.f32 0.0, %v3860
        %v3862 = vpop.f32.mrb[0].mxu0
        %v3863 = vpop.f32.mrb[0].mxu0
        %v3864 = vadd.f32 0.0, %v3863
        %v3865 = vpop.f32.mrb[0].mxu0
        %3866 = vmatprep.mubr.bf16.mxu0 %v3314
        %3867 = vmatmul.mubr.bf16.gmra.mrb[0].mxu0 %v3191
        %v3868 = vpop.f32.mrb[0].mxu0
        %v3869 = vadd.f32 0.0, %v3868
        %v3870 = vpop.f32.mrb[0].mxu0
        %v3871 = vpop.f32.mrb[0].mxu0
        %v3872 = vadd.f32 0.0, %v3871
        %v3873 = vpop.f32.mrb[0].mxu0
        %3874 = vmatprep.mubr.bf16.mxu0 %v3326
        %3875 = vmatmul.mubr.bf16.gmra.mrb[0].mxu0 %v3192
        %v3876 = vpop.f32.mrb[0].mxu0
        %v3877 = vadd.f32 0.0, %v3876
        %v3878 = vpop.f32.mrb[0].mxu0
        %v3879 = vpop.f32.mrb[0].mxu0
        %v3880 = vadd.f32 0.0, %v3879
        %v3881 = vpop.f32.mrb[0].mxu0
        %3882 = vmatprep.mubr.bf16.mxu0 %v3338
        %3883 = vmatmul.mubr.bf16.gmra.mrb[0].mxu0 %v3193
        %v3884 = vpop.f32.mrb[0].mxu0
        %v3885 = vadd.f32 0.0, %v3884
        %v3886 = vpop.f32.mrb[0].mxu0
        %v3887 = vpop.f32.mrb[0].mxu0
        %v3888 = vadd.f32 0.0, %v3887
        %v3889 = vpop.f32.mrb[0].mxu0
        %3890 = vmatprep.mubr.bf16.mxu0 %v3350
        %3891 = vmatmul.mubr.bf16.gmra.mrb[0].mxu0 %v3194
        %v3892 = vpop.f32.mrb[0].mxu0
        %v3893 = vadd.f32 0.0, %v3892
        %v3894 = vpop.f32.mrb[0].mxu0
        %v3895 = vpop.f32.mrb[0].mxu0
        %v3896 = vadd.f32 0.0, %v3895
        %v3897 = vpop.f32.mrb[0].mxu0
        %3898 = vmatprep.mubr.bf16.mxu0 %v3362
        %3899 = vmatmul.mubr.bf16.gmra.mrb[0].mxu0 %v3195
        %v3900 = vpop.f32.mrb[0].mxu0
        %v3901 = vadd.f32 0.0, %v3900
        %v3902 = vpop.f32.mrb[0].mxu0
        %v3903 = vpop.f32.mrb[0].mxu0
        %v3904 = vadd.f32 0.0, %v3903
        %v3905 = vpop.f32.mrb[0].mxu0
        %3906 = vmatprep.mubr.bf16.mxu0 %v3374
        %3907 = vmatmul.mubr.bf16.gmra.mrb[0].mxu0 %v3196
        %v3908 = vpop.f32.mrb[0].mxu0
        %v3909 = vadd.f32 0.0, %v3908
        %v3910 = vpop.f32.mrb[0].mxu0
        %v3911 = vpop.f32.mrb[0].mxu0
        %v3912 = vadd.f32 0.0, %v3911
        %v3913 = vpop.f32.mrb[0].mxu0
        %3914 = vmatprep.mubr.bf16.mxu0 %v3386
        %3915 = vmatmul.mubr.bf16.gmra.mrb[0].mxu0 %v3197
        %v3916 = vpop.f32.mrb[0].mxu0
        %v3917 = vadd.f32 0.0, %v3916
        %v3918 = vpop.f32.mrb[0].mxu0
        %v3919 = vpop.f32.mrb[0].mxu0
        %v3920 = vadd.f32 0.0, %v3919
        %v3921 = vpop.f32.mrb[0].mxu0
        %3922 = vmatprep.mubr.bf16.mxu0 %v3398
        %3923 = vmatmul.mubr.bf16.gmra.mrb[0].mxu0 %v3198
        %v3924 = vpop.f32.mrb[0].mxu0
        %v3925 = vadd.f32 0.0, %v3924
        %v3926 = vpop.f32.mrb[0].mxu0
        %v3927 = vpop.f32.mrb[0].mxu0
        %v3928 = vadd.f32 0.0, %v3927
        %v3929 = vpop.f32.mrb[0].mxu0
        %3930 = vmatprep.mubr.bf16.mxu0 %v3410
        %3931 = vmatmul.mubr.bf16.gmra.mrb[0].mxu0 %v3199
        %v3932 = vpop.f32.mrb[0].mxu0
        %v3933 = vadd.f32 0.0, %v3932
        %v3934 = vpop.f32.mrb[0].mxu0
        %v3935 = vpop.f32.mrb[0].mxu0
        %v3936 = vadd.f32 0.0, %v3935
        %v3937 = vpop.f32.mrb[0].mxu0
        %3938 = vmatprep.mubr.bf16.mxu0 %v3422
        %3939 = vmatmul.mubr.bf16.gmra.mrb[0].mxu0 %v3200
        %v3940 = vpop.f32.mrb[0].mxu0
        %v3941 = vadd.f32 0.0, %v3940
        %v3942 = vpop.f32.mrb[0].mxu0
        %v3943 = vpop.f32.mrb[0].mxu0
        %v3944 = vadd.f32 0.0, %v3943
        %v3945 = vpop.f32.mrb[0].mxu0
        %3946 = vmatprep.mubr.bf16.mxu0 %v3434
        %3947 = vmatmul.mubr.bf16.gmra.mrb[0].mxu0 %v3201
        %v3948 = vpop.f32.mrb[0].mxu0
        %v3949 = vadd.f32 0.0, %v3948
        %v3950 = vpop.f32.mrb[0].mxu0
        %v3951 = vpop.f32.mrb[0].mxu0
        %v3952 = vadd.f32 0.0, %v3951
        %v3953 = vpop.f32.mrb[0].mxu0
        %3954 = vmatprep.mubr.bf16.mxu0 %v3446
        %3955 = vmatmul.mubr.bf16.gmra.mrb[0].mxu0 %v3202
        %v3956 = vpop.f32.mrb[0].mxu0
        %v3957 = vadd.f32 0.0, %v3956
        %v3958 = vpop.f32.mrb[0].mxu0
        %v3959 = vpop.f32.mrb[0].mxu0
        %v3960 = vadd.f32 0.0, %v3959
        %v3961 = vpop.f32.mrb[0].mxu0
        %3962 = vmatprep.mubr.bf16.mxu0 %v3458
        %3963 = vmatmul.mubr.bf16.gmra.mrb[0].mxu0 %v3203
        %v3964 = vpop.f32.mrb[0].mxu0
        %v3965 = vadd.f32 0.0, %v3964
        %v3966 = vpop.f32.mrb[0].mxu0
        %v3967 = vpop.f32.mrb[0].mxu0
        %v3968 = vadd.f32 0.0, %v3967
        %v3969 = vpop.f32.mrb[0].mxu0
        %3970 = vmatprep.mubr.bf16.mxu0 %v3470
        %3971 = vmatmul.mubr.bf16.gmra.mrb[0].mxu0 %v3204
        %v3972 = vpop.f32.mrb[0].mxu0
        %v3973 = vadd.f32 0.0, %v3972
        %v3974 = vpop.f32.mrb[0].mxu0
        %v3975 = vpop.f32.mrb[0].mxu0
        %v3976 = vadd.f32 0.0, %v3975
        %v3977 = vpop.f32.mrb[0].mxu0
        %3978 = vmatprep.mubr.bf16.mxu0 %v3482
        %3979 = vmatmul.mubr.bf16.gmra.mrb[0].mxu0 %v3205
        %v3980 = vpop.f32.mrb[0].mxu0
        %v3981 = vadd.f32 0.0, %v3980
        %v3982 = vpop.f32.mrb[0].mxu0
        %v3983 = vpop.f32.mrb[0].mxu0
        %v3984 = vadd.f32 0.0, %v3983
        %v3985 = vpop.f32.mrb[0].mxu0
        %3986 = vdwg.mxu0
        %3987 = vmatprep.subr.bf16.mxu0 0
        %3988 = vmatpush1.bf16.msra.mxu0 %v3794
        %3989 = vmatprep.subr.bf16.mxu0 0
        %3990 = vmatpush1.bf16.msra.mxu0 %v3795
        %3991 = vmatprep.subr.bf16.mxu0 0
        %3992 = vmatpush1.bf16.msra.mxu0 %v3796
        %3993 = vmatprep.subr.bf16.mxu0 0
        %3994 = vmatpush1.bf16.msra.mxu0 %v3797
        %3995 = vmatprep.subr.bf16.mxu0 0
        %3996 = vmatpush1.bf16.msra.mxu0 %v3798
        %3997 = vmatprep.subr.bf16.mxu0 0
        %3998 = vmatpush1.bf16.msra.mxu0 %v3799
        %3999 = vmatprep.subr.bf16.mxu0 0
        %4000 = vmatpush1.bf16.msra.mxu0 %v3800
        %4001 = vmatprep.subr.bf16.mxu0 0
        %4002 = vmatpush1.bf16.msra.mxu0 %v3801
        %4003 = vmatprep.subr.bf16.mxu0 0
        %4004 = vmatpush1.bf16.msra.mxu0 0
        %4005 = vmatprep.subr.bf16.mxu0 0
        %4006 = vmatpush1.bf16.msra.mxu0 0
        %4007 = vmatprep.subr.bf16.mxu0 0
        %4008 = vmatpush1.bf16.msra.mxu0 0
        %4009 = vmatprep.subr.bf16.mxu0 0
        %4010 = vmatpush1.bf16.msra.mxu0 0
        %4011 = vmatprep.subr.bf16.mxu0 0
        %4012 = vmatpush1.bf16.msra.mxu0 0
        %4013 = vmatprep.subr.bf16.mxu0 0
        %4014 = vmatpush1.bf16.msra.mxu0 0
        %4015 = vmatprep.subr.bf16.mxu0 0
        %4016 = vmatpush1.bf16.msra.mxu0 0
        %4017 = vmatprep.subr.bf16.mxu0 0
        %4018 = vmatpush1.bf16.msra.mxu0 0
        %4019 = vmatprep.mubr.bf16.mxu0 0
        %4020 = vmatmul.mubr.bf16.gmra.mrb[0].mxu0 %v3518
        %v4021 = vpop.f32.mrb[0].mxu0
        %v4022 = vadd.f32 %v3861, %v4021
        %v4023 = vpop.f32.mrb[0].mxu0
        %v4024 = vpop.f32.mrb[0].mxu0
        %v4025 = vadd.f32 %v3864, %v4024
        %v4026 = vpop.f32.mrb[0].mxu0
        %4027 = vmatprep.mubr.bf16.mxu0 0
        %4028 = vmatmul.mubr.bf16.gmra.mrb[0].mxu0 %v3521
        %v4029 = vpop.f32.mrb[0].mxu0
        %v4030 = vadd.f32 %v3869, %v4029
        %v4031 = vpop.f32.mrb[0].mxu0
        %v4032 = vpop.f32.mrb[0].mxu0
        %v4033 = vadd.f32 %v3872, %v4032
        %v4034 = vpop.f32.mrb[0].mxu0
        %4035 = vmatprep.mubr.bf16.mxu0 0
        %4036 = vmatmul.mubr.bf16.gmra.mrb[0].mxu0 %v3524
        %v4037 = vpop.f32.mrb[0].mxu0
        %v4038 = vadd.f32 %v3877, %v4037
        %v4039 = vpop.f32.mrb[0].mxu0
        %v4040 = vpop.f32.mrb[0].mxu0
        %v4041 = vadd.f32 %v3880, %v4040
        %v4042 = vpop.f32.mrb[0].mxu0
        %4043 = vmatprep.mubr.bf16.mxu0 0
        %4044 = vmatmul.mubr.bf16.gmra.mrb[0].mxu0 %v3527
        %v4045 = vpop.f32.mrb[0].mxu0
        %v4046 = vadd.f32 %v3885, %v4045
        %v4047 = vpop.f32.mrb[0].mxu0
        %v4048 = vpop.f32.mrb[0].mxu0
        %v4049 = vadd.f32 %v3888, %v4048
        %v4050 = vpop.f32.mrb[0].mxu0
        %4051 = vmatprep.mubr.bf16.mxu0 0
        %4052 = vmatmul.mubr.bf16.gmra.mrb[0].mxu0 %v3530
        %v4053 = vpop.f32.mrb[0].mxu0
        %v4054 = vadd.f32 %v3893, %v4053
        %v4055 = vpop.f32.mrb[0].mxu0
        %v4056 = vpop.f32.mrb[0].mxu0
        %v4057 = vadd.f32 %v3896, %v4056
        %v4058 = vpop.f32.mrb[0].mxu0
        %4059 = vmatprep.mubr.bf16.mxu0 0
        %4060 = vmatmul.mubr.bf16.gmra.mrb[0].mxu0 %v3533
        %v4061 = vpop.f32.mrb[0].mxu0
        %v4062 = vadd.f32 %v3901, %v4061
        %v4063 = vpop.f32.mrb[0].mxu0
        %v4064 = vpop.f32.mrb[0].mxu0
        %v4065 = vadd.f32 %v3904, %v4064
        %v4066 = vpop.f32.mrb[0].mxu0
        %4067 = vmatprep.mubr.bf16.mxu0 0
        %4068 = vmatmul.mubr.bf16.gmra.mrb[0].mxu0 %v3536
        %v4069 = vpop.f32.mrb[0].mxu0
        %v4070 = vadd.f32 %v3909, %v4069
        %v4071 = vpop.f32.mrb[0].mxu0
        %v4072 = vpop.f32.mrb[0].mxu0
        %v4073 = vadd.f32 %v3912, %v4072
        %v4074 = vpop.f32.mrb[0].mxu0
        %4075 = vmatprep.mubr.bf16.mxu0 0
        %4076 = vmatmul.mubr.bf16.gmra.mrb[0].mxu0 %v3539
        %v4077 = vpop.f32.mrb[0].mxu0
        %v4078 = vadd.f32 %v3917, %v4077
        %v4079 = vpop.f32.mrb[0].mxu0
        %v4080 = vpop.f32.mrb[0].mxu0
        %v4081 = vadd.f32 %v3920, %v4080
        %v4082 = vpop.f32.mrb[0].mxu0
        %4083 = vmatprep.mubr.bf16.mxu0 0
        %4084 = vmatmul.mubr.bf16.gmra.mrb[0].mxu0 %v3542
        %v4085 = vpop.f32.mrb[0].mxu0
        %v4086 = vadd.f32 %v3925, %v4085
        %v4087 = vpop.f32.mrb[0].mxu0
        %v4088 = vpop.f32.mrb[0].mxu0
        %v4089 = vadd.f32 %v3928, %v4088
        %v4090 = vpop.f32.mrb[0].mxu0
        %4091 = vmatprep.mubr.bf16.mxu0 0
        %4092 = vmatmul.mubr.bf16.gmra.mrb[0].mxu0 %v3545
        %v4093 = vpop.f32.mrb[0].mxu0
        %v4094 = vadd.f32 %v3933, %v4093
        %v4095 = vpop.f32.mrb[0].mxu0
        %v4096 = vpop.f32.mrb[0].mxu0
        %v4097 = vadd.f32 %v3936, %v4096
        %v4098 = vpop.f32.mrb[0].mxu0
        %4099 = vmatprep.mubr.bf16.mxu0 0
        %4100 = vmatmul.mubr.bf16.gmra.mrb[0].mxu0 %v3548
        %v4101 = vpop.f32.mrb[0].mxu0
        %v4102 = vadd.f32 %v3941, %v4101
        %v4103 = vpop.f32.mrb[0].mxu0
        %v4104 = vpop.f32.mrb[0].mxu0
        %v4105 = vadd.f32 %v3944, %v4104
        %v4106 = vpop.f32.mrb[0].mxu0
        %4107 = vmatprep.mubr.bf16.mxu0 0
        %4108 = vmatmul.mubr.bf16.gmra.mrb[0].mxu0 %v3551
        %v4109 = vpop.f32.mrb[0].mxu0
        %v4110 = vadd.f32 %v3949, %v4109
        %v4111 = vpop.f32.mrb[0].mxu0
        %v4112 = vpop.f32.mrb[0].mxu0
        %v4113 = vadd.f32 %v3952, %v4112
        %v4114 = vpop.f32.mrb[0].mxu0
        %4115 = vmatprep.mubr.bf16.mxu0 0
        %4116 = vmatmul.mubr.bf16.gmra.mrb[0].mxu0 %v3554
        %v4117 = vpop.f32.mrb[0].mxu0
        %v4118 = vadd.f32 %v3957, %v4117
        %v4119 = vpop.f32.mrb[0].mxu0
        %v4120 = vpop.f32.mrb[0].mxu0
        %v4121 = vadd.f32 %v3960, %v4120
        %v4122 = vpop.f32.mrb[0].mxu0
        %4123 = vmatprep.mubr.bf16.mxu0 0
        %4124 = vmatmul.mubr.bf16.gmra.mrb[0].mxu0 %v3557
        %v4125 = vpop.f32.mrb[0].mxu0
        %v4126 = vadd.f32 %v3965, %v4125
        %v4127 = vpop.f32.mrb[0].mxu0
        %v4128 = vpop.f32.mrb[0].mxu0
        %v4129 = vadd.f32 %v3968, %v4128
        %v4130 = vpop.f32.mrb[0].mxu0
        %4131 = vmatprep.mubr.bf16.mxu0 0
        %4132 = vmatmul.mubr.bf16.gmra.mrb[0].mxu0 %v3560
        %v4133 = vpop.f32.mrb[0].mxu0
        %v4134 = vadd.f32 %v3973, %v4133
        %v4135 = vpop.f32.mrb[0].mxu0
        %v4136 = vpop.f32.mrb[0].mxu0
        %v4137 = vadd.f32 %v3976, %v4136
        %v4138 = vpop.f32.mrb[0].mxu0
        %4139 = vmatprep.mubr.bf16.mxu0 0
        %4140 = vmatmul.mubr.bf16.gmra.mrb[0].mxu0 %v3563
        %v4141 = vpop.f32.mrb[0].mxu0
        %v4142 = vadd.f32 %v3981, %v4141
        %v4143 = vpop.f32.mrb[0].mxu0
        %v4144 = vpop.f32.mrb[0].mxu0
        %v4145 = vadd.f32 %v3984, %v4144
        %v4146 = vpop.f32.mrb[0].mxu0
        %4147 = vdwg.mxu0
        %v4196 = vunpack.c.l.b16 %v3585
        %v4197 = vunpack.c.l.b16 %v3586
        %v4198 = vunpack.c.l.b16 %v3587
        %v4199 = vunpack.c.l.b16 %v3588
        %v4200 = vunpack.c.l.b16 %v3589
        %v4201 = vunpack.c.l.b16 %v3590
        %v4202 = vunpack.c.l.b16 %v3591
        %v4203 = vunpack.c.l.b16 %v3592
        %v4204 = vunpack.c.l.b16 %v3593
        %v4205 = vunpack.c.l.b16 %v3594
        %v4206 = vunpack.c.l.b16 %v3595
        %v4207 = vunpack.c.l.b16 %v3596
        %v4208 = vunpack.c.l.b16 %v3597
        %v4209 = vunpack.c.l.b16 %v3598
        %v4210 = vunpack.c.l.b16 %v3599
        %v4211 = vunpack.c.l.b16 %v3600
        %v4212 = vunpack.c.l.b16 %v3601
        %v4213 = vunpack.c.l.b16 %v3602
        %v4214 = vunpack.c.l.b16 %v3603
        %v4215 = vunpack.c.l.b16 %v3604
        %v4216 = vunpack.c.l.b16 %v3605
        %v4217 = vunpack.c.l.b16 %v3606
        %v4218 = vunpack.c.l.b16 %v3607
        %v4219 = vunpack.c.l.b16 %v3608
        %v4220 = vunpack.c.l.b16 %v3609
        %v4221 = vunpack.c.l.b16 %v3610
        %v4222 = vunpack.c.l.b16 %v3611
        %v4223 = vunpack.c.l.b16 %v3612
        %v4224 = vunpack.c.l.b16 %v3613
        %v4225 = vunpack.c.l.b16 %v3614
        %v4226 = vunpack.c.l.b16 %v3615
        %v4227 = vunpack.c.l.b16 %v3616
        %v4228 = vunpack.c.l.b16 %v3617
        %v4229 = vunpack.c.l.b16 %v3618
        %v4230 = vunpack.c.l.b16 %v3619
        %v4231 = vunpack.c.l.b16 %v3620
        %v4232 = vunpack.c.l.b16 %v3621
        %v4233 = vunpack.c.l.b16 %v3622
        %v4234 = vunpack.c.l.b16 %v3623
        %v4235 = vunpack.c.l.b16 %v3624
        %v4236 = vunpack.c.l.b16 %v3625
        %v4237 = vunpack.c.l.b16 %v3626
        %v4238 = vunpack.c.l.b16 %v3627
        %v4239 = vunpack.c.l.b16 %v3628
        %v4240 = vunpack.c.l.b16 %v3629
        %v4241 = vunpack.c.l.b16 %v3630
        %v4242 = vunpack.c.l.b16 %v3631
        %v4243 = vunpack.c.l.b16 %v3632
        %v4244 = vpack.c.b16 %v4197, %v4196
        %v4245 = vpack.c.b16 %v4199, %v4198
        %v4246 = vpack.c.b16 %v4201, %v4200
        %v4247 = vpack.c.b16 %v4203, %v4202
        %v4248 = vpack.c.b16 %v4205, %v4204
        %v4249 = vpack.c.b16 %v4207, %v4206
        %v4250 = vpack.c.b16 %v4209, %v4208
        %v4251 = vpack.c.b16 %v4211, %v4210
        %v4252 = vpack.c.b16 %v4213, %v4212
        %v4253 = vpack.c.b16 %v4215, %v4214
        %v4254 = vpack.c.b16 %v4217, %v4216
        %v4255 = vpack.c.b16 %v4219, %v4218
        %v4256 = vpack.c.b16 %v4221, %v4220
        %v4257 = vpack.c.b16 %v4223, %v4222
        %v4258 = vpack.c.b16 %v4225, %v4224
        %v4259 = vpack.c.b16 %v4227, %v4226
        %v4260 = vpack.c.b16 %v4229, %v4228
        %v4261 = vpack.c.b16 %v4231, %v4230
        %v4262 = vpack.c.b16 %v4233, %v4232
        %v4263 = vpack.c.b16 %v4235, %v4234
        %v4264 = vpack.c.b16 %v4237, %v4236
        %v4265 = vpack.c.b16 %v4239, %v4238
        %v4266 = vpack.c.b16 %v4241, %v4240
        %v4267 = vpack.c.b16 %v4243, %v4242
        %4292 = vmatprep.subr.bf16.mxu0 0
        %4293 = vmatpush1.bf16.msra.mxu0 %v4244
        %4294 = vmatprep.subr.bf16.mxu0 0
        %4295 = vmatpush1.bf16.msra.mxu0 %v4245
        %4296 = vmatprep.subr.bf16.mxu0 0
        %4297 = vmatpush1.bf16.msra.mxu0 %v4246
        %4298 = vmatprep.subr.bf16.mxu0 0
        %4299 = vmatpush1.bf16.msra.mxu0 %v4247
        %4300 = vmatprep.subr.bf16.mxu0 0
        %4301 = vmatpush1.bf16.msra.mxu0 %v4248
        %4302 = vmatprep.subr.bf16.mxu0 0
        %4303 = vmatpush1.bf16.msra.mxu0 %v4249
        %4304 = vmatprep.subr.bf16.mxu0 0
        %4305 = vmatpush1.bf16.msra.mxu0 %v4250
        %4306 = vmatprep.subr.bf16.mxu0 0
        %4307 = vmatpush1.bf16.msra.mxu0 %v4251
        %4308 = vmatprep.subr.bf16.mxu0 0
        %4309 = vmatpush1.bf16.msra.mxu0 %v4252
        %4310 = vmatprep.subr.bf16.mxu0 0
        %4311 = vmatpush1.bf16.msra.mxu0 %v4253
        %4312 = vmatprep.subr.bf16.mxu0 0
        %4313 = vmatpush1.bf16.msra.mxu0 %v4254
        %4314 = vmatprep.subr.bf16.mxu0 0
        %4315 = vmatpush1.bf16.msra.mxu0 %v4255
        %4316 = vmatprep.subr.bf16.mxu0 0
        %4317 = vmatpush1.bf16.msra.mxu0 %v4256
        %4318 = vmatprep.subr.bf16.mxu0 0
        %4319 = vmatpush1.bf16.msra.mxu0 %v4257
        %4320 = vmatprep.subr.bf16.mxu0 0
        %4321 = vmatpush1.bf16.msra.mxu0 %v4258
        %4322 = vmatprep.subr.bf16.mxu0 0
        %4323 = vmatpush1.bf16.msra.mxu0 %v4259
        %4324 = vmatprep.mubr.bf16.mxu0 %v3290
        %4325 = vmatmul.mubr.bf16.gmra.mrb[0].mxu0 %v3189
        %v4326 = vpop.f32.mrb[0].mxu0
        %v4327 = vadd.f32 %v4022, %v4326
        %v4328 = vpop.f32.mrb[0].mxu0
        %v4329 = vpop.f32.mrb[0].mxu0
        %v4330 = vadd.f32 %v4025, %v4329
        %v4331 = vpop.f32.mrb[0].mxu0
        %4332 = vmatprep.mubr.bf16.mxu0 %v3302
        %4333 = vmatmul.mubr.bf16.gmra.mrb[0].mxu0 %v3190
        %v4334 = vpop.f32.mrb[0].mxu0
        %v4335 = vadd.f32 %v4030, %v4334
        %v4336 = vpop.f32.mrb[0].mxu0
        %v4337 = vpop.f32.mrb[0].mxu0
        %v4338 = vadd.f32 %v4033, %v4337
        %v4339 = vpop.f32.mrb[0].mxu0
        %4340 = vmatprep.mubr.bf16.mxu0 %v3314
        %4341 = vmatmul.mubr.bf16.gmra.mrb[0].mxu0 %v3191
        %v4342 = vpop.f32.mrb[0].mxu0
        %v4343 = vadd.f32 %v4038, %v4342
        %v4344 = vpop.f32.mrb[0].mxu0
        %v4345 = vpop.f32.mrb[0].mxu0
        %v4346 = vadd.f32 %v4041, %v4345
        %v4347 = vpop.f32.mrb[0].mxu0
        %4348 = vmatprep.mubr.bf16.mxu0 %v3326
        %4349 = vmatmul.mubr.bf16.gmra.mrb[0].mxu0 %v3192
        %v4350 = vpop.f32.mrb[0].mxu0
        %v4351 = vadd.f32 %v4046, %v4350
        %v4352 = vpop.f32.mrb[0].mxu0
        %v4353 = vpop.f32.mrb[0].mxu0
        %v4354 = vadd.f32 %v4049, %v4353
        %v4355 = vpop.f32.mrb[0].mxu0
        %4356 = vmatprep.mubr.bf16.mxu0 %v3338
        %4357 = vmatmul.mubr.bf16.gmra.mrb[0].mxu0 %v3193
        %v4358 = vpop.f32.mrb[0].mxu0
        %v4359 = vadd.f32 %v4054, %v4358
        %v4360 = vpop.f32.mrb[0].mxu0
        %v4361 = vpop.f32.mrb[0].mxu0
        %v4362 = vadd.f32 %v4057, %v4361
        %v4363 = vpop.f32.mrb[0].mxu0
        %4364 = vmatprep.mubr.bf16.mxu0 %v3350
        %4365 = vmatmul.mubr.bf16.gmra.mrb[0].mxu0 %v3194
        %v4366 = vpop.f32.mrb[0].mxu0
        %v4367 = vadd.f32 %v4062, %v4366
        %v4368 = vpop.f32.mrb[0].mxu0
        %v4369 = vpop.f32.mrb[0].mxu0
        %v4370 = vadd.f32 %v4065, %v4369
        %v4371 = vpop.f32.mrb[0].mxu0
        %4372 = vmatprep.mubr.bf16.mxu0 %v3362
        %4373 = vmatmul.mubr.bf16.gmra.mrb[0].mxu0 %v3195
        %v4374 = vpop.f32.mrb[0].mxu0
        %v4375 = vadd.f32 %v4070, %v4374
        %v4376 = vpop.f32.mrb[0].mxu0
        %v4377 = vpop.f32.mrb[0].mxu0
        %v4378 = vadd.f32 %v4073, %v4377
        %v4379 = vpop.f32.mrb[0].mxu0
        %4380 = vmatprep.mubr.bf16.mxu0 %v3374
        %4381 = vmatmul.mubr.bf16.gmra.mrb[0].mxu0 %v3196
        %v4382 = vpop.f32.mrb[0].mxu0
        %v4383 = vadd.f32 %v4078, %v4382
        %v4384 = vpop.f32.mrb[0].mxu0
        %v4385 = vpop.f32.mrb[0].mxu0
        %v4386 = vadd.f32 %v4081, %v4385
        %v4387 = vpop.f32.mrb[0].mxu0
        %4388 = vmatprep.mubr.bf16.mxu0 %v3386
        %4389 = vmatmul.mubr.bf16.gmra.mrb[0].mxu0 %v3197
        %v4390 = vpop.f32.mrb[0].mxu0
        %v4391 = vadd.f32 %v4086, %v4390
        %v4392 = vpop.f32.mrb[0].mxu0
        %v4393 = vpop.f32.mrb[0].mxu0
        %v4394 = vadd.f32 %v4089, %v4393
        %v4395 = vpop.f32.mrb[0].mxu0
        %4396 = vmatprep.mubr.bf16.mxu0 %v3398
        %4397 = vmatmul.mubr.bf16.gmra.mrb[0].mxu0 %v3198
        %v4398 = vpop.f32.mrb[0].mxu0
        %v4399 = vadd.f32 %v4094, %v4398
        %v4400 = vpop.f32.mrb[0].mxu0
        %v4401 = vpop.f32.mrb[0].mxu0
        %v4402 = vadd.f32 %v4097, %v4401
        %v4403 = vpop.f32.mrb[0].mxu0
        %4404 = vmatprep.mubr.bf16.mxu0 %v3410
        %4405 = vmatmul.mubr.bf16.gmra.mrb[0].mxu0 %v3199
        %v4406 = vpop.f32.mrb[0].mxu0
        %v4407 = vadd.f32 %v4102, %v4406
        %v4408 = vpop.f32.mrb[0].mxu0
        %v4409 = vpop.f32.mrb[0].mxu0
        %v4410 = vadd.f32 %v4105, %v4409
        %v4411 = vpop.f32.mrb[0].mxu0
        %4412 = vmatprep.mubr.bf16.mxu0 %v3422
        %4413 = vmatmul.mubr.bf16.gmra.mrb[0].mxu0 %v3200
        %v4414 = vpop.f32.mrb[0].mxu0
        %v4415 = vadd.f32 %v4110, %v4414
        %v4416 = vpop.f32.mrb[0].mxu0
        %v4417 = vpop.f32.mrb[0].mxu0
        %v4418 = vadd.f32 %v4113, %v4417
        %v4419 = vpop.f32.mrb[0].mxu0
        %4420 = vmatprep.mubr.bf16.mxu0 %v3434
        %4421 = vmatmul.mubr.bf16.gmra.mrb[0].mxu0 %v3201
        %v4422 = vpop.f32.mrb[0].mxu0
        %v4423 = vadd.f32 %v4118, %v4422
        %v4424 = vpop.f32.mrb[0].mxu0
        %v4425 = vpop.f32.mrb[0].mxu0
        %v4426 = vadd.f32 %v4121, %v4425
        %v4427 = vpop.f32.mrb[0].mxu0
        %4428 = vmatprep.mubr.bf16.mxu0 %v3446
        %4429 = vmatmul.mubr.bf16.gmra.mrb[0].mxu0 %v3202
        %v4430 = vpop.f32.mrb[0].mxu0
        %v4431 = vadd.f32 %v4126, %v4430
        %v4432 = vpop.f32.mrb[0].mxu0
        %v4433 = vpop.f32.mrb[0].mxu0
        %v4434 = vadd.f32 %v4129, %v4433
        %v4435 = vpop.f32.mrb[0].mxu0
        %4436 = vmatprep.mubr.bf16.mxu0 %v3458
        %4437 = vmatmul.mubr.bf16.gmra.mrb[0].mxu0 %v3203
        %v4438 = vpop.f32.mrb[0].mxu0
        %v4439 = vadd.f32 %v4134, %v4438
        %v4440 = vpop.f32.mrb[0].mxu0
        %v4441 = vpop.f32.mrb[0].mxu0
        %v4442 = vadd.f32 %v4137, %v4441
        %v4443 = vpop.f32.mrb[0].mxu0
        %4444 = vmatprep.mubr.bf16.mxu0 %v3470
        %4445 = vmatmul.mubr.bf16.gmra.mrb[0].mxu0 %v3204
        %v4446 = vpop.f32.mrb[0].mxu0
        %v4447 = vadd.f32 %v4142, %v4446
        %v4448 = vpop.f32.mrb[0].mxu0
        %v4449 = vpop.f32.mrb[0].mxu0
        %v4450 = vadd.f32 %v4145, %v4449
        %v4451 = vpop.f32.mrb[0].mxu0
        %4452 = vdwg.mxu0
        %4453 = vmatprep.subr.bf16.mxu0 0
        %4454 = vmatpush1.bf16.msra.mxu0 %v4260
        %4455 = vmatprep.subr.bf16.mxu0 0
        %4456 = vmatpush1.bf16.msra.mxu0 %v4261
        %4457 = vmatprep.subr.bf16.mxu0 0
        %4458 = vmatpush1.bf16.msra.mxu0 %v4262
        %4459 = vmatprep.subr.bf16.mxu0 0
        %4460 = vmatpush1.bf16.msra.mxu0 %v4263
        %4461 = vmatprep.subr.bf16.mxu0 0
        %4462 = vmatpush1.bf16.msra.mxu0 %v4264
        %4463 = vmatprep.subr.bf16.mxu0 0
        %4464 = vmatpush1.bf16.msra.mxu0 %v4265
        %4465 = vmatprep.subr.bf16.mxu0 0
        %4466 = vmatpush1.bf16.msra.mxu0 %v4266
        %4467 = vmatprep.subr.bf16.mxu0 0
        %4468 = vmatpush1.bf16.msra.mxu0 %v4267
        %4469 = vmatprep.subr.bf16.mxu0 0
        %4470 = vmatpush1.bf16.msra.mxu0 0
        %4471 = vmatprep.subr.bf16.mxu0 0
        %4472 = vmatpush1.bf16.msra.mxu0 0
        %4473 = vmatprep.subr.bf16.mxu0 0
        %4474 = vmatpush1.bf16.msra.mxu0 0
        %4475 = vmatprep.subr.bf16.mxu0 0
        %4476 = vmatpush1.bf16.msra.mxu0 0
        %4477 = vmatprep.subr.bf16.mxu0 0
        %4478 = vmatpush1.bf16.msra.mxu0 0
        %4479 = vmatprep.subr.bf16.mxu0 0
        %4480 = vmatpush1.bf16.msra.mxu0 0
        %4481 = vmatprep.subr.bf16.mxu0 0
        %4482 = vmatpush1.bf16.msra.mxu0 0
        %4483 = vmatprep.subr.bf16.mxu0 0
        %4484 = vmatpush1.bf16.msra.mxu0 0
        %4485 = vmatprep.mubr.bf16.mxu0 0
        %4486 = vmatmul.mubr.bf16.gmra.mrb[0].mxu0 %v3515
        %v4487 = vpop.f32.mrb[0].mxu0
        %v4488 = vadd.f32 %v4327, %v4487
        %v4489 = vpop.f32.mrb[0].mxu0
        %v4490 = vpop.f32.mrb[0].mxu0
        %v4491 = vadd.f32 %v4330, %v4490
        %v4492 = vpop.f32.mrb[0].mxu0
        %4493 = vmatprep.mubr.bf16.mxu0 0
        %4494 = vmatmul.mubr.bf16.gmra.mrb[0].mxu0 %v3518
        %v4495 = vpop.f32.mrb[0].mxu0
        %v4496 = vadd.f32 %v4335, %v4495
        %v4497 = vpop.f32.mrb[0].mxu0
        %v4498 = vpop.f32.mrb[0].mxu0
        %v4499 = vadd.f32 %v4338, %v4498
        %v4500 = vpop.f32.mrb[0].mxu0
        %4501 = vmatprep.mubr.bf16.mxu0 0
        %4502 = vmatmul.mubr.bf16.gmra.mrb[0].mxu0 %v3521
        %v4503 = vpop.f32.mrb[0].mxu0
        %v4504 = vadd.f32 %v4343, %v4503
        %v4505 = vpop.f32.mrb[0].mxu0
        %v4506 = vpop.f32.mrb[0].mxu0
        %v4507 = vadd.f32 %v4346, %v4506
        %v4508 = vpop.f32.mrb[0].mxu0
        %4509 = vmatprep.mubr.bf16.mxu0 0
        %4510 = vmatmul.mubr.bf16.gmra.mrb[0].mxu0 %v3524
        %v4511 = vpop.f32.mrb[0].mxu0
        %v4512 = vadd.f32 %v4351, %v4511
        %v4513 = vpop.f32.mrb[0].mxu0
        %v4514 = vpop.f32.mrb[0].mxu0
        %v4515 = vadd.f32 %v4354, %v4514
        %v4516 = vpop.f32.mrb[0].mxu0
        %4517 = vmatprep.mubr.bf16.mxu0 0
        %4518 = vmatmul.mubr.bf16.gmra.mrb[0].mxu0 %v3527
        %v4519 = vpop.f32.mrb[0].mxu0
        %v4520 = vadd.f32 %v4359, %v4519
        %v4521 = vpop.f32.mrb[0].mxu0
        %v4522 = vpop.f32.mrb[0].mxu0
        %v4523 = vadd.f32 %v4362, %v4522
        %v4524 = vpop.f32.mrb[0].mxu0
        %4525 = vmatprep.mubr.bf16.mxu0 0
        %4526 = vmatmul.mubr.bf16.gmra.mrb[0].mxu0 %v3530
        %v4527 = vpop.f32.mrb[0].mxu0
        %v4528 = vadd.f32 %v4367, %v4527
        %v4529 = vpop.f32.mrb[0].mxu0
        %v4530 = vpop.f32.mrb[0].mxu0
        %v4531 = vadd.f32 %v4370, %v4530
        %v4532 = vpop.f32.mrb[0].mxu0
        %4533 = vmatprep.mubr.bf16.mxu0 0
        %4534 = vmatmul.mubr.bf16.gmra.mrb[0].mxu0 %v3533
        %v4535 = vpop.f32.mrb[0].mxu0
        %v4536 = vadd.f32 %v4375, %v4535
        %v4537 = vpop.f32.mrb[0].mxu0
        %v4538 = vpop.f32.mrb[0].mxu0
        %v4539 = vadd.f32 %v4378, %v4538
        %v4540 = vpop.f32.mrb[0].mxu0
        %4541 = vmatprep.mubr.bf16.mxu0 0
        %4542 = vmatmul.mubr.bf16.gmra.mrb[0].mxu0 %v3536
        %v4543 = vpop.f32.mrb[0].mxu0
        %v4544 = vadd.f32 %v4383, %v4543
        %v4545 = vpop.f32.mrb[0].mxu0
        %v4546 = vpop.f32.mrb[0].mxu0
        %v4547 = vadd.f32 %v4386, %v4546
        %v4548 = vpop.f32.mrb[0].mxu0
        %4549 = vmatprep.mubr.bf16.mxu0 0
        %4550 = vmatmul.mubr.bf16.gmra.mrb[0].mxu0 %v3539
        %v4551 = vpop.f32.mrb[0].mxu0
        %v4552 = vadd.f32 %v4391, %v4551
        %v4553 = vpop.f32.mrb[0].mxu0
        %v4554 = vpop.f32.mrb[0].mxu0
        %v4555 = vadd.f32 %v4394, %v4554
        %v4556 = vpop.f32.mrb[0].mxu0
        %4557 = vmatprep.mubr.bf16.mxu0 0
        %4558 = vmatmul.mubr.bf16.gmra.mrb[0].mxu0 %v3542
        %v4559 = vpop.f32.mrb[0].mxu0
        %v4560 = vadd.f32 %v4399, %v4559
        %v4561 = vpop.f32.mrb[0].mxu0
        %v4562 = vpop.f32.mrb[0].mxu0
        %v4563 = vadd.f32 %v4402, %v4562
        %v4564 = vpop.f32.mrb[0].mxu0
        %4565 = vmatprep.mubr.bf16.mxu0 0
        %4566 = vmatmul.mubr.bf16.gmra.mrb[0].mxu0 %v3545
        %v4567 = vpop.f32.mrb[0].mxu0
        %v4568 = vadd.f32 %v4407, %v4567
        %v4569 = vpop.f32.mrb[0].mxu0
        %v4570 = vpop.f32.mrb[0].mxu0
        %v4571 = vadd.f32 %v4410, %v4570
        %v4572 = vpop.f32.mrb[0].mxu0
        %4573 = vmatprep.mubr.bf16.mxu0 0
        %4574 = vmatmul.mubr.bf16.gmra.mrb[0].mxu0 %v3548
        %v4575 = vpop.f32.mrb[0].mxu0
        %v4576 = vadd.f32 %v4415, %v4575
        %v4577 = vpop.f32.mrb[0].mxu0
        %v4578 = vpop.f32.mrb[0].mxu0
        %v4579 = vadd.f32 %v4418, %v4578
        %v4580 = vpop.f32.mrb[0].mxu0
        %4581 = vmatprep.mubr.bf16.mxu0 0
        %4582 = vmatmul.mubr.bf16.gmra.mrb[0].mxu0 %v3551
        %v4583 = vpop.f32.mrb[0].mxu0
        %v4584 = vadd.f32 %v4423, %v4583
        %v4585 = vpop.f32.mrb[0].mxu0
        %v4586 = vpop.f32.mrb[0].mxu0
        %v4587 = vadd.f32 %v4426, %v4586
        %v4588 = vpop.f32.mrb[0].mxu0
        %4589 = vmatprep.mubr.bf16.mxu0 0
        %4590 = vmatmul.mubr.bf16.gmra.mrb[0].mxu0 %v3554
        %v4591 = vpop.f32.mrb[0].mxu0
        %v4592 = vadd.f32 %v4431, %v4591
        %v4593 = vpop.f32.mrb[0].mxu0
        %v4594 = vpop.f32.mrb[0].mxu0
        %v4595 = vadd.f32 %v4434, %v4594
        %v4596 = vpop.f32.mrb[0].mxu0
        %4597 = vmatprep.mubr.bf16.mxu0 0
        %4598 = vmatmul.mubr.bf16.gmra.mrb[0].mxu0 %v3557
        %v4599 = vpop.f32.mrb[0].mxu0
        %v4600 = vadd.f32 %v4439, %v4599
        %v4601 = vpop.f32.mrb[0].mxu0
        %v4602 = vpop.f32.mrb[0].mxu0
        %v4603 = vadd.f32 %v4442, %v4602
        %v4604 = vpop.f32.mrb[0].mxu0
        %4605 = vmatprep.mubr.bf16.mxu0 0
        %4606 = vmatmul.mubr.bf16.gmra.mrb[0].mxu0 %v3560
        %v4607 = vpop.f32.mrb[0].mxu0
        %v4608 = vadd.f32 %v4447, %v4607
        %v4609 = vpop.f32.mrb[0].mxu0
        %v4610 = vpop.f32.mrb[0].mxu0
        %v4611 = vadd.f32 %v4450, %v4610
        %v4612 = vpop.f32.mrb[0].mxu0
        %4613 = vdwg.mxu0
        %s4614 = scalar_lea.vmem [#allocation3], 384
        %v4615 = vld [vmem:[%s4614] sm:$0xf]
        %v4616 = vld [vmem:[%s4614 + $0x4] sm:$0xf]
        %v4617 = vld [vmem:[%s4614 + $0x8] sm:$0xf]
        %v4618 = vld [vmem:[%s4614 + $0xc] sm:$0xf]
        %v4619 = vld [vmem:[%s4614 + $0x10] sm:$0xf]
        %v4620 = vld [vmem:[%s4614 + $0x14] sm:$0xf]
        %v4621 = vld [vmem:[%s4614 + $0x18] sm:$0xf]
        %v4622 = vld [vmem:[%s4614 + $0x1c] sm:$0xf]
        %v4623 = vld [vmem:[%s4614 + $0x20] sm:$0xf]
        %v4624 = vld [vmem:[%s4614 + $0x24] sm:$0xf]
        %v4625 = vld [vmem:[%s4614 + $0x28] sm:$0xf]
        %v4626 = vld [vmem:[%s4614 + $0x2c] sm:$0xf]
        %v4627 = vld [vmem:[%s4614 + $0x30] sm:$0xf]
        %v4628 = vld [vmem:[%s4614 + $0x34] sm:$0xf]
        %v4629 = vld [vmem:[%s4614 + $0x38] sm:$0xf]
        %v4630 = vld [vmem:[%s4614 + $0x3c] sm:$0xf]
        %v4631 = vld [vmem:[%s4614 + $0x40] sm:$0xf]
        %v4632 = vld [vmem:[%s4614 + $0x44] sm:$0xf]
        %v4633 = vld [vmem:[%s4614 + $0x48] sm:$0xf]
        %v4634 = vld [vmem:[%s4614 + $0x4c] sm:$0xf]
        %v4635 = vld [vmem:[%s4614 + $0x50] sm:$0xf]
        %v4636 = vld [vmem:[%s4614 + $0x54] sm:$0xf]
        %v4637 = vld [vmem:[%s4614 + $0x58] sm:$0xf]
        %v4638 = vld [vmem:[%s4614 + $0x5c] sm:$0xf]
        %v4639 = vld [vmem:[%s4614 + $0x60] sm:$0xf]
        %v4640 = vld [vmem:[%s4614 + $0x64] sm:$0xf]
        %v4641 = vld [vmem:[%s4614 + $0x68] sm:$0xf]
        %v4642 = vld [vmem:[%s4614 + $0x6c] sm:$0xf]
        %v4643 = vld [vmem:[%s4614 + $0x70] sm:$0xf]
        %v4644 = vld [vmem:[%s4614 + $0x74] sm:$0xf]
        %v4645 = vld [vmem:[%s4614 + $0x78] sm:$0xf]
        %v4646 = vld [vmem:[%s4614 + $0x7c] sm:$0xf]
        %v4647 = vld [vmem:[%s4614 + $0x80] sm:$0xf]
        %v4648 = vld [vmem:[%s4614 + $0x84] sm:$0xf]
        %v4649 = vld [vmem:[%s4614 + $0x88] sm:$0xf]
        %v4650 = vld [vmem:[%s4614 + $0x8c] sm:$0xf]
        %v4651 = vld [vmem:[%s4614 + $0x90] sm:$0xf]
        %v4652 = vld [vmem:[%s4614 + $0x94] sm:$0xf]
        %v4653 = vld [vmem:[%s4614 + $0x98] sm:$0xf]
        %v4654 = vld [vmem:[%s4614 + $0x9c] sm:$0xf]
        %v4655 = vld [vmem:[%s4614 + $0xa0] sm:$0xf]
        %v4656 = vld [vmem:[%s4614 + $0xa4] sm:$0xf]
        %v4657 = vld [vmem:[%s4614 + $0xa8] sm:$0xf]
        %v4658 = vld [vmem:[%s4614 + $0xac] sm:$0xf]
        %v4659 = vld [vmem:[%s4614 + $0xb0] sm:$0xf]
        %v4660 = vld [vmem:[%s4614 + $0xb4] sm:$0xf]
        %v4661 = vld [vmem:[%s4614 + $0xb8] sm:$0xf]
        %v4662 = vld [vmem:[%s4614 + $0xbc] sm:$0xf]
        %v4711 = vunpack.c.l.b16 %v4615
        %v4712 = vunpack.c.l.b16 %v4616
        %v4713 = vunpack.c.l.b16 %v4617
        %v4714 = vunpack.c.l.b16 %v4618
        %v4715 = vunpack.c.l.b16 %v4619
        %v4716 = vunpack.c.l.b16 %v4620
        %v4717 = vunpack.c.l.b16 %v4621
        %v4718 = vunpack.c.l.b16 %v4622
        %v4719 = vunpack.c.l.b16 %v4623
        %v4720 = vunpack.c.l.b16 %v4624
        %v4721 = vunpack.c.l.b16 %v4625
        %v4722 = vunpack.c.l.b16 %v4626
        %v4723 = vunpack.c.l.b16 %v4627
        %v4724 = vunpack.c.l.b16 %v4628
        %v4725 = vunpack.c.l.b16 %v4629
        %v4726 = vunpack.c.l.b16 %v4630
        %v4727 = vunpack.c.l.b16 %v4631
        %v4728 = vunpack.c.l.b16 %v4632
        %v4729 = vunpack.c.l.b16 %v4633
        %v4730 = vunpack.c.l.b16 %v4634
        %v4731 = vunpack.c.l.b16 %v4635
        %v4732 = vunpack.c.l.b16 %v4636
        %v4733 = vunpack.c.l.b16 %v4637
        %v4734 = vunpack.c.l.b16 %v4638
        %v4735 = vunpack.c.l.b16 %v4639
        %v4736 = vunpack.c.l.b16 %v4640
        %v4737 = vunpack.c.l.b16 %v4641
        %v4738 = vunpack.c.l.b16 %v4642
        %v4739 = vunpack.c.l.b16 %v4643
        %v4740 = vunpack.c.l.b16 %v4644
        %v4741 = vunpack.c.l.b16 %v4645
        %v4742 = vunpack.c.l.b16 %v4646
        %v4743 = vunpack.c.l.b16 %v4647
        %v4744 = vunpack.c.l.b16 %v4648
        %v4745 = vunpack.c.l.b16 %v4649
        %v4746 = vunpack.c.l.b16 %v4650
        %v4747 = vunpack.c.l.b16 %v4651
        %v4748 = vunpack.c.l.b16 %v4652
        %v4749 = vunpack.c.l.b16 %v4653
        %v4750 = vunpack.c.l.b16 %v4654
        %v4751 = vunpack.c.l.b16 %v4655
        %v4752 = vunpack.c.l.b16 %v4656
        %v4753 = vunpack.c.l.b16 %v4657
        %v4754 = vunpack.c.l.b16 %v4658
        %v4755 = vunpack.c.l.b16 %v4659
        %v4756 = vunpack.c.l.b16 %v4660
        %v4757 = vunpack.c.l.b16 %v4661
        %v4758 = vunpack.c.l.b16 %v4662
        %v4759 = vpack.c.b16 %v4712, %v4711
        %v4760 = vpack.c.b16 %v4714, %v4713
        %v4761 = vpack.c.b16 %v4716, %v4715
        %v4762 = vpack.c.b16 %v4718, %v4717
        %v4763 = vpack.c.b16 %v4720, %v4719
        %v4764 = vpack.c.b16 %v4722, %v4721
        %v4765 = vpack.c.b16 %v4724, %v4723
        %v4766 = vpack.c.b16 %v4726, %v4725
        %v4767 = vpack.c.b16 %v4728, %v4727
        %v4768 = vpack.c.b16 %v4730, %v4729
        %v4769 = vpack.c.b16 %v4732, %v4731
        %v4770 = vpack.c.b16 %v4734, %v4733
        %v4771 = vpack.c.b16 %v4736, %v4735
        %v4772 = vpack.c.b16 %v4738, %v4737
        %v4773 = vpack.c.b16 %v4740, %v4739
        %v4774 = vpack.c.b16 %v4742, %v4741
        %v4775 = vpack.c.b16 %v4744, %v4743
        %v4776 = vpack.c.b16 %v4746, %v4745
        %v4777 = vpack.c.b16 %v4748, %v4747
        %v4778 = vpack.c.b16 %v4750, %v4749
        %v4779 = vpack.c.b16 %v4752, %v4751
        %v4780 = vpack.c.b16 %v4754, %v4753
        %v4781 = vpack.c.b16 %v4756, %v4755
        %v4782 = vpack.c.b16 %v4758, %v4757
        %4807 = vmatprep.subr.bf16.mxu0 0
        %4808 = vmatpush1.bf16.msra.mxu0 %v4759
        %4809 = vmatprep.subr.bf16.mxu0 0
        %4810 = vmatpush1.bf16.msra.mxu0 %v4760
        %4811 = vmatprep.subr.bf16.mxu0 0
        %4812 = vmatpush1.bf16.msra.mxu0 %v4761
        %4813 = vmatprep.subr.bf16.mxu0 0
        %4814 = vmatpush1.bf16.msra.mxu0 %v4762
        %4815 = vmatprep.subr.bf16.mxu0 0
        %4816 = vmatpush1.bf16.msra.mxu0 %v4763
        %4817 = vmatprep.subr.bf16.mxu0 0
        %4818 = vmatpush1.bf16.msra.mxu0 %v4764
        %4819 = vmatprep.subr.bf16.mxu0 0
        %4820 = vmatpush1.bf16.msra.mxu0 %v4765
        %4821 = vmatprep.subr.bf16.mxu0 0
        %4822 = vmatpush1.bf16.msra.mxu0 %v4766
        %4823 = vmatprep.subr.bf16.mxu0 0
        %4824 = vmatpush1.bf16.msra.mxu0 %v4767
        %4825 = vmatprep.subr.bf16.mxu0 0
        %4826 = vmatpush1.bf16.msra.mxu0 %v4768
        %4827 = vmatprep.subr.bf16.mxu0 0
        %4828 = vmatpush1.bf16.msra.mxu0 %v4769
        %4829 = vmatprep.subr.bf16.mxu0 0
        %4830 = vmatpush1.bf16.msra.mxu0 %v4770
        %4831 = vmatprep.subr.bf16.mxu0 0
        %4832 = vmatpush1.bf16.msra.mxu0 %v4771
        %4833 = vmatprep.subr.bf16.mxu0 0
        %4834 = vmatpush1.bf16.msra.mxu0 %v4772
        %4835 = vmatprep.subr.bf16.mxu0 0
        %4836 = vmatpush1.bf16.msra.mxu0 %v4773
        %4837 = vmatprep.subr.bf16.mxu0 0
        %4838 = vmatpush1.bf16.msra.mxu0 %v4774
        %4839 = vmatprep.mubr.bf16.mxu0 %v3314
        %4840 = vmatmul.mubr.bf16.gmra.mrb[0].mxu0 %v3191
        %v4841 = vpop.f32.mrb[0].mxu0
        %v4842 = vadd.f32 0.0, %v4841
        %v4843 = vpop.f32.mrb[0].mxu0
        %v4844 = vpop.f32.mrb[0].mxu0
        %v4845 = vadd.f32 0.0, %v4844
        %v4846 = vpop.f32.mrb[0].mxu0
        %4847 = vmatprep.mubr.bf16.mxu0 %v3326
        %4848 = vmatmul.mubr.bf16.gmra.mrb[0].mxu0 %v3192
        %v4849 = vpop.f32.mrb[0].mxu0
        %v4850 = vadd.f32 0.0, %v4849
        %v4851 = vpop.f32.mrb[0].mxu0
        %v4852 = vpop.f32.mrb[0].mxu0
        %v4853 = vadd.f32 0.0, %v4852
        %v4854 = vpop.f32.mrb[0].mxu0
        %4855 = vmatprep.mubr.bf16.mxu0 %v3338
        %4856 = vmatmul.mubr.bf16.gmra.mrb[0].mxu0 %v3193
        %v4857 = vpop.f32.mrb[0].mxu0
        %v4858 = vadd.f32 0.0, %v4857
        %v4859 = vpop.f32.mrb[0].mxu0
        %v4860 = vpop.f32.mrb[0].mxu0
        %v4861 = vadd.f32 0.0, %v4860
        %v4862 = vpop.f32.mrb[0].mxu0
        %4863 = vmatprep.mubr.bf16.mxu0 %v3350
        %4864 = vmatmul.mubr.bf16.gmra.mrb[0].mxu0 %v3194
        %v4865 = vpop.f32.mrb[0].mxu0
        %v4866 = vadd.f32 0.0, %v4865
        %v4867 = vpop.f32.mrb[0].mxu0
        %v4868 = vpop.f32.mrb[0].mxu0
        %v4869 = vadd.f32 0.0, %v4868
        %v4870 = vpop.f32.mrb[0].mxu0
        %4871 = vmatprep.mubr.bf16.mxu0 %v3362
        %4872 = vmatmul.mubr.bf16.gmra.mrb[0].mxu0 %v3195
        %v4873 = vpop.f32.mrb[0].mxu0
        %v4874 = vadd.f32 0.0, %v4873
        %v4875 = vpop.f32.mrb[0].mxu0
        %v4876 = vpop.f32.mrb[0].mxu0
        %v4877 = vadd.f32 0.0, %v4876
        %v4878 = vpop.f32.mrb[0].mxu0
        %4879 = vmatprep.mubr.bf16.mxu0 %v3374
        %4880 = vmatmul.mubr.bf16.gmra.mrb[0].mxu0 %v3196
        %v4881 = vpop.f32.mrb[0].mxu0
        %v4882 = vadd.f32 0.0, %v4881
        %v4883 = vpop.f32.mrb[0].mxu0
        %v4884 = vpop.f32.mrb[0].mxu0
        %v4885 = vadd.f32 0.0, %v4884
        %v4886 = vpop.f32.mrb[0].mxu0
        %4887 = vmatprep.mubr.bf16.mxu0 %v3386
        %4888 = vmatmul.mubr.bf16.gmra.mrb[0].mxu0 %v3197
        %v4889 = vpop.f32.mrb[0].mxu0
        %v4890 = vadd.f32 0.0, %v4889
        %v4891 = vpop.f32.mrb[0].mxu0
        %v4892 = vpop.f32.mrb[0].mxu0
        %v4893 = vadd.f32 0.0, %v4892
        %v4894 = vpop.f32.mrb[0].mxu0
        %4895 = vmatprep.mubr.bf16.mxu0 %v3398
        %4896 = vmatmul.mubr.bf16.gmra.mrb[0].mxu0 %v3198
        %v4897 = vpop.f32.mrb[0].mxu0
        %v4898 = vadd.f32 0.0, %v4897
        %v4899 = vpop.f32.mrb[0].mxu0
        %v4900 = vpop.f32.mrb[0].mxu0
        %v4901 = vadd.f32 0.0, %v4900
        %v4902 = vpop.f32.mrb[0].mxu0
        %4903 = vmatprep.mubr.bf16.mxu0 %v3410
        %4904 = vmatmul.mubr.bf16.gmra.mrb[0].mxu0 %v3199
        %v4905 = vpop.f32.mrb[0].mxu0
        %v4906 = vadd.f32 0.0, %v4905
        %v4907 = vpop.f32.mrb[0].mxu0
        %v4908 = vpop.f32.mrb[0].mxu0
        %v4909 = vadd.f32 0.0, %v4908
        %v4910 = vpop.f32.mrb[0].mxu0
        %4911 = vmatprep.mubr.bf16.mxu0 %v3422
        %4912 = vmatmul.mubr.bf16.gmra.mrb[0].mxu0 %v3200
        %v4913 = vpop.f32.mrb[0].mxu0
        %v4914 = vadd.f32 0.0, %v4913
        %v4915 = vpop.f32.mrb[0].mxu0
        %v4916 = vpop.f32.mrb[0].mxu0
        %v4917 = vadd.f32 0.0, %v4916
        %v4918 = vpop.f32.mrb[0].mxu0
        %4919 = vmatprep.mubr.bf16.mxu0 %v3434
        %4920 = vmatmul.mubr.bf16.gmra.mrb[0].mxu0 %v3201
        %v4921 = vpop.f32.mrb[0].mxu0
        %v4922 = vadd.f32 0.0, %v4921
        %v4923 = vpop.f32.mrb[0].mxu0
        %v4924 = vpop.f32.mrb[0].mxu0
        %v4925 = vadd.f32 0.0, %v4924
        %v4926 = vpop.f32.mrb[0].mxu0
        %4927 = vmatprep.mubr.bf16.mxu0 %v3446
        %4928 = vmatmul.mubr.bf16.gmra.mrb[0].mxu0 %v3202
        %v4929 = vpop.f32.mrb[0].mxu0
        %v4930 = vadd.f32 0.0, %v4929
        %v4931 = vpop.f32.mrb[0].mxu0
        %v4932 = vpop.f32.mrb[0].mxu0
        %v4933 = vadd.f32 0.0, %v4932
        %v4934 = vpop.f32.mrb[0].mxu0
        %4935 = vmatprep.mubr.bf16.mxu0 %v3458
        %4936 = vmatmul.mubr.bf16.gmra.mrb[0].mxu0 %v3203
        %v4937 = vpop.f32.mrb[0].mxu0
        %v4938 = vadd.f32 0.0, %v4937
        %v4939 = vpop.f32.mrb[0].mxu0
        %v4940 = vpop.f32.mrb[0].mxu0
        %v4941 = vadd.f32 0.0, %v4940
        %v4942 = vpop.f32.mrb[0].mxu0
        %4943 = vmatprep.mubr.bf16.mxu0 %v3470
        %4944 = vmatmul.mubr.bf16.gmra.mrb[0].mxu0 %v3204
        %v4945 = vpop.f32.mrb[0].mxu0
        %v4946 = vadd.f32 0.0, %v4945
        %v4947 = vpop.f32.mrb[0].mxu0
        %v4948 = vpop.f32.mrb[0].mxu0
        %v4949 = vadd.f32 0.0, %v4948
        %v4950 = vpop.f32.mrb[0].mxu0
        %4951 = vmatprep.mubr.bf16.mxu0 %v3482
        %4952 = vmatmul.mubr.bf16.gmra.mrb[0].mxu0 %v3205
        %v4953 = vpop.f32.mrb[0].mxu0
        %v4954 = vadd.f32 0.0, %v4953
        %v4955 = vpop.f32.mrb[0].mxu0
        %v4956 = vpop.f32.mrb[0].mxu0
        %v4957 = vadd.f32 0.0, %v4956
        %v4958 = vpop.f32.mrb[0].mxu0
        %4959 = vmatprep.mubr.bf16.mxu0 %v3494
        %4960 = vmatmul.mubr.bf16.gmra.mrb[0].mxu0 %v3206
        %v4961 = vpop.f32.mrb[0].mxu0
        %v4962 = vadd.f32 0.0, %v4961
        %v4963 = vpop.f32.mrb[0].mxu0
        %v4964 = vpop.f32.mrb[0].mxu0
        %v4965 = vadd.f32 0.0, %v4964
        %v4966 = vpop.f32.mrb[0].mxu0
        %4967 = vdwg.mxu0
        %4968 = vmatprep.subr.bf16.mxu0 0
        %4969 = vmatpush1.bf16.msra.mxu0 %v4775
        %4970 = vmatprep.subr.bf16.mxu0 0
        %4971 = vmatpush1.bf16.msra.mxu0 %v4776
        %4972 = vmatprep.subr.bf16.mxu0 0
        %4973 = vmatpush1.bf16.msra.mxu0 %v4777
        %4974 = vmatprep.subr.bf16.mxu0 0
        %4975 = vmatpush1.bf16.msra.mxu0 %v4778
        %4976 = vmatprep.subr.bf16.mxu0 0
        %4977 = vmatpush1.bf16.msra.mxu0 %v4779
        %4978 = vmatprep.subr.bf16.mxu0 0
        %4979 = vmatpush1.bf16.msra.mxu0 %v4780
        %4980 = vmatprep.subr.bf16.mxu0 0
        %4981 = vmatpush1.bf16.msra.mxu0 %v4781
        %4982 = vmatprep.subr.bf16.mxu0 0
        %4983 = vmatpush1.bf16.msra.mxu0 %v4782
        %4984 = vmatprep.subr.bf16.mxu0 0
        %4985 = vmatpush1.bf16.msra.mxu0 0
        %4986 = vmatprep.subr.bf16.mxu0 0
        %4987 = vmatpush1.bf16.msra.mxu0 0
        %4988 = vmatprep.subr.bf16.mxu0 0
        %4989 = vmatpush1.bf16.msra.mxu0 0
        %4990 = vmatprep.subr.bf16.mxu0 0
        %4991 = vmatpush1.bf16.msra.mxu0 0
        %4992 = vmatprep.subr.bf16.mxu0 0
        %4993 = vmatpush1.bf16.msra.mxu0 0
        %4994 = vmatprep.subr.bf16.mxu0 0
        %4995 = vmatpush1.bf16.msra.mxu0 0
        %4996 = vmatprep.subr.bf16.mxu0 0
        %4997 = vmatpush1.bf16.msra.mxu0 0
        %4998 = vmatprep.subr.bf16.mxu0 0
        %4999 = vmatpush1.bf16.msra.mxu0 0
        %5000 = vmatprep.mubr.bf16.mxu0 0
        %5001 = vmatmul.mubr.bf16.gmra.mrb[0].mxu0 %v3521
        %v5002 = vpop.f32.mrb[0].mxu0
        %v5003 = vadd.f32 %v4842, %v5002
        %v5004 = vpop.f32.mrb[0].mxu0
        %v5005 = vpop.f32.mrb[0].mxu0
        %v5006 = vadd.f32 %v4845, %v5005
        %v5007 = vpop.f32.mrb[0].mxu0
        %5008 = vmatprep.mubr.bf16.mxu0 0
        %5009 = vmatmul.mubr.bf16.gmra.mrb[0].mxu0 %v3524
        %v5010 = vpop.f32.mrb[0].mxu0
        %v5011 = vadd.f32 %v4850, %v5010
        %v5012 = vpop.f32.mrb[0].mxu0
        %v5013 = vpop.f32.mrb[0].mxu0
        %v5014 = vadd.f32 %v4853, %v5013
        %v5015 = vpop.f32.mrb[0].mxu0
        %5016 = vmatprep.mubr.bf16.mxu0 0
        %5017 = vmatmul.mubr.bf16.gmra.mrb[0].mxu0 %v3527
        %v5018 = vpop.f32.mrb[0].mxu0
        %v5019 = vadd.f32 %v4858, %v5018
        %v5020 = vpop.f32.mrb[0].mxu0
        %v5021 = vpop.f32.mrb[0].mxu0
        %v5022 = vadd.f32 %v4861, %v5021
        %v5023 = vpop.f32.mrb[0].mxu0
        %5024 = vmatprep.mubr.bf16.mxu0 0
        %5025 = vmatmul.mubr.bf16.gmra.mrb[0].mxu0 %v3530
        %v5026 = vpop.f32.mrb[0].mxu0
        %v5027 = vadd.f32 %v4866, %v5026
        %v5028 = vpop.f32.mrb[0].mxu0
        %v5029 = vpop.f32.mrb[0].mxu0
        %v5030 = vadd.f32 %v4869, %v5029
        %v5031 = vpop.f32.mrb[0].mxu0
        %5032 = vmatprep.mubr.bf16.mxu0 0
        %5033 = vmatmul.mubr.bf16.gmra.mrb[0].mxu0 %v3533
        %v5034 = vpop.f32.mrb[0].mxu0
        %v5035 = vadd.f32 %v4874, %v5034
        %v5036 = vpop.f32.mrb[0].mxu0
        %v5037 = vpop.f32.mrb[0].mxu0
        %v5038 = vadd.f32 %v4877, %v5037
        %v5039 = vpop.f32.mrb[0].mxu0
        %5040 = vmatprep.mubr.bf16.mxu0 0
        %5041 = vmatmul.mubr.bf16.gmra.mrb[0].mxu0 %v3536
        %v5042 = vpop.f32.mrb[0].mxu0
        %v5043 = vadd.f32 %v4882, %v5042
        %v5044 = vpop.f32.mrb[0].mxu0
        %v5045 = vpop.f32.mrb[0].mxu0
        %v5046 = vadd.f32 %v4885, %v5045
        %v5047 = vpop.f32.mrb[0].mxu0
        %5048 = vmatprep.mubr.bf16.mxu0 0
        %5049 = vmatmul.mubr.bf16.gmra.mrb[0].mxu0 %v3539
        %v5050 = vpop.f32.mrb[0].mxu0
        %v5051 = vadd.f32 %v4890, %v5050
        %v5052 = vpop.f32.mrb[0].mxu0
        %v5053 = vpop.f32.mrb[0].mxu0
        %v5054 = vadd.f32 %v4893, %v5053
        %v5055 = vpop.f32.mrb[0].mxu0
        %5056 = vmatprep.mubr.bf16.mxu0 0
        %5057 = vmatmul.mubr.bf16.gmra.mrb[0].mxu0 %v3542
        %v5058 = vpop.f32.mrb[0].mxu0
        %v5059 = vadd.f32 %v4898, %v5058
        %v5060 = vpop.f32.mrb[0].mxu0
        %v5061 = vpop.f32.mrb[0].mxu0
        %v5062 = vadd.f32 %v4901, %v5061
        %v5063 = vpop.f32.mrb[0].mxu0
        %5064 = vmatprep.mubr.bf16.mxu0 0
        %5065 = vmatmul.mubr.bf16.gmra.mrb[0].mxu0 %v3545
        %v5066 = vpop.f32.mrb[0].mxu0
        %v5067 = vadd.f32 %v4906, %v5066
        %v5068 = vpop.f32.mrb[0].mxu0
        %v5069 = vpop.f32.mrb[0].mxu0
        %v5070 = vadd.f32 %v4909, %v5069
        %v5071 = vpop.f32.mrb[0].mxu0
        %5072 = vmatprep.mubr.bf16.mxu0 0
        %5073 = vmatmul.mubr.bf16.gmra.mrb[0].mxu0 %v3548
        %v5074 = vpop.f32.mrb[0].mxu0
        %v5075 = vadd.f32 %v4914, %v5074
        %v5076 = vpop.f32.mrb[0].mxu0
        %v5077 = vpop.f32.mrb[0].mxu0
        %v5078 = vadd.f32 %v4917, %v5077
        %v5079 = vpop.f32.mrb[0].mxu0
        %5080 = vmatprep.mubr.bf16.mxu0 0
        %5081 = vmatmul.mubr.bf16.gmra.mrb[0].mxu0 %v3551
        %v5082 = vpop.f32.mrb[0].mxu0
        %v5083 = vadd.f32 %v4922, %v5082
        %v5084 = vpop.f32.mrb[0].mxu0
        %v5085 = vpop.f32.mrb[0].mxu0
        %v5086 = vadd.f32 %v4925, %v5085
        %v5087 = vpop.f32.mrb[0].mxu0
        %5088 = vmatprep.mubr.bf16.mxu0 0
        %5089 = vmatmul.mubr.bf16.gmra.mrb[0].mxu0 %v3554
        %v5090 = vpop.f32.mrb[0].mxu0
        %v5091 = vadd.f32 %v4930, %v5090
        %v5092 = vpop.f32.mrb[0].mxu0
        %v5093 = vpop.f32.mrb[0].mxu0
        %v5094 = vadd.f32 %v4933, %v5093
        %v5095 = vpop.f32.mrb[0].mxu0
        %5096 = vmatprep.mubr.bf16.mxu0 0
        %5097 = vmatmul.mubr.bf16.gmra.mrb[0].mxu0 %v3557
        %v5098 = vpop.f32.mrb[0].mxu0
        %v5099 = vadd.f32 %v4938, %v5098
        %v5100 = vpop.f32.mrb[0].mxu0
        %v5101 = vpop.f32.mrb[0].mxu0
        %v5102 = vadd.f32 %v4941, %v5101
        %v5103 = vpop.f32.mrb[0].mxu0
        %5104 = vmatprep.mubr.bf16.mxu0 0
        %5105 = vmatmul.mubr.bf16.gmra.mrb[0].mxu0 %v3560
        %v5106 = vpop.f32.mrb[0].mxu0
        %v5107 = vadd.f32 %v4946, %v5106
        %v5108 = vpop.f32.mrb[0].mxu0
        %v5109 = vpop.f32.mrb[0].mxu0
        %v5110 = vadd.f32 %v4949, %v5109
        %v5111 = vpop.f32.mrb[0].mxu0
        %5112 = vmatprep.mubr.bf16.mxu0 0
        %5113 = vmatmul.mubr.bf16.gmra.mrb[0].mxu0 %v3563
        %v5114 = vpop.f32.mrb[0].mxu0
        %v5115 = vadd.f32 %v4954, %v5114
        %v5116 = vpop.f32.mrb[0].mxu0
        %v5117 = vpop.f32.mrb[0].mxu0
        %v5118 = vadd.f32 %v4957, %v5117
        %v5119 = vpop.f32.mrb[0].mxu0
        %5120 = vmatprep.mubr.bf16.mxu0 0
        %5121 = vmatmul.mubr.bf16.gmra.mrb[0].mxu0 %v3566
        %v5122 = vpop.f32.mrb[0].mxu0
        %v5123 = vadd.f32 %v4962, %v5122
        %v5124 = vpop.f32.mrb[0].mxu0
        %v5125 = vpop.f32.mrb[0].mxu0
        %v5126 = vadd.f32 %v4965, %v5125
        %v5127 = vpop.f32.mrb[0].mxu0
        %5128 = vdwg.mxu0
        %v5129 = vadd.f32 %v4488, %v5003
        %v5130 = vadd.f32 %v4491, %v5006
        %v5131 = vadd.f32 %v4496, %v5011
        %v5132 = vadd.f32 %v4499, %v5014
        %v5133 = vadd.f32 %v4504, %v5019
        %v5134 = vadd.f32 %v4507, %v5022
        %v5135 = vadd.f32 %v4512, %v5027
        %v5136 = vadd.f32 %v4515, %v5030
        %v5137 = vadd.f32 %v4520, %v5035
        %v5138 = vadd.f32 %v4523, %v5038
        %v5139 = vadd.f32 %v4528, %v5043
        %v5140 = vadd.f32 %v4531, %v5046
        %v5141 = vadd.f32 %v4536, %v5051
        %v5142 = vadd.f32 %v4539, %v5054
        %v5143 = vadd.f32 %v4544, %v5059
        %v5144 = vadd.f32 %v4547, %v5062
        %v5145 = vadd.f32 %v4552, %v5067
        %v5146 = vadd.f32 %v4555, %v5070
        %v5147 = vadd.f32 %v4560, %v5075
        %v5148 = vadd.f32 %v4563, %v5078
        %v5149 = vadd.f32 %v4568, %v5083
        %v5150 = vadd.f32 %v4571, %v5086
        %v5151 = vadd.f32 %v4576, %v5091
        %v5152 = vadd.f32 %v4579, %v5094
        %v5153 = vadd.f32 %v4584, %v5099
        %v5154 = vadd.f32 %v4587, %v5102
        %v5155 = vadd.f32 %v4592, %v5107
        %v5156 = vadd.f32 %v4595, %v5110
        %v5157 = vadd.f32 %v4600, %v5115
        %v5158 = vadd.f32 %v4603, %v5118
        %v5159 = vadd.f32 %v4608, %v5123
        %v5160 = vadd.f32 %v4611, %v5126
        %v5161 = vld [vmem:[%s4] sm:$0x1]
        %v5163 = vlaneseq
        %v5164 = vshrl.u32 %v5163, 7
        %v5165 = vsub.s32 0, %v5164
        %v5166 = vrot.slane %v5161, %v5165
        %v5168 = vadd.f32 %v5129, %v5166
        %v5169 = vadd.f32 %v5130, %v5166
        %v5170 = vadd.f32 %v5131, %v5166
        %v5171 = vadd.f32 %v5132, %v5166
        %v5172 = vadd.f32 %v5133, %v5166
        %v5173 = vadd.f32 %v5134, %v5166
        %v5174 = vadd.f32 %v5135, %v5166
        %v5175 = vadd.f32 %v5136, %v5166
        %v5176 = vadd.f32 %v5137, %v5166
        %v5177 = vadd.f32 %v5138, %v5166
        %v5178 = vadd.f32 %v5139, %v5166
        %v5179 = vadd.f32 %v5140, %v5166
        %v5180 = vadd.f32 %v5141, %v5166
        %v5181 = vadd.f32 %v5142, %v5166
        %v5182 = vadd.f32 %v5143, %v5166
        %v5183 = vadd.f32 %v5144, %v5166
        %v5184 = vadd.f32 %v5145, %v5166
        %v5185 = vadd.f32 %v5146, %v5166
        %v5186 = vadd.f32 %v5147, %v5166
        %v5187 = vadd.f32 %v5148, %v5166
        %v5188 = vadd.f32 %v5149, %v5166
        %v5189 = vadd.f32 %v5150, %v5166
        %v5190 = vadd.f32 %v5151, %v5166
        %v5191 = vadd.f32 %v5152, %v5166
        %v5192 = vadd.f32 %v5153, %v5166
        %v5193 = vadd.f32 %v5154, %v5166
        %v5194 = vadd.f32 %v5155, %v5166
        %v5195 = vadd.f32 %v5156, %v5166
        %v5196 = vadd.f32 %v5157, %v5166
        %v5197 = vadd.f32 %v5158, %v5166
        %v5198 = vadd.f32 %v5159, %v5166
        %v5199 = vadd.f32 %v5160, %v5166
        %v5200 = vmax.f32 %v5168, 0.0
        %v5201 = vmax.f32 %v5169, 0.0
        %v5202 = vmax.f32 %v5170, 0.0
        %v5203 = vmax.f32 %v5171, 0.0
        %v5204 = vmax.f32 %v5172, 0.0
        %v5205 = vmax.f32 %v5173, 0.0
        %v5206 = vmax.f32 %v5174, 0.0
        %v5207 = vmax.f32 %v5175, 0.0
        %v5208 = vmax.f32 %v5176, 0.0
        %v5209 = vmax.f32 %v5177, 0.0
        %v5210 = vmax.f32 %v5178, 0.0
        %v5211 = vmax.f32 %v5179, 0.0
        %v5212 = vmax.f32 %v5180, 0.0
        %v5213 = vmax.f32 %v5181, 0.0
        %v5214 = vmax.f32 %v5182, 0.0
        %v5215 = vmax.f32 %v5183, 0.0
        %v5216 = vmax.f32 %v5184, 0.0
        %v5217 = vmax.f32 %v5185, 0.0
        %v5218 = vmax.f32 %v5186, 0.0
        %v5219 = vmax.f32 %v5187, 0.0
        %v5220 = vmax.f32 %v5188, 0.0
        %v5221 = vmax.f32 %v5189, 0.0
        %v5222 = vmax.f32 %v5190, 0.0
        %v5223 = vmax.f32 %v5191, 0.0
        %v5224 = vmax.f32 %v5192, 0.0
        %v5225 = vmax.f32 %v5193, 0.0
        %v5226 = vmax.f32 %v5194, 0.0
        %v5227 = vmax.f32 %v5195, 0.0
        %v5228 = vmax.f32 %v5196, 0.0
        %v5229 = vmax.f32 %v5197, 0.0
        %v5230 = vmax.f32 %v5198, 0.0
        %v5231 = vmax.f32 %v5199, 0.0
        %5232 = vst [vmem:[%s232] sm:$0xff] %v5200
        %5233 = vst [vmem:[%s232 + $0x8] sm:$0xff] %v5201
        %5234 = vst [vmem:[%s232 + $0x10] sm:$0xff] %v5202
        %5235 = vst [vmem:[%s232 + $0x18] sm:$0xff] %v5203
        %5236 = vst [vmem:[%s232 + $0x20] sm:$0xff] %v5204
        %5237 = vst [vmem:[%s232 + $0x28] sm:$0xff] %v5205
        %5238 = vst [vmem:[%s232 + $0x30] sm:$0xff] %v5206
        %5239 = vst [vmem:[%s232 + $0x38] sm:$0xff] %v5207
        %5240 = vst [vmem:[%s232 + $0x40] sm:$0xff] %v5208
        %5241 = vst [vmem:[%s232 + $0x48] sm:$0xff] %v5209
        %5242 = vst [vmem:[%s232 + $0x50] sm:$0xff] %v5210
        %5243 = vst [vmem:[%s232 + $0x58] sm:$0xff] %v5211
        %5244 = vst [vmem:[%s232 + $0x60] sm:$0xff] %v5212
        %5245 = vst [vmem:[%s232 + $0x68] sm:$0xff] %v5213
        %5246 = vst [vmem:[%s232 + $0x70] sm:$0xff] %v5214
        %5247 = vst [vmem:[%s232 + $0x78] sm:$0xff] %v5215
        %5248 = vst [vmem:[%s232 + $0x80] sm:$0xff] %v5216
        %5249 = vst [vmem:[%s232 + $0x88] sm:$0xff] %v5217
        %5250 = vst [vmem:[%s232 + $0x90] sm:$0xff] %v5218
        %5251 = vst [vmem:[%s232 + $0x98] sm:$0xff] %v5219
        %5252 = vst [vmem:[%s232 + $0xa0] sm:$0xff] %v5220
        %5253 = vst [vmem:[%s232 + $0xa8] sm:$0xff] %v5221
        %5254 = vst [vmem:[%s232 + $0xb0] sm:$0xff] %v5222
        %5255 = vst [vmem:[%s232 + $0xb8] sm:$0xff] %v5223
        %5256 = vst [vmem:[%s232 + $0xc0] sm:$0xff] %v5224
        %5257 = vst [vmem:[%s232 + $0xc8] sm:$0xff] %v5225
        %5258 = vst [vmem:[%s232 + $0xd0] sm:$0xff] %v5226
        %5259 = vst [vmem:[%s232 + $0xd8] sm:$0xff] %v5227
        %5260 = vst [vmem:[%s232 + $0xe0] sm:$0xff] %v5228
        %5261 = vst [vmem:[%s232 + $0xe8] sm:$0xff] %v5229
        %5262 = vst [vmem:[%s232 + $0xf0] sm:$0xff] %v5230
        %5263 = vst [vmem:[%s232 + $0xf8] sm:$0xff] %v5231
        %s5264 = sand.u32 %s138, 1
        %s5265 = scalar_lea.sflag [#allocation5], %s5264
        %s5266 = sand.u32 %s138, 1
        %s5267 = smul.addr %s5266, 256
        %s5268 = scalar_lea.vmem [#allocation6], %s5267
        // Predicated region
        $region45: #{tpu_custom_call.1} parent=39 // pred_check
          %p5269 = pneg %p148
        $region46: #{tpu_custom_call.1} parent=39 // pred_check_branch
          %5271 = sbr.rel (%p5269) target = $region48
        $region47: #{tpu_custom_call.1} parent=39 // pred_region
          %s5273 = ssub.s32 4096, 4096
          %5274 = vsyncadd %s5265, %s5273
          %s5275 = smul.addr %s20, 32
          %s5276 = smul.addr %s5275, 128
          %s5277 = scalar_lea.hbm %s5, %s5276
          %s5278 = sshll.u32 %s5268, 4
          %s5279 = int_to_ptr.vmem [resolvable:$true] %s5278
          %5284 = dma.vmem_to_hbm [thread:$0]  %s5279, 4096, %s5277, %s5265, 128, 128, 8
        $region48: #{tpu_custom_call.1} parent=39 // pred_fallthru
          _
      $region40: #{tpu_custom_call.1} parent=5 // pred_fallthru
        _
      %p5285 = scmp.le.s32.totalorder 2, %s15
      // Predicated region
      $region49: #{tpu_custom_call.1} parent=5 // pred_check
        %p5286 = pneg %p5285
      $region50: #{tpu_custom_call.1} parent=5 // pred_check_branch
        %5288 = sbr.rel (%p5286) target = $region52
      $region51: #{tpu_custom_call.1} parent=5 // pred_region
        %s5289 = ssub.s32 %s15, 2
        // Predicated region
        $region53: #{tpu_custom_call.1} parent=51 // pred_check
          %p5290 = pneg %p154
        $region54: #{tpu_custom_call.1} parent=51 // pred_check_branch
          %5292 = sbr.rel (%p5290) target = $region56
        $region55: #{tpu_custom_call.1} parent=51 // pred_region
          %s5293 = sand.u32 %s139, 1
          %s5294 = scalar_lea.sflag [#allocation5], %s5293
          %s5295 = sand.u32 %s139, 1
          %s5296 = smul.addr %s5295, 256
          %s5297 = scalar_lea.vmem [#allocation6], %s5296
          %5298 = dma.done %s5294, 4096
        $region56: #{tpu_custom_call.1} parent=51 // pred_fallthru
          _
      $region52: #{tpu_custom_call.1} parent=5 // pred_fallthru
        _
    $region6: #{tpu_custom_call.1} parent=1 // loop_footer
      %s19 = sadd.s32 1, %s15
    $region7: #{tpu_custom_call.1} parent=1 // loop_footer_branch
      %14 = sbr.rel target = $region3
    $region8: #{tpu_custom_call.1} parent=1 // loop_exit
      _
    %5299 = vsyncpa [#allocation4], 1
    %s5300 = scalar_lea.sflag [#allocation4], 1
    %5301 = vsyncpa %s5300, 1
    %5302 = vsyncpa [#allocation5], 1
    %s5303 = scalar_lea.sflag [#allocation5], 1
    %5304 = vsyncpa %s5303, 1

</llo_original>
